<compile_context>
chip_gen: v5e
topology: v5e:2x2
jax: 0.10.0
libtpu: 0.0.40
codegen_flags: <defaults>
</compile_context>

<pallas_src>
import jax
import jax.numpy as jnp
import numpy as np
from jax.experimental import pallas as pl
from jax.experimental.pallas import tpu as pltpu

# ---- hyper-parameters (small, consistent with the PyTorch module) ----
# conv1 = Conv1D1x1(45, n_blk_res) forces n_features == 15 (cat of x/mean/std).
B = 16                 # batch (multiple of B_TILE)
B_TILE = 8             # examples packed per grid step -> B_TILE*T = 128 rows
N_FEATURES = 15        # input channels (PyTorch dim=1)
T = 16                 # sequence length (PyTorch dim=2)
R = 32                 # n_blk_res
S = 32                 # n_blk_skip (== n_blk_res so fc1 in-dim matches the cat)
KERNEL_SIZE = 2
N_STACKS = 2
LAYERS_PER_STACK = 3
N_LAYERS = N_STACKS * LAYERS_PER_STACK
FC_HIDDEN = 100
OUT_PAD = 128          # lane-dense output slab; the real logit is column 0

DILATIONS = tuple(2 ** (l % LAYERS_PER_STACK) for l in range(N_LAYERS))

assert B % B_TILE == 0


def wavenet_kernel(x_ref, wx_ref, wm_ref, wsd_ref, bc1_ref,
                   Wc_ref, bc_ref, Wrs_ref, brs_ref,
                   W1_ref, b1_ref, Wv_ref, bv_ref, o_ref):
    f32 = jnp.float32
    xb = x_ref[...]                                       # (B_TILE, T, F)

    # --- standardize over time (torch.std is unbiased ddof=1; eps on std) ---
    mean = jnp.mean(xb, axis=1, keepdims=True)            # (B_TILE, 1, F)
    diff = xb - mean
    var = jnp.sum(diff * diff, axis=1, keepdims=True) * (1.0 / (T - 1))
    std = jnp.sqrt(var) + 1e-8
    x_scaled = (diff * pl.reciprocal(std)).reshape(B_TILE * T, N_FEATURES)

    # --- conv1 (1x1): concat [x_scaled, mean, std] folded into 3 matmuls;
    #     the mean/std parts are per-example constants broadcast over T.
    const = (jnp.dot(mean.reshape(B_TILE, N_FEATURES), wm_ref[...],
                     preferred_element_type=f32)
             + jnp.dot(std.reshape(B_TILE, N_FEATURES), wsd_ref[...],
                       preferred_element_type=f32)
             + bc1_ref[...])                              # (B_TILE, R)
    const_rows = jnp.broadcast_to(
        const[:, None, :], (B_TILE, T, R)).reshape(B_TILE * T, R)
    h = jnp.dot(x_scaled, wx_ref[...], preferred_element_type=f32) + const_rows

    # causal masks, hoisted out of the loop: one per distinct dilation.
    # t_idx = time index (within its example) of each packed row; rows with
    # t < d are zeroed so taps never leak across packed example boundaries.
    t_idx = jax.lax.broadcasted_iota(
        jnp.int32, (B_TILE, T, R), 1).reshape(B_TILE * T, R)
    causal_mask = {d: t_idx >= d for d in sorted(set(DILATIONS))}

    fc1_acc = None
    for l in range(N_LAYERS):                             # unrolled at trace time
        d = DILATIONS[l]
        # dilated causal tap: roll rows down by d (XLU, once per layer) + mask
        h_shift = jnp.where(causal_mask[d], pltpu.roll(h, shift=d, axis=0), 0.0)
        # wn dropout: p = 1 - wn_dropout_keep = 0 -> identity
        acc = (jnp.dot(h_shift, Wc_ref[l, 0], preferred_element_type=f32)
               + jnp.dot(h, Wc_ref[l, 1], preferred_element_type=f32)
               + bc_ref[l:l + 1, :])                      # (B_TILE*T, 2R)
        g = jnp.tanh(acc[:, :R]) * jax.nn.sigmoid(acc[:, R:])   # gated (tanh)

        # fused residual (lanes [0:R]) + skip (lanes [R:R+S]) 1x1 convs:
        # one matmul against the lane-concatenated weight [Wr | Ws].
        rs = (jnp.dot(g, Wrs_ref[l], preferred_element_type=f32)
              + brs_ref[l:l + 1, :])                      # (B_TILE*T, R+S)
        h = rs[:, :R] + h                                 # residual connection

        # skip path: only the last time step feeds the fc head.  relu of the
        # concatenated skips distributes over segments, so accumulate
        # relu(skip_l) @ W1[l] directly (no lane concat, no K=192 matmul).
        rs_last = rs.reshape(B_TILE, T, R + S)[:, T - 1, :]   # (B_TILE, R+S)
        skip = jnp.maximum(rs_last[:, R:], 0.0)               # (B_TILE, S)
        term = jnp.dot(skip, W1_ref[l], preferred_element_type=f32)
        fc1_acc = term if fc1_acc is None else fc1_acc + term

    # fc dropouts: p = 1 - fc_dropout_keep = 0 -> identity
    z = jnp.maximum(fc1_acc + b1_ref[...], 0.0)           # (B_TILE, FC_HIDDEN)
    o_ref[...] = (jnp.dot(z, Wv_ref[...], preferred_element_type=f32)
                  + bv_ref[...])                          # (B_TILE, OUT_PAD)


def init_params(key):
    """Deterministic synthetic params (normal(0,0.02) convs, normal(0,0.01) linears)."""
    ks = jax.random.split(key, 9)
    return {
        'wc1': 0.02 * jax.random.normal(ks[0], (3 * N_FEATURES, R), jnp.float32),
        'bc1': jnp.zeros((1, R), jnp.float32),
        'Wc': 0.02 * jax.random.normal(ks[1], (N_LAYERS, KERNEL_SIZE, R, 2 * R), jnp.float32),
        'bc': 0.01 * jax.random.normal(ks[2], (N_LAYERS, 2 * R), jnp.float32),
        'Wr': 0.02 * jax.random.normal(ks[3], (N_LAYERS, R, R), jnp.float32),
        'br': 0.01 * jax.random.normal(ks[4], (N_LAYERS, R), jnp.float32),
        'Ws': 0.02 * jax.random.normal(ks[5], (N_LAYERS, R, S), jnp.float32),
        'bs': 0.01 * jax.random.normal(ks[6], (N_LAYERS, S), jnp.float32),
        'W1': 0.01 * jax.random.normal(ks[7], (S * N_LAYERS, FC_HIDDEN), jnp.float32),
        'b1': jnp.zeros((1, FC_HIDDEN), jnp.float32),
        'Wv': 0.01 * jax.random.normal(ks[8], (FC_HIDDEN, 1), jnp.float32),
        'bv': jnp.zeros((1, 1), jnp.float32),
    }


@jax.jit
def wavenet_pallas(x_btc, params):
    # NOTE for real PyTorch weights: Conv1d weights (C_out, C_in, K) must be
    # transposed to the (K, C_in, C_out)/(C_in, C_out) slabs used here, and the
    # wc1 row blocks must follow the [x_scaled, mean, std] concat order.
    wc1 = params['wc1']
    wx = wc1[:N_FEATURES]
    wm = wc1[N_FEATURES:2 * N_FEATURES]
    wsd = wc1[2 * N_FEATURES:]
    # fuse residual / skip 1x1 weights along output lanes (host-side prep)
    Wrs = jnp.concatenate([params['Wr'], params['Ws']], axis=2)   # (L, R, R+S)
    brs = jnp.concatenate([params['br'], params['bs']], axis=1)   # (L, R+S)
    W1r = params['W1'].reshape(N_LAYERS, S, FC_HIDDEN)      # row block l -> layer l
    Wv_pad = jnp.pad(params['Wv'], ((0, 0), (0, OUT_PAD - 1)))  # lane-dense output
    bv_pad = jnp.pad(params['bv'], ((0, 0), (0, OUT_PAD - 1)))

    def full(shape):
        return pl.BlockSpec(shape, lambda b, _n=len(shape): (0,) * _n)

    in_specs = [
        pl.BlockSpec((B_TILE, T, N_FEATURES), lambda b: (b, 0, 0)),
        full((N_FEATURES, R)), full((N_FEATURES, R)), full((N_FEATURES, R)),
        full((1, R)),
        full((N_LAYERS, KERNEL_SIZE, R, 2 * R)), full((N_LAYERS, 2 * R)),
        full((N_LAYERS, R, R + S)), full((N_LAYERS, R + S)),
        full((N_LAYERS, S, FC_HIDDEN)), full((1, FC_HIDDEN)),
        full((FC_HIDDEN, OUT_PAD)), full((1, OUT_PAD)),
    ]
    out = pl.pallas_call(
        wavenet_kernel,
        out_shape=jax.ShapeDtypeStruct((B, OUT_PAD), jnp.float32),
        grid=(B // B_TILE,),
        in_specs=in_specs,
        out_specs=pl.BlockSpec((B_TILE, OUT_PAD), lambda b: (b, 0)),
        compiler_params=pltpu.CompilerParams(
            dimension_semantics=("parallel",)),   # batch tiles are independent
    )(x_btc, wx, wm, wsd, params['bc1'],
      params['Wc'], params['bc'], Wrs, brs,
      W1r, params['b1'], Wv_pad, bv_pad)
    return out[:, :1]                                      # (B, 1) logits


def wavenet_ref(x, p):
    """Pure-JAX reference with identical semantics, for a sanity check."""
    Bn = x.shape[0]
    mean = x.mean(axis=1, keepdims=True)
    var = ((x - mean) ** 2).sum(axis=1, keepdims=True) / (T - 1)
    std = jnp.sqrt(var) + 1e-8
    feat = jnp.concatenate([(x - mean) / std,
                            jnp.broadcast_to(mean, x.shape),
                            jnp.broadcast_to(std, x.shape)], axis=2)
    h = jnp.einsum('btf,fr->btr', feat, p['wc1']) + p['bc1']
    skips = []
    for l in range(N_LAYERS):
        d = 2 ** (l % LAYERS_PER_STACK)
        acc = jnp.broadcast_to(p['bc'][l], (Bn, T, 2 * R)).astype(jnp.float32)
        for k in range(KERNEL_SIZE):
            s = d * (KERNEL_SIZE - 1 - k)
            m = jnp.einsum('btr,rc->btc', h, p['Wc'][l, k])
            if s > 0:
                m = jnp.concatenate(
                    [jnp.zeros((Bn, s, 2 * R), jnp.float32), m[:, :T - s]], axis=1)
            acc = acc + m
        g = jnp.tanh(acc[..., :R]) * jax.nn.sigmoid(acc[..., R:])
        skips.append(jnp.einsum('br,rs->bs', g[:, -1], p['Ws'][l]) + p['bs'][l])
        h = jnp.einsum('btr,rq->btq', g, p['Wr'][l]) + p['br'][l] + h
    cat = jnp.concatenate(skips, axis=1)
    z = jax.nn.relu(cat)
    z = jax.nn.relu(z @ p['W1'] + p['b1'])
    return z @ p['Wv'] + p['bv']


if __name__ == "__main__":
    key = jax.random.PRNGKey(0)
    kx, kp = jax.random.split(key)
    # PyTorch-layout input (B, C, T); transpose to the kernel layout (B, T, C).
    batch_nct = jax.random.normal(kx, (B, N_FEATURES, T), jnp.float32)
    x_btc = jnp.transpose(batch_nct, (0, 2, 1))
    params = init_params(kp)

    logits = wavenet_pallas(x_btc, params)
    jax.block_until_ready(logits)
    assert logits.shape == (B, 1)

    ref = wavenet_ref(x_btc, params)
    np.testing.assert_allclose(np.asarray(logits), np.asarray(ref),
                               rtol=1e-4, atol=1e-6)
    print("KERNEL_OK")
</pallas_src>

<mosaic_0001>
module attributes {stable_mosaic.version = 11 : i64} {
  func.func @wavenet_kernel(%arg0: i32, %arg1: memref<8x16x15xf32, #tpu.memory_space<vmem>>, %arg2: memref<15x32xf32, #tpu.memory_space<vmem>>, %arg3: memref<15x32xf32, #tpu.memory_space<vmem>>, %arg4: memref<15x32xf32, #tpu.memory_space<vmem>>, %arg5: memref<1x32xf32, #tpu.memory_space<vmem>>, %arg6: memref<6x2x32x64xf32, #tpu.memory_space<vmem>>, %arg7: memref<6x64xf32, #tpu.memory_space<vmem>>, %arg8: memref<6x32x64xf32, #tpu.memory_space<vmem>>, %arg9: memref<6x64xf32, #tpu.memory_space<vmem>>, %arg10: memref<6x32x100xf32, #tpu.memory_space<vmem>>, %arg11: memref<1x100xf32, #tpu.memory_space<vmem>>, %arg12: memref<100x128xf32, #tpu.memory_space<vmem>>, %arg13: memref<1x128xf32, #tpu.memory_space<vmem>>, %arg14: memref<8x128xf32, #tpu.memory_space<vmem>>) attributes {dimension_semantics = [#tpu.dimension_semantics<parallel>], iteration_bounds = array<i64: 2>, scalar_prefetch = 0 : i64, scratch_operands = 0 : i64, tpu.core_type = #tpu.core_type<tc>, window_params = [{transform_indices = @transform_0, window_bounds = array<i64: 8, 16, 15>}, {pipeline_mode = #tpu.pipeline_mode<synchronous>, transform_indices = @transform_1, window_bounds = array<i64: 15, 32>}, {pipeline_mode = #tpu.pipeline_mode<synchronous>, transform_indices = @transform_2, window_bounds = array<i64: 15, 32>}, {pipeline_mode = #tpu.pipeline_mode<synchronous>, transform_indices = @transform_3, window_bounds = array<i64: 15, 32>}, {pipeline_mode = #tpu.pipeline_mode<synchronous>, transform_indices = @transform_4, window_bounds = array<i64: 1, 32>}, {pipeline_mode = #tpu.pipeline_mode<synchronous>, transform_indices = @transform_5, window_bounds = array<i64: 6, 2, 32, 64>}, {pipeline_mode = #tpu.pipeline_mode<synchronous>, transform_indices = @transform_6, window_bounds = array<i64: 6, 64>}, {pipeline_mode = #tpu.pipeline_mode<synchronous>, transform_indices = @transform_7, window_bounds = array<i64: 6, 32, 64>}, {pipeline_mode = #tpu.pipeline_mode<synchronous>, transform_indices = @transform_8, window_bounds = array<i64: 6, 64>}, {pipeline_mode = #tpu.pipeline_mode<synchronous>, transform_indices = @transform_9, window_bounds = array<i64: 6, 32, 100>}, {pipeline_mode = #tpu.pipeline_mode<synchronous>, transform_indices = @transform_10, window_bounds = array<i64: 1, 100>}, {pipeline_mode = #tpu.pipeline_mode<synchronous>, transform_indices = @transform_11, window_bounds = array<i64: 100, 128>}, {pipeline_mode = #tpu.pipeline_mode<synchronous>, transform_indices = @transform_12, window_bounds = array<i64: 1, 128>}, {transform_indices = @transform_13, window_bounds = array<i64: 8, 128>}]} {
    %c0 = arith.constant 0 : index
    %c0_0 = arith.constant 0 : index
    %c0_1 = arith.constant 0 : index
    %0 = vector.load %arg1[%c0, %c0_0, %c0_1] : memref<8x16x15xf32, #tpu.memory_space<vmem>>, vector<8x16x15xf32>
    %cst = arith.constant dense<0.000000e+00> : vector<8x15xf32>
    %1 = vector.multi_reduction <add>, %0, %cst [1] : vector<8x16x15xf32> to vector<8x15xf32>
    %2 = vector.shape_cast %1 : vector<8x15xf32> to vector<8x1x15xf32>
    %cst_2 = arith.constant 1.600000e+01 : f32
    %3 = vector.broadcast %cst_2 : f32 to vector<8x1x15xf32>
    %4 = arith.divf %2, %3 : vector<8x1x15xf32>
    %5 = vector.broadcast %4 : vector<8x1x15xf32> to vector<8x16x15xf32>
    %6 = arith.subf %0, %5 : vector<8x16x15xf32>
    %7 = arith.mulf %6, %6 : vector<8x16x15xf32>
    %cst_3 = arith.constant dense<0.000000e+00> : vector<8x15xf32>
    %8 = vector.multi_reduction <add>, %7, %cst_3 [1] : vector<8x16x15xf32> to vector<8x15xf32>
    %9 = vector.shape_cast %8 : vector<8x15xf32> to vector<8x1x15xf32>
    %cst_4 = arith.constant 0.0666666701 : f32
    %10 = vector.broadcast %cst_4 : f32 to vector<8x1x15xf32>
    %11 = arith.mulf %9, %10 : vector<8x1x15xf32>
    %12 = math.sqrt %11 : vector<8x1x15xf32>
    %cst_5 = arith.constant 9.99999993E-9 : f32
    %13 = vector.broadcast %cst_5 : f32 to vector<8x1x15xf32>
    %14 = arith.addf %12, %13 : vector<8x1x15xf32>
    %15 = tpu.reciprocal %14 : vector<8x1x15xf32> -> vector<8x1x15xf32>
    %16 = vector.broadcast %15 : vector<8x1x15xf32> to vector<8x16x15xf32>
    %17 = arith.mulf %6, %16 : vector<8x16x15xf32>
    %18 = vector.shape_cast %17 : vector<8x16x15xf32> to vector<128x15xf32>
    %19 = vector.shape_cast %4 : vector<8x1x15xf32> to vector<8x15xf32>
    %c0_6 = arith.constant 0 : index
    %c0_7 = arith.constant 0 : index
    %20 = vector.load %arg3[%c0_6, %c0_7] : memref<15x32xf32, #tpu.memory_space<vmem>>, vector<15x32xf32>
    %cst_8 = arith.constant dense<0.000000e+00> : vector<8x32xf32>
    %21 = tpu.matmul %19, %20, %cst_8 {dimension_numbers = #tpu.dot_dimension_numbers<[1], [0], [0], [1], [0, 0, 1, 1], [], []>} : vector<8x15xf32>, vector<15x32xf32>, vector<8x32xf32> -> vector<8x32xf32>
    %22 = vector.shape_cast %14 : vector<8x1x15xf32> to vector<8x15xf32>
    %c0_9 = arith.constant 0 : index
    %c0_10 = arith.constant 0 : index
    %23 = vector.load %arg4[%c0_9, %c0_10] : memref<15x32xf32, #tpu.memory_space<vmem>>, vector<15x32xf32>
    %cst_11 = arith.constant dense<0.000000e+00> : vector<8x32xf32>
    %24 = tpu.matmul %22, %23, %cst_11 {dimension_numbers = #tpu.dot_dimension_numbers<[1], [0], [0], [1], [0, 0, 1, 1], [], []>} : vector<8x15xf32>, vector<15x32xf32>, vector<8x32xf32> -> vector<8x32xf32>
    %25 = arith.addf %21, %24 : vector<8x32xf32>
    %c0_12 = arith.constant 0 : index
    %c0_13 = arith.constant 0 : index
    %26 = vector.load %arg5[%c0_12, %c0_13] : memref<1x32xf32, #tpu.memory_space<vmem>>, vector<1x32xf32>
    %27 = vector.broadcast %26 : vector<1x32xf32> to vector<8x32xf32>
    %28 = arith.addf %25, %27 : vector<8x32xf32>
    %29 = vector.shape_cast %28 : vector<8x32xf32> to vector<8x1x32xf32>
    %30 = vector.shape_cast %29 : vector<8x1x32xf32> to vector<8x1x32xf32>
    %31 = vector.broadcast %30 : vector<8x1x32xf32> to vector<8x16x32xf32>
    %32 = vector.shape_cast %31 : vector<8x16x32xf32> to vector<128x32xf32>
    %c0_14 = arith.constant 0 : index
    %c0_15 = arith.constant 0 : index
    %33 = vector.load %arg2[%c0_14, %c0_15] : memref<15x32xf32, #tpu.memory_space<vmem>>, vector<15x32xf32>
    %cst_16 = arith.constant dense<0.000000e+00> : vector<128x32xf32>
    %34 = tpu.matmul %18, %33, %cst_16 {dimension_numbers = #tpu.dot_dimension_numbers<[1], [0], [0], [1], [0, 0, 1, 1], [], []>} : vector<128x15xf32>, vector<15x32xf32>, vector<128x32xf32> -> vector<128x32xf32>
    %35 = arith.addf %34, %32 : vector<128x32xf32>
    %36 = tpu.iota {dimensions = array<i32: 1>} : vector<8x16x32xi32>
    %37 = vector.shape_cast %36 : vector<8x16x32xi32> to vector<128x32xi32>
    %c1_i32 = arith.constant 1 : i32
    %38 = vector.broadcast %c1_i32 : i32 to vector<128x32xi32>
    %39 = arith.cmpi sge, %37, %38 : vector<128x32xi32>
    %c2_i32 = arith.constant 2 : i32
    %40 = vector.broadcast %c2_i32 : i32 to vector<128x32xi32>
    %41 = arith.cmpi sge, %37, %40 : vector<128x32xi32>
    %c4_i32 = arith.constant 4 : i32
    %42 = vector.broadcast %c4_i32 : i32 to vector<128x32xi32>
    %43 = arith.cmpi sge, %37, %42 : vector<128x32xi32>
    %c1_i32_17 = arith.constant 1 : i32
    %44 = tpu.dynamic_rotate %35 by %c1_i32_17 dim 0 : vector<128x32xf32>, i32 -> vector<128x32xf32>
    %cst_18 = arith.constant 0.000000e+00 : f32
    %45 = vector.broadcast %cst_18 : f32 to vector<128x32xf32>
    %46 = arith.select %39, %44, %45 : vector<128x32xi1>, vector<128x32xf32>
    %c0_19 = arith.constant 0 : index
    %c0_20 = arith.constant 0 : index
    %c0_21 = arith.constant 0 : index
    %c0_22 = arith.constant 0 : index
    %47 = vector.load %arg6[%c0_19, %c0_20, %c0_21, %c0_22] : memref<6x2x32x64xf32, #tpu.memory_space<vmem>>, vector<1x1x32x64xf32>
    %48 = vector.shape_cast %47 : vector<1x1x32x64xf32> to vector<32x64xf32>
    %cst_23 = arith.constant dense<0.000000e+00> : vector<128x64xf32>
    %49 = tpu.matmul %46, %48, %cst_23 {dimension_numbers = #tpu.dot_dimension_numbers<[1], [0], [0], [1], [0, 0, 1, 1], [], []>} : vector<128x32xf32>, vector<32x64xf32>, vector<128x64xf32> -> vector<128x64xf32>
    %c0_24 = arith.constant 0 : index
    %c1 = arith.constant 1 : index
    %c0_25 = arith.constant 0 : index
    %c0_26 = arith.constant 0 : index
    %50 = vector.load %arg6[%c0_24, %c1, %c0_25, %c0_26] : memref<6x2x32x64xf32, #tpu.memory_space<vmem>>, vector<1x1x32x64xf32>
    %51 = vector.shape_cast %50 : vector<1x1x32x64xf32> to vector<32x64xf32>
    %cst_27 = arith.constant dense<0.000000e+00> : vector<128x64xf32>
    %52 = tpu.matmul %35, %51, %cst_27 {dimension_numbers = #tpu.dot_dimension_numbers<[1], [0], [0], [1], [0, 0, 1, 1], [], []>} : vector<128x32xf32>, vector<32x64xf32>, vector<128x64xf32> -> vector<128x64xf32>
    %53 = arith.addf %49, %52 : vector<128x64xf32>
    %c0_28 = arith.constant 0 : index
    %c0_29 = arith.constant 0 : index
    %54 = vector.load %arg7[%c0_28, %c0_29] : memref<6x64xf32, #tpu.memory_space<vmem>>, vector<1x64xf32>
    %55 = vector.broadcast %54 : vector<1x64xf32> to vector<128x64xf32>
    %56 = arith.addf %53, %55 : vector<128x64xf32>
    %57 = vector.extract_strided_slice %56 {offsets = [0, 0], sizes = [128, 32], strides = [1, 1]} : vector<128x64xf32> to vector<128x32xf32>
    %58 = math.tanh %57 : vector<128x32xf32>
    %59 = vector.extract_strided_slice %56 {offsets = [0, 32], sizes = [128, 32], strides = [1, 1]} : vector<128x64xf32> to vector<128x32xf32>
    %60 = arith.negf %59 : vector<128x32xf32>
    %61 = math.exp %60 : vector<128x32xf32>
    %cst_30 = arith.constant 1.000000e+00 : f32
    %62 = vector.broadcast %cst_30 : f32 to vector<128x32xf32>
    %63 = arith.addf %62, %61 : vector<128x32xf32>
    %64 = arith.divf %62, %63 : vector<128x32xf32>
    %65 = arith.mulf %58, %64 : vector<128x32xf32>
    %c0_31 = arith.constant 0 : index
    %c0_32 = arith.constant 0 : index
    %c0_33 = arith.constant 0 : index
    %66 = vector.load %arg8[%c0_31, %c0_32, %c0_33] : memref<6x32x64xf32, #tpu.memory_space<vmem>>, vector<1x32x64xf32>
    %67 = vector.shape_cast %66 : vector<1x32x64xf32> to vector<32x64xf32>
    %cst_34 = arith.constant dense<0.000000e+00> : vector<128x64xf32>
    %68 = tpu.matmul %65, %67, %cst_34 {dimension_numbers = #tpu.dot_dimension_numbers<[1], [0], [0], [1], [0, 0, 1, 1], [], []>} : vector<128x32xf32>, vector<32x64xf32>, vector<128x64xf32> -> vector<128x64xf32>
    %c0_35 = arith.constant 0 : index
    %c0_36 = arith.constant 0 : index
    %69 = vector.load %arg9[%c0_35, %c0_36] : memref<6x64xf32, #tpu.memory_space<vmem>>, vector<1x64xf32>
    %70 = vector.broadcast %69 : vector<1x64xf32> to vector<128x64xf32>
    %71 = arith.addf %68, %70 : vector<128x64xf32>
    %72 = vector.extract_strided_slice %71 {offsets = [0, 0], sizes = [128, 32], strides = [1, 1]} : vector<128x64xf32> to vector<128x32xf32>
    %73 = arith.addf %72, %35 : vector<128x32xf32>
    %74 = vector.shape_cast %71 : vector<128x64xf32> to vector<8x16x64xf32>
    %75 = vector.extract_strided_slice %74 {offsets = [0, 15, 0], sizes = [8, 1, 64], strides = [1, 1, 1]} : vector<8x16x64xf32> to vector<8x1x64xf32>
    %76 = vector.shape_cast %75 : vector<8x1x64xf32> to vector<8x64xf32>
    %77 = vector.extract_strided_slice %76 {offsets = [0, 32], sizes = [8, 32], strides = [1, 1]} : vector<8x64xf32> to vector<8x32xf32>
    %cst_37 = arith.constant 0.000000e+00 : f32
    %78 = vector.broadcast %cst_37 : f32 to vector<8x32xf32>
    %79 = arith.maximumf %77, %78 : vector<8x32xf32>
    %c0_38 = arith.constant 0 : index
    %c0_39 = arith.constant 0 : index
    %c0_40 = arith.constant 0 : index
    %80 = vector.load %arg10[%c0_38, %c0_39, %c0_40] : memref<6x32x100xf32, #tpu.memory_space<vmem>>, vector<1x32x100xf32>
    %81 = vector.shape_cast %80 : vector<1x32x100xf32> to vector<32x100xf32>
    %cst_41 = arith.constant dense<0.000000e+00> : vector<8x100xf32>
    %82 = tpu.matmul %79, %81, %cst_41 {dimension_numbers = #tpu.dot_dimension_numbers<[1], [0], [0], [1], [0, 0, 1, 1], [], []>} : vector<8x32xf32>, vector<32x100xf32>, vector<8x100xf32> -> vector<8x100xf32>
    %c2_i32_42 = arith.constant 2 : i32
    %83 = tpu.dynamic_rotate %73 by %c2_i32_42 dim 0 : vector<128x32xf32>, i32 -> vector<128x32xf32>
    %cst_43 = arith.constant 0.000000e+00 : f32
    %84 = vector.broadcast %cst_43 : f32 to vector<128x32xf32>
    %85 = arith.select %41, %83, %84 : vector<128x32xi1>, vector<128x32xf32>
    %c1_44 = arith.constant 1 : index
    %c0_45 = arith.constant 0 : index
    %c0_46 = arith.constant 0 : index
    %c0_47 = arith.constant 0 : index
    %86 = vector.load %arg6[%c1_44, %c0_45, %c0_46, %c0_47] : memref<6x2x32x64xf32, #tpu.memory_space<vmem>>, vector<1x1x32x64xf32>
    %87 = vector.shape_cast %86 : vector<1x1x32x64xf32> to vector<32x64xf32>
    %cst_48 = arith.constant dense<0.000000e+00> : vector<128x64xf32>
    %88 = tpu.matmul %85, %87, %cst_48 {dimension_numbers = #tpu.dot_dimension_numbers<[1], [0], [0], [1], [0, 0, 1, 1], [], []>} : vector<128x32xf32>, vector<32x64xf32>, vector<128x64xf32> -> vector<128x64xf32>
    %c1_49 = arith.constant 1 : index
    %c1_50 = arith.constant 1 : index
    %c0_51 = arith.constant 0 : index
    %c0_52 = arith.constant 0 : index
    %89 = vector.load %arg6[%c1_49, %c1_50, %c0_51, %c0_52] : memref<6x2x32x64xf32, #tpu.memory_space<vmem>>, vector<1x1x32x64xf32>
    %90 = vector.shape_cast %89 : vector<1x1x32x64xf32> to vector<32x64xf32>
    %cst_53 = arith.constant dense<0.000000e+00> : vector<128x64xf32>
    %91 = tpu.matmul %73, %90, %cst_53 {dimension_numbers = #tpu.dot_dimension_numbers<[1], [0], [0], [1], [0, 0, 1, 1], [], []>} : vector<128x32xf32>, vector<32x64xf32>, vector<128x64xf32> -> vector<128x64xf32>
    %92 = arith.addf %88, %91 : vector<128x64xf32>
    %c1_54 = arith.constant 1 : index
    %c0_55 = arith.constant 0 : index
    %93 = vector.load %arg7[%c1_54, %c0_55] : memref<6x64xf32, #tpu.memory_space<vmem>>, vector<1x64xf32>
    %94 = vector.broadcast %93 : vector<1x64xf32> to vector<128x64xf32>
    %95 = arith.addf %92, %94 : vector<128x64xf32>
    %96 = vector.extract_strided_slice %95 {offsets = [0, 0], sizes = [128, 32], strides = [1, 1]} : vector<128x64xf32> to vector<128x32xf32>
    %97 = math.tanh %96 : vector<128x32xf32>
    %98 = vector.extract_strided_slice %95 {offsets = [0, 32], sizes = [128, 32], strides = [1, 1]} : vector<128x64xf32> to vector<128x32xf32>
    %99 = arith.negf %98 : vector<128x32xf32>
    %100 = math.exp %99 : vector<128x32xf32>
    %cst_56 = arith.constant 1.000000e+00 : f32
    %101 = vector.broadcast %cst_56 : f32 to vector<128x32xf32>
    %102 = arith.addf %101, %100 : vector<128x32xf32>
    %103 = arith.divf %101, %102 : vector<128x32xf32>
    %104 = arith.mulf %97, %103 : vector<128x32xf32>
    %c1_57 = arith.constant 1 : index
    %c0_58 = arith.constant 0 : index
    %c0_59 = arith.constant 0 : index
    %105 = vector.load %arg8[%c1_57, %c0_58, %c0_59] : memref<6x32x64xf32, #tpu.memory_space<vmem>>, vector<1x32x64xf32>
    %106 = vector.shape_cast %105 : vector<1x32x64xf32> to vector<32x64xf32>
    %cst_60 = arith.constant dense<0.000000e+00> : vector<128x64xf32>
    %107 = tpu.matmul %104, %106, %cst_60 {dimension_numbers = #tpu.dot_dimension_numbers<[1], [0], [0], [1], [0, 0, 1, 1], [], []>} : vector<128x32xf32>, vector<32x64xf32>, vector<128x64xf32> -> vector<128x64xf32>
    %c1_61 = arith.constant 1 : index
    %c0_62 = arith.constant 0 : index
    %108 = vector.load %arg9[%c1_61, %c0_62] : memref<6x64xf32, #tpu.memory_space<vmem>>, vector<1x64xf32>
    %109 = vector.broadcast %108 : vector<1x64xf32> to vector<128x64xf32>
    %110 = arith.addf %107, %109 : vector<128x64xf32>
    %111 = vector.extract_strided_slice %110 {offsets = [0, 0], sizes = [128, 32], strides = [1, 1]} : vector<128x64xf32> to vector<128x32xf32>
    %112 = arith.addf %111, %73 : vector<128x32xf32>
    %113 = vector.shape_cast %110 : vector<128x64xf32> to vector<8x16x64xf32>
    %114 = vector.extract_strided_slice %113 {offsets = [0, 15, 0], sizes = [8, 1, 64], strides = [1, 1, 1]} : vector<8x16x64xf32> to vector<8x1x64xf32>
    %115 = vector.shape_cast %114 : vector<8x1x64xf32> to vector<8x64xf32>
    %116 = vector.extract_strided_slice %115 {offsets = [0, 32], sizes = [8, 32], strides = [1, 1]} : vector<8x64xf32> to vector<8x32xf32>
    %cst_63 = arith.constant 0.000000e+00 : f32
    %117 = vector.broadcast %cst_63 : f32 to vector<8x32xf32>
    %118 = arith.maximumf %116, %117 : vector<8x32xf32>
    %c1_64 = arith.constant 1 : index
    %c0_65 = arith.constant 0 : index
    %c0_66 = arith.constant 0 : index
    %119 = vector.load %arg10[%c1_64, %c0_65, %c0_66] : memref<6x32x100xf32, #tpu.memory_space<vmem>>, vector<1x32x100xf32>
    %120 = vector.shape_cast %119 : vector<1x32x100xf32> to vector<32x100xf32>
    %cst_67 = arith.constant dense<0.000000e+00> : vector<8x100xf32>
    %121 = tpu.matmul %118, %120, %cst_67 {dimension_numbers = #tpu.dot_dimension_numbers<[1], [0], [0], [1], [0, 0, 1, 1], [], []>} : vector<8x32xf32>, vector<32x100xf32>, vector<8x100xf32> -> vector<8x100xf32>
    %122 = arith.addf %82, %121 : vector<8x100xf32>
    %c4_i32_68 = arith.constant 4 : i32
    %123 = tpu.dynamic_rotate %112 by %c4_i32_68 dim 0 : vector<128x32xf32>, i32 -> vector<128x32xf32>
    %cst_69 = arith.constant 0.000000e+00 : f32
    %124 = vector.broadcast %cst_69 : f32 to vector<128x32xf32>
    %125 = arith.select %43, %123, %124 : vector<128x32xi1>, vector<128x32xf32>
    %c2 = arith.constant 2 : index
    %c0_70 = arith.constant 0 : index
    %c0_71 = arith.constant 0 : index
    %c0_72 = arith.constant 0 : index
    %126 = vector.load %arg6[%c2, %c0_70, %c0_71, %c0_72] : memref<6x2x32x64xf32, #tpu.memory_space<vmem>>, vector<1x1x32x64xf32>
    %127 = vector.shape_cast %126 : vector<1x1x32x64xf32> to vector<32x64xf32>
    %cst_73 = arith.constant dense<0.000000e+00> : vector<128x64xf32>
    %128 = tpu.matmul %125, %127, %cst_73 {dimension_numbers = #tpu.dot_dimension_numbers<[1], [0], [0], [1], [0, 0, 1, 1], [], []>} : vector<128x32xf32>, vector<32x64xf32>, vector<128x64xf32> -> vector<128x64xf32>
    %c2_74 = arith.constant 2 : index
    %c1_75 = arith.constant 1 : index
    %c0_76 = arith.constant 0 : index
    %c0_77 = arith.constant 0 : index
    %129 = vector.load %arg6[%c2_74, %c1_75, %c0_76, %c0_77] : memref<6x2x32x64xf32, #tpu.memory_space<vmem>>, vector<1x1x32x64xf32>
    %130 = vector.shape_cast %129 : vector<1x1x32x64xf32> to vector<32x64xf32>
    %cst_78 = arith.constant dense<0.000000e+00> : vector<128x64xf32>
    %131 = tpu.matmul %112, %130, %cst_78 {dimension_numbers = #tpu.dot_dimension_numbers<[1], [0], [0], [1], [0, 0, 1, 1], [], []>} : vector<128x32xf32>, vector<32x64xf32>, vector<128x64xf32> -> vector<128x64xf32>
    %132 = arith.addf %128, %131 : vector<128x64xf32>
    %c2_79 = arith.constant 2 : index
    %c0_80 = arith.constant 0 : index
    %133 = vector.load %arg7[%c2_79, %c0_80] : memref<6x64xf32, #tpu.memory_space<vmem>>, vector<1x64xf32>
    %134 = vector.broadcast %133 : vector<1x64xf32> to vector<128x64xf32>
    %135 = arith.addf %132, %134 : vector<128x64xf32>
    %136 = vector.extract_strided_slice %135 {offsets = [0, 0], sizes = [128, 32], strides = [1, 1]} : vector<128x64xf32> to vector<128x32xf32>
    %137 = math.tanh %136 : vector<128x32xf32>
    %138 = vector.extract_strided_slice %135 {offsets = [0, 32], sizes = [128, 32], strides = [1, 1]} : vector<128x64xf32> to vector<128x32xf32>
    %139 = arith.negf %138 : vector<128x32xf32>
    %140 = math.exp %139 : vector<128x32xf32>
    %cst_81 = arith.constant 1.000000e+00 : f32
    %141 = vector.broadcast %cst_81 : f32 to vector<128x32xf32>
    %142 = arith.addf %141, %140 : vector<128x32xf32>
    %143 = arith.divf %141, %142 : vector<128x32xf32>
    %144 = arith.mulf %137, %143 : vector<128x32xf32>
    %c2_82 = arith.constant 2 : index
    %c0_83 = arith.constant 0 : index
    %c0_84 = arith.constant 0 : index
    %145 = vector.load %arg8[%c2_82, %c0_83, %c0_84] : memref<6x32x64xf32, #tpu.memory_space<vmem>>, vector<1x32x64xf32>
    %146 = vector.shape_cast %145 : vector<1x32x64xf32> to vector<32x64xf32>
    %cst_85 = arith.constant dense<0.000000e+00> : vector<128x64xf32>
    %147 = tpu.matmul %144, %146, %cst_85 {dimension_numbers = #tpu.dot_dimension_numbers<[1], [0], [0], [1], [0, 0, 1, 1], [], []>} : vector<128x32xf32>, vector<32x64xf32>, vector<128x64xf32> -> vector<128x64xf32>
    %c2_86 = arith.constant 2 : index
    %c0_87 = arith.constant 0 : index
    %148 = vector.load %arg9[%c2_86, %c0_87] : memref<6x64xf32, #tpu.memory_space<vmem>>, vector<1x64xf32>
    %149 = vector.broadcast %148 : vector<1x64xf32> to vector<128x64xf32>
    %150 = arith.addf %147, %149 : vector<128x64xf32>
    %151 = vector.extract_strided_slice %150 {offsets = [0, 0], sizes = [128, 32], strides = [1, 1]} : vector<128x64xf32> to vector<128x32xf32>
    %152 = arith.addf %151, %112 : vector<128x32xf32>
    %153 = vector.shape_cast %150 : vector<128x64xf32> to vector<8x16x64xf32>
    %154 = vector.extract_strided_slice %153 {offsets = [0, 15, 0], sizes = [8, 1, 64], strides = [1, 1, 1]} : vector<8x16x64xf32> to vector<8x1x64xf32>
    %155 = vector.shape_cast %154 : vector<8x1x64xf32> to vector<8x64xf32>
    %156 = vector.extract_strided_slice %155 {offsets = [0, 32], sizes = [8, 32], strides = [1, 1]} : vector<8x64xf32> to vector<8x32xf32>
    %cst_88 = arith.constant 0.000000e+00 : f32
    %157 = vector.broadcast %cst_88 : f32 to vector<8x32xf32>
    %158 = arith.maximumf %156, %157 : vector<8x32xf32>
    %c2_89 = arith.constant 2 : index
    %c0_90 = arith.constant 0 : index
    %c0_91 = arith.constant 0 : index
    %159 = vector.load %arg10[%c2_89, %c0_90, %c0_91] : memref<6x32x100xf32, #tpu.memory_space<vmem>>, vector<1x32x100xf32>
    %160 = vector.shape_cast %159 : vector<1x32x100xf32> to vector<32x100xf32>
    %cst_92 = arith.constant dense<0.000000e+00> : vector<8x100xf32>
    %161 = tpu.matmul %158, %160, %cst_92 {dimension_numbers = #tpu.dot_dimension_numbers<[1], [0], [0], [1], [0, 0, 1, 1], [], []>} : vector<8x32xf32>, vector<32x100xf32>, vector<8x100xf32> -> vector<8x100xf32>
    %162 = arith.addf %122, %161 : vector<8x100xf32>
    %c1_i32_93 = arith.constant 1 : i32
    %163 = tpu.dynamic_rotate %152 by %c1_i32_93 dim 0 : vector<128x32xf32>, i32 -> vector<128x32xf32>
    %cst_94 = arith.constant 0.000000e+00 : f32
    %164 = vector.broadcast %cst_94 : f32 to vector<128x32xf32>
    %165 = arith.select %39, %163, %164 : vector<128x32xi1>, vector<128x32xf32>
    %c3 = arith.constant 3 : index
    %c0_95 = arith.constant 0 : index
    %c0_96 = arith.constant 0 : index
    %c0_97 = arith.constant 0 : index
    %166 = vector.load %arg6[%c3, %c0_95, %c0_96, %c0_97] : memref<6x2x32x64xf32, #tpu.memory_space<vmem>>, vector<1x1x32x64xf32>
    %167 = vector.shape_cast %166 : vector<1x1x32x64xf32> to vector<32x64xf32>
    %cst_98 = arith.constant dense<0.000000e+00> : vector<128x64xf32>
    %168 = tpu.matmul %165, %167, %cst_98 {dimension_numbers = #tpu.dot_dimension_numbers<[1], [0], [0], [1], [0, 0, 1, 1], [], []>} : vector<128x32xf32>, vector<32x64xf32>, vector<128x64xf32> -> vector<128x64xf32>
    %c3_99 = arith.constant 3 : index
    %c1_100 = arith.constant 1 : index
    %c0_101 = arith.constant 0 : index
    %c0_102 = arith.constant 0 : index
    %169 = vector.load %arg6[%c3_99, %c1_100, %c0_101, %c0_102] : memref<6x2x32x64xf32, #tpu.memory_space<vmem>>, vector<1x1x32x64xf32>
    %170 = vector.shape_cast %169 : vector<1x1x32x64xf32> to vector<32x64xf32>
    %cst_103 = arith.constant dense<0.000000e+00> : vector<128x64xf32>
    %171 = tpu.matmul %152, %170, %cst_103 {dimension_numbers = #tpu.dot_dimension_numbers<[1], [0], [0], [1], [0, 0, 1, 1], [], []>} : vector<128x32xf32>, vector<32x64xf32>, vector<128x64xf32> -> vector<128x64xf32>
    %172 = arith.addf %168, %171 : vector<128x64xf32>
    %c3_104 = arith.constant 3 : index
    %c0_105 = arith.constant 0 : index
    %173 = vector.load %arg7[%c3_104, %c0_105] : memref<6x64xf32, #tpu.memory_space<vmem>>, vector<1x64xf32>
    %174 = vector.broadcast %173 : vector<1x64xf32> to vector<128x64xf32>
    %175 = arith.addf %172, %174 : vector<128x64xf32>
    %176 = vector.extract_strided_slice %175 {offsets = [0, 0], sizes = [128, 32], strides = [1, 1]} : vector<128x64xf32> to vector<128x32xf32>
    %177 = math.tanh %176 : vector<128x32xf32>
    %178 = vector.extract_strided_slice %175 {offsets = [0, 32], sizes = [128, 32], strides = [1, 1]} : vector<128x64xf32> to vector<128x32xf32>
    %179 = arith.negf %178 : vector<128x32xf32>
    %180 = math.exp %179 : vector<128x32xf32>
    %cst_106 = arith.constant 1.000000e+00 : f32
    %181 = vector.broadcast %cst_106 : f32 to vector<128x32xf32>
    %182 = arith.addf %181, %180 : vector<128x32xf32>
    %183 = arith.divf %181, %182 : vector<128x32xf32>
    %184 = arith.mulf %177, %183 : vector<128x32xf32>
    %c3_107 = arith.constant 3 : index
    %c0_108 = arith.constant 0 : index
    %c0_109 = arith.constant 0 : index
    %185 = vector.load %arg8[%c3_107, %c0_108, %c0_109] : memref<6x32x64xf32, #tpu.memory_space<vmem>>, vector<1x32x64xf32>
    %186 = vector.shape_cast %185 : vector<1x32x64xf32> to vector<32x64xf32>
    %cst_110 = arith.constant dense<0.000000e+00> : vector<128x64xf32>
    %187 = tpu.matmul %184, %186, %cst_110 {dimension_numbers = #tpu.dot_dimension_numbers<[1], [0], [0], [1], [0, 0, 1, 1], [], []>} : vector<128x32xf32>, vector<32x64xf32>, vector<128x64xf32> -> vector<128x64xf32>
    %c3_111 = arith.constant 3 : index
    %c0_112 = arith.constant 0 : index
    %188 = vector.load %arg9[%c3_111, %c0_112] : memref<6x64xf32, #tpu.memory_space<vmem>>, vector<1x64xf32>
    %189 = vector.broadcast %188 : vector<1x64xf32> to vector<128x64xf32>
    %190 = arith.addf %187, %189 : vector<128x64xf32>
    %191 = vector.extract_strided_slice %190 {offsets = [0, 0], sizes = [128, 32], strides = [1, 1]} : vector<128x64xf32> to vector<128x32xf32>
    %192 = arith.addf %191, %152 : vector<128x32xf32>
    %193 = vector.shape_cast %190 : vector<128x64xf32> to vector<8x16x64xf32>
    %194 = vector.extract_strided_slice %193 {offsets = [0, 15, 0], sizes = [8, 1, 64], strides = [1, 1, 1]} : vector<8x16x64xf32> to vector<8x1x64xf32>
    %195 = vector.shape_cast %194 : vector<8x1x64xf32> to vector<8x64xf32>
    %196 = vector.extract_strided_slice %195 {offsets = [0, 32], sizes = [8, 32], strides = [1, 1]} : vector<8x64xf32> to vector<8x32xf32>
    %cst_113 = arith.constant 0.000000e+00 : f32
    %197 = vector.broadcast %cst_113 : f32 to vector<8x32xf32>
    %198 = arith.maximumf %196, %197 : vector<8x32xf32>
    %c3_114 = arith.constant 3 : index
    %c0_115 = arith.constant 0 : index
    %c0_116 = arith.constant 0 : index
    %199 = vector.load %arg10[%c3_114, %c0_115, %c0_116] : memref<6x32x100xf32, #tpu.memory_space<vmem>>, vector<1x32x100xf32>
    %200 = vector.shape_cast %199 : vector<1x32x100xf32> to vector<32x100xf32>
    %cst_117 = arith.constant dense<0.000000e+00> : vector<8x100xf32>
    %201 = tpu.matmul %198, %200, %cst_117 {dimension_numbers = #tpu.dot_dimension_numbers<[1], [0], [0], [1], [0, 0, 1, 1], [], []>} : vector<8x32xf32>, vector<32x100xf32>, vector<8x100xf32> -> vector<8x100xf32>
    %202 = arith.addf %162, %201 : vector<8x100xf32>
    %c2_i32_118 = arith.constant 2 : i32
    %203 = tpu.dynamic_rotate %192 by %c2_i32_118 dim 0 : vector<128x32xf32>, i32 -> vector<128x32xf32>
    %cst_119 = arith.constant 0.000000e+00 : f32
    %204 = vector.broadcast %cst_119 : f32 to vector<128x32xf32>
    %205 = arith.select %41, %203, %204 : vector<128x32xi1>, vector<128x32xf32>
    %c4 = arith.constant 4 : index
    %c0_120 = arith.constant 0 : index
    %c0_121 = arith.constant 0 : index
    %c0_122 = arith.constant 0 : index
    %206 = vector.load %arg6[%c4, %c0_120, %c0_121, %c0_122] : memref<6x2x32x64xf32, #tpu.memory_space<vmem>>, vector<1x1x32x64xf32>
    %207 = vector.shape_cast %206 : vector<1x1x32x64xf32> to vector<32x64xf32>
    %cst_123 = arith.constant dense<0.000000e+00> : vector<128x64xf32>
    %208 = tpu.matmul %205, %207, %cst_123 {dimension_numbers = #tpu.dot_dimension_numbers<[1], [0], [0], [1], [0, 0, 1, 1], [], []>} : vector<128x32xf32>, vector<32x64xf32>, vector<128x64xf32> -> vector<128x64xf32>
    %c4_124 = arith.constant 4 : index
    %c1_125 = arith.constant 1 : index
    %c0_126 = arith.constant 0 : index
    %c0_127 = arith.constant 0 : index
    %209 = vector.load %arg6[%c4_124, %c1_125, %c0_126, %c0_127] : memref<6x2x32x64xf32, #tpu.memory_space<vmem>>, vector<1x1x32x64xf32>
    %210 = vector.shape_cast %209 : vector<1x1x32x64xf32> to vector<32x64xf32>
    %cst_128 = arith.constant dense<0.000000e+00> : vector<128x64xf32>
    %211 = tpu.matmul %192, %210, %cst_128 {dimension_numbers = #tpu.dot_dimension_numbers<[1], [0], [0], [1], [0, 0, 1, 1], [], []>} : vector<128x32xf32>, vector<32x64xf32>, vector<128x64xf32> -> vector<128x64xf32>
    %212 = arith.addf %208, %211 : vector<128x64xf32>
    %c4_129 = arith.constant 4 : index
    %c0_130 = arith.constant 0 : index
    %213 = vector.load %arg7[%c4_129, %c0_130] : memref<6x64xf32, #tpu.memory_space<vmem>>, vector<1x64xf32>
    %214 = vector.broadcast %213 : vector<1x64xf32> to vector<128x64xf32>
    %215 = arith.addf %212, %214 : vector<128x64xf32>
    %216 = vector.extract_strided_slice %215 {offsets = [0, 0], sizes = [128, 32], strides = [1, 1]} : vector<128x64xf32> to vector<128x32xf32>
    %217 = math.tanh %216 : vector<128x32xf32>
    %218 = vector.extract_strided_slice %215 {offsets = [0, 32], sizes = [128, 32], strides = [1, 1]} : vector<128x64xf32> to vector<128x32xf32>
    %219 = arith.negf %218 : vector<128x32xf32>
    %220 = math.exp %219 : vector<128x32xf32>
    %cst_131 = arith.constant 1.000000e+00 : f32
    %221 = vector.broadcast %cst_131 : f32 to vector<128x32xf32>
    %222 = arith.addf %221, %220 : vector<128x32xf32>
    %223 = arith.divf %221, %222 : vector<128x32xf32>
    %224 = arith.mulf %217, %223 : vector<128x32xf32>
    %c4_132 = arith.constant 4 : index
    %c0_133 = arith.constant 0 : index
    %c0_134 = arith.constant 0 : index
    %225 = vector.load %arg8[%c4_132, %c0_133, %c0_134] : memref<6x32x64xf32, #tpu.memory_space<vmem>>, vector<1x32x64xf32>
    %226 = vector.shape_cast %225 : vector<1x32x64xf32> to vector<32x64xf32>
    %cst_135 = arith.constant dense<0.000000e+00> : vector<128x64xf32>
    %227 = tpu.matmul %224, %226, %cst_135 {dimension_numbers = #tpu.dot_dimension_numbers<[1], [0], [0], [1], [0, 0, 1, 1], [], []>} : vector<128x32xf32>, vector<32x64xf32>, vector<128x64xf32> -> vector<128x64xf32>
    %c4_136 = arith.constant 4 : index
    %c0_137 = arith.constant 0 : index
    %228 = vector.load %arg9[%c4_136, %c0_137] : memref<6x64xf32, #tpu.memory_space<vmem>>, vector<1x64xf32>
    %229 = vector.broadcast %228 : vector<1x64xf32> to vector<128x64xf32>
    %230 = arith.addf %227, %229 : vector<128x64xf32>
    %231 = vector.extract_strided_slice %230 {offsets = [0, 0], sizes = [128, 32], strides = [1, 1]} : vector<128x64xf32> to vector<128x32xf32>
    %232 = arith.addf %231, %192 : vector<128x32xf32>
    %233 = vector.shape_cast %230 : vector<128x64xf32> to vector<8x16x64xf32>
    %234 = vector.extract_strided_slice %233 {offsets = [0, 15, 0], sizes = [8, 1, 64], strides = [1, 1, 1]} : vector<8x16x64xf32> to vector<8x1x64xf32>
    %235 = vector.shape_cast %234 : vector<8x1x64xf32> to vector<8x64xf32>
    %236 = vector.extract_strided_slice %235 {offsets = [0, 32], sizes = [8, 32], strides = [1, 1]} : vector<8x64xf32> to vector<8x32xf32>
    %cst_138 = arith.constant 0.000000e+00 : f32
    %237 = vector.broadcast %cst_138 : f32 to vector<8x32xf32>
    %238 = arith.maximumf %236, %237 : vector<8x32xf32>
    %c4_139 = arith.constant 4 : index
    %c0_140 = arith.constant 0 : index
    %c0_141 = arith.constant 0 : index
    %239 = vector.load %arg10[%c4_139, %c0_140, %c0_141] : memref<6x32x100xf32, #tpu.memory_space<vmem>>, vector<1x32x100xf32>
    %240 = vector.shape_cast %239 : vector<1x32x100xf32> to vector<32x100xf32>
    %cst_142 = arith.constant dense<0.000000e+00> : vector<8x100xf32>
    %241 = tpu.matmul %238, %240, %cst_142 {dimension_numbers = #tpu.dot_dimension_numbers<[1], [0], [0], [1], [0, 0, 1, 1], [], []>} : vector<8x32xf32>, vector<32x100xf32>, vector<8x100xf32> -> vector<8x100xf32>
    %242 = arith.addf %202, %241 : vector<8x100xf32>
    %c4_i32_143 = arith.constant 4 : i32
    %243 = tpu.dynamic_rotate %232 by %c4_i32_143 dim 0 : vector<128x32xf32>, i32 -> vector<128x32xf32>
    %cst_144 = arith.constant 0.000000e+00 : f32
    %244 = vector.broadcast %cst_144 : f32 to vector<128x32xf32>
    %245 = arith.select %43, %243, %244 : vector<128x32xi1>, vector<128x32xf32>
    %c5 = arith.constant 5 : index
    %c0_145 = arith.constant 0 : index
    %c0_146 = arith.constant 0 : index
    %c0_147 = arith.constant 0 : index
    %246 = vector.load %arg6[%c5, %c0_145, %c0_146, %c0_147] : memref<6x2x32x64xf32, #tpu.memory_space<vmem>>, vector<1x1x32x64xf32>
    %247 = vector.shape_cast %246 : vector<1x1x32x64xf32> to vector<32x64xf32>
    %cst_148 = arith.constant dense<0.000000e+00> : vector<128x64xf32>
    %248 = tpu.matmul %245, %247, %cst_148 {dimension_numbers = #tpu.dot_dimension_numbers<[1], [0], [0], [1], [0, 0, 1, 1], [], []>} : vector<128x32xf32>, vector<32x64xf32>, vector<128x64xf32> -> vector<128x64xf32>
    %c5_149 = arith.constant 5 : index
    %c1_150 = arith.constant 1 : index
    %c0_151 = arith.constant 0 : index
    %c0_152 = arith.constant 0 : index
    %249 = vector.load %arg6[%c5_149, %c1_150, %c0_151, %c0_152] : memref<6x2x32x64xf32, #tpu.memory_space<vmem>>, vector<1x1x32x64xf32>
    %250 = vector.shape_cast %249 : vector<1x1x32x64xf32> to vector<32x64xf32>
    %cst_153 = arith.constant dense<0.000000e+00> : vector<128x64xf32>
    %251 = tpu.matmul %232, %250, %cst_153 {dimension_numbers = #tpu.dot_dimension_numbers<[1], [0], [0], [1], [0, 0, 1, 1], [], []>} : vector<128x32xf32>, vector<32x64xf32>, vector<128x64xf32> -> vector<128x64xf32>
    %252 = arith.addf %248, %251 : vector<128x64xf32>
    %c5_154 = arith.constant 5 : index
    %c0_155 = arith.constant 0 : index
    %253 = vector.load %arg7[%c5_154, %c0_155] : memref<6x64xf32, #tpu.memory_space<vmem>>, vector<1x64xf32>
    %254 = vector.broadcast %253 : vector<1x64xf32> to vector<128x64xf32>
    %255 = arith.addf %252, %254 : vector<128x64xf32>
    %256 = vector.extract_strided_slice %255 {offsets = [0, 0], sizes = [128, 32], strides = [1, 1]} : vector<128x64xf32> to vector<128x32xf32>
    %257 = math.tanh %256 : vector<128x32xf32>
    %258 = vector.extract_strided_slice %255 {offsets = [0, 32], sizes = [128, 32], strides = [1, 1]} : vector<128x64xf32> to vector<128x32xf32>
    %259 = arith.negf %258 : vector<128x32xf32>
    %260 = math.exp %259 : vector<128x32xf32>
    %cst_156 = arith.constant 1.000000e+00 : f32
    %261 = vector.broadcast %cst_156 : f32 to vector<128x32xf32>
    %262 = arith.addf %261, %260 : vector<128x32xf32>
    %263 = arith.divf %261, %262 : vector<128x32xf32>
    %264 = arith.mulf %257, %263 : vector<128x32xf32>
    %c5_157 = arith.constant 5 : index
    %c0_158 = arith.constant 0 : index
    %c0_159 = arith.constant 0 : index
    %265 = vector.load %arg8[%c5_157, %c0_158, %c0_159] : memref<6x32x64xf32, #tpu.memory_space<vmem>>, vector<1x32x64xf32>
    %266 = vector.shape_cast %265 : vector<1x32x64xf32> to vector<32x64xf32>
    %cst_160 = arith.constant dense<0.000000e+00> : vector<128x64xf32>
    %267 = tpu.matmul %264, %266, %cst_160 {dimension_numbers = #tpu.dot_dimension_numbers<[1], [0], [0], [1], [0, 0, 1, 1], [], []>} : vector<128x32xf32>, vector<32x64xf32>, vector<128x64xf32> -> vector<128x64xf32>
    %c5_161 = arith.constant 5 : index
    %c0_162 = arith.constant 0 : index
    %268 = vector.load %arg9[%c5_161, %c0_162] : memref<6x64xf32, #tpu.memory_space<vmem>>, vector<1x64xf32>
    %269 = vector.broadcast %268 : vector<1x64xf32> to vector<128x64xf32>
    %270 = arith.addf %267, %269 : vector<128x64xf32>
    %271 = vector.shape_cast %270 : vector<128x64xf32> to vector<8x16x64xf32>
    %272 = vector.extract_strided_slice %271 {offsets = [0, 15, 0], sizes = [8, 1, 64], strides = [1, 1, 1]} : vector<8x16x64xf32> to vector<8x1x64xf32>
    %273 = vector.shape_cast %272 : vector<8x1x64xf32> to vector<8x64xf32>
    %274 = vector.extract_strided_slice %273 {offsets = [0, 32], sizes = [8, 32], strides = [1, 1]} : vector<8x64xf32> to vector<8x32xf32>
    %cst_163 = arith.constant 0.000000e+00 : f32
    %275 = vector.broadcast %cst_163 : f32 to vector<8x32xf32>
    %276 = arith.maximumf %274, %275 : vector<8x32xf32>
    %c5_164 = arith.constant 5 : index
    %c0_165 = arith.constant 0 : index
    %c0_166 = arith.constant 0 : index
    %277 = vector.load %arg10[%c5_164, %c0_165, %c0_166] : memref<6x32x100xf32, #tpu.memory_space<vmem>>, vector<1x32x100xf32>
    %278 = vector.shape_cast %277 : vector<1x32x100xf32> to vector<32x100xf32>
    %cst_167 = arith.constant dense<0.000000e+00> : vector<8x100xf32>
    %279 = tpu.matmul %276, %278, %cst_167 {dimension_numbers = #tpu.dot_dimension_numbers<[1], [0], [0], [1], [0, 0, 1, 1], [], []>} : vector<8x32xf32>, vector<32x100xf32>, vector<8x100xf32> -> vector<8x100xf32>
    %280 = arith.addf %242, %279 : vector<8x100xf32>
    %c0_168 = arith.constant 0 : index
    %c0_169 = arith.constant 0 : index
    %281 = vector.load %arg11[%c0_168, %c0_169] : memref<1x100xf32, #tpu.memory_space<vmem>>, vector<1x100xf32>
    %282 = vector.broadcast %281 : vector<1x100xf32> to vector<8x100xf32>
    %283 = arith.addf %280, %282 : vector<8x100xf32>
    %cst_170 = arith.constant 0.000000e+00 : f32
    %284 = vector.broadcast %cst_170 : f32 to vector<8x100xf32>
    %285 = arith.maximumf %283, %284 : vector<8x100xf32>
    %c0_171 = arith.constant 0 : index
    %c0_172 = arith.constant 0 : index
    %286 = vector.load %arg12[%c0_171, %c0_172] : memref<100x128xf32, #tpu.memory_space<vmem>>, vector<100x128xf32>
    %cst_173 = arith.constant dense<0.000000e+00> : vector<8x128xf32>
    %287 = tpu.matmul %285, %286, %cst_173 {dimension_numbers = #tpu.dot_dimension_numbers<[1], [0], [0], [1], [0, 0, 1, 1], [], []>} : vector<8x100xf32>, vector<100x128xf32>, vector<8x128xf32> -> vector<8x128xf32>
    %c0_174 = arith.constant 0 : index
    %c0_175 = arith.constant 0 : index
    %288 = vector.load %arg13[%c0_174, %c0_175] : memref<1x128xf32, #tpu.memory_space<vmem>>, vector<1x128xf32>
    %289 = vector.broadcast %288 : vector<1x128xf32> to vector<8x128xf32>
    %290 = arith.addf %287, %289 : vector<8x128xf32>
    %c0_176 = arith.constant 0 : index
    %c0_177 = arith.constant 0 : index
    %291 = vector.load %arg14[%c0_176, %c0_177] : memref<8x128xf32, #tpu.memory_space<vmem>>, vector<8x128xf32>
    tpu.vector_store %arg14[%c0_176, %c0_177], %290 {strides = array<i32>} : memref<8x128xf32, #tpu.memory_space<vmem>>, vector<8x128xf32>,
    return
  }
  func.func @transform_0(%arg0: i32) -> (i32, i32, i32) {
    %c0_i32 = arith.constant 0 : i32
    %c0_i32_0 = arith.constant 0 : i32
    %c0_i32_1 = arith.constant 0 : i32
    return %arg0, %c0_i32, %c0_i32_0 : i32, i32, i32
  }
  func.func @transform_1(%arg0: i32) -> (i32, i32) {
    %c0_i32 = arith.constant 0 : i32
    %c0_i32_0 = arith.constant 0 : i32
    %c0_i32_1 = arith.constant 0 : i32
    return %c0_i32, %c0_i32_0 : i32, i32
  }
  func.func @transform_2(%arg0: i32) -> (i32, i32) {
    %c0_i32 = arith.constant 0 : i32
    %c0_i32_0 = arith.constant 0 : i32
    %c0_i32_1 = arith.constant 0 : i32
    return %c0_i32, %c0_i32_0 : i32, i32
  }
  func.func @transform_3(%arg0: i32) -> (i32, i32) {
    %c0_i32 = arith.constant 0 : i32
    %c0_i32_0 = arith.constant 0 : i32
    %c0_i32_1 = arith.constant 0 : i32
    return %c0_i32, %c0_i32_0 : i32, i32
  }
  func.func @transform_4(%arg0: i32) -> (i32, i32) {
    %c0_i32 = arith.constant 0 : i32
    %c0_i32_0 = arith.constant 0 : i32
    %c0_i32_1 = arith.constant 0 : i32
    return %c0_i32, %c0_i32_0 : i32, i32
  }
  func.func @transform_5(%arg0: i32) -> (i32, i32, i32, i32) {
    %c0_i32 = arith.constant 0 : i32
    %c0_i32_0 = arith.constant 0 : i32
    %c0_i32_1 = arith.constant 0 : i32
    %c0_i32_2 = arith.constant 0 : i32
    %c0_i32_3 = arith.constant 0 : i32
    return %c0_i32, %c0_i32_0, %c0_i32_1, %c0_i32_2 : i32, i32, i32, i32
  }
  func.func @transform_6(%arg0: i32) -> (i32, i32) {
    %c0_i32 = arith.constant 0 : i32
    %c0_i32_0 = arith.constant 0 : i32
    %c0_i32_1 = arith.constant 0 : i32
    return %c0_i32, %c0_i32_0 : i32, i32
  }
  func.func @transform_7(%arg0: i32) -> (i32, i32, i32) {
    %c0_i32 = arith.constant 0 : i32
    %c0_i32_0 = arith.constant 0 : i32
    %c0_i32_1 = arith.constant 0 : i32
    %c0_i32_2 = arith.constant 0 : i32
    return %c0_i32, %c0_i32_0, %c0_i32_1 : i32, i32, i32
  }
  func.func @transform_8(%arg0: i32) -> (i32, i32) {
    %c0_i32 = arith.constant 0 : i32
    %c0_i32_0 = arith.constant 0 : i32
    %c0_i32_1 = arith.constant 0 : i32
    return %c0_i32, %c0_i32_0 : i32, i32
  }
  func.func @transform_9(%arg0: i32) -> (i32, i32, i32) {
    %c0_i32 = arith.constant 0 : i32
    %c0_i32_0 = arith.constant 0 : i32
    %c0_i32_1 = arith.constant 0 : i32
    %c0_i32_2 = arith.constant 0 : i32
    return %c0_i32, %c0_i32_0, %c0_i32_1 : i32, i32, i32
  }
  func.func @transform_10(%arg0: i32) -> (i32, i32) {
    %c0_i32 = arith.constant 0 : i32
    %c0_i32_0 = arith.constant 0 : i32
    %c0_i32_1 = arith.constant 0 : i32
    return %c0_i32, %c0_i32_0 : i32, i32
  }
  func.func @transform_11(%arg0: i32) -> (i32, i32) {
    %c0_i32 = arith.constant 0 : i32
    %c0_i32_0 = arith.constant 0 : i32
    %c0_i32_1 = arith.constant 0 : i32
    return %c0_i32, %c0_i32_0 : i32, i32
  }
  func.func @transform_12(%arg0: i32) -> (i32, i32) {
    %c0_i32 = arith.constant 0 : i32
    %c0_i32_0 = arith.constant 0 : i32
    %c0_i32_1 = arith.constant 0 : i32
    return %c0_i32, %c0_i32_0 : i32, i32
  }
  func.func @transform_13(%arg0: i32) -> (i32, i32) {
    %c0_i32 = arith.constant 0 : i32
    %c0_i32_0 = arith.constant 0 : i32
    return %arg0, %c0_i32 : i32, i32
  }
}

</mosaic_0001>

<llo_original>
// kernel: wavenet_pallas.1
$region0: #{wavenet_pallas.1}
  #allocation0 [shape = 'u32[]', space=smem, size = 0x4, offset = 0x4, fixed_abs, tag = 'smem constant byte address 0x4 - core index']
  #allocation1 [shape = 'u32[72,128]{1,0:T(1,128)}', space=vmem, size = 0x9000, scoped, tag = 'internal scratch']
  %s0 = inlined_call_operand.vmem [shape: f32[16,16,15], index: 0, kind: input, shape index: {}]
  %s1 = inlined_call_operand.vmem [shape: f32[15,32], index: 1, kind: input, shape index: {}]
  %s2 = inlined_call_operand.vmem [shape: f32[15,32], index: 2, kind: input, shape index: {}]
  %s3 = inlined_call_operand.vmem [shape: f32[15,32], index: 3, kind: input, shape index: {}]
  %s4 = inlined_call_operand.vmem [shape: f32[1,32], index: 4, kind: input, shape index: {}]
  %s5 = inlined_call_operand.vmem [shape: f32[6,2,32,64], index: 5, kind: input, shape index: {}]
  %s6 = inlined_call_operand.vmem [shape: f32[6,64], index: 6, kind: input, shape index: {}]
  %s7 = inlined_call_operand.vmem [shape: f32[6,32,64], index: 7, kind: input, shape index: {}]
  %s8 = inlined_call_operand.vmem [shape: f32[6,64], index: 8, kind: input, shape index: {}]
  %s9 = inlined_call_operand.vmem [shape: f32[6,32,100], index: 9, kind: input, shape index: {}]
  %s10 = inlined_call_operand.vmem [shape: f32[1,100], index: 10, kind: input, shape index: {}]
  %s11 = inlined_call_operand.vmem [shape: f32[100,128], index: 11, kind: input, shape index: {}]
  %s12 = inlined_call_operand.vmem [shape: f32[1,128], index: 12, kind: input, shape index: {}]
  %s13 = inlined_call_operand.vmem [shape: f32[16,128], index: 13, kind: output, shape index: {}]
  %s14 = sld [smem:[#allocation0]]
  $region85: #{wavenet_pallas.1} parent=0
    _
  %s16 = ssub.s32 1, %s14
  %s17 = scalar_select 0, %s16, %s14
  loop: start=0, step=1, limit=4
  $region2: #{wavenet_pallas.1} parent=0 // loop_pre_header
    _
  $region3: #{wavenet_pallas.1} parent=0 // loop_header
    %s19 = sphi 0, %s23
    %p20 = scmp.ge.s32.totalorder %s19, 4
    %s29 = sphi 0, %s31
    %s32 = sphi 0, %s29
    %s33 = sphi 0, %s32
    %s49 = sphi 0, %s33
    %s53 = sphi 0, %s53
    %s55 = sphi 0, %s53
    %s56 = sphi 0, %s55
    %s70 = sphi 0, %s56
    %s74 = sphi 0, %s74
    %s76 = sphi 0, %s74
    %s77 = sphi 0, %s76
    %s91 = sphi 0, %s77
    %s95 = sphi 0, %s95
    %s97 = sphi 0, %s95
    %s98 = sphi 0, %s97
    %s112 = sphi 0, %s98
    %s116 = sphi 0, %s116
    %s118 = sphi 0, %s116
    %s119 = sphi 0, %s118
    %s133 = sphi 0, %s119
    %s137 = sphi 0, %s137
    %s139 = sphi 0, %s137
    %s140 = sphi 0, %s139
    %s154 = sphi 0, %s140
    %s158 = sphi 0, %s158
    %s160 = sphi 0, %s158
    %s161 = sphi 0, %s160
    %s175 = sphi 0, %s161
    %s179 = sphi 0, %s179
    %s181 = sphi 0, %s179
    %s182 = sphi 0, %s181
    %s196 = sphi 0, %s182
    %s200 = sphi 0, %s200
    %s202 = sphi 0, %s200
    %s203 = sphi 0, %s202
    %s217 = sphi 0, %s203
    %s221 = sphi 0, %s221
    %s223 = sphi 0, %s221
    %s224 = sphi 0, %s223
    %s238 = sphi 0, %s224
    %s242 = sphi 0, %s242
    %s244 = sphi 0, %s242
    %s245 = sphi 0, %s244
    %s259 = sphi 0, %s245
    %s263 = sphi 0, %s263
    %s265 = sphi 0, %s263
    %s266 = sphi 0, %s265
    %s280 = sphi 0, %s266
    %s284 = sphi 0, %s284
    %s286 = sphi 0, %s284
    %s287 = sphi 0, %s286
    %s301 = sphi 0, %s287
    %s307 = sphi 0, %s309
    %s310 = sphi 0, %s307
    %s311 = sphi 0, %s310
    %s327 = sphi 0, %s311
  $region4: #{wavenet_pallas.1} parent=0 // loop_header_branch
    %22 = sbr.rel (%p20) target = $region8
  $region5: #{wavenet_pallas.1} parent=0 // loop_body
    %s24 = ssub.s32 %s19, 1
    %s25 = ssub.s32 %s19, 2
    %s26 = sadd.s32 %s19, 1
    %s27 = ssub.s32 %s19, %s26
    %p28 = scmp.eq.s32.totalorder %s27, 0
    %s30 = sadd.s32 %s29, 1
    %s31 = scalar_select %p28, %s29, %s30
    %p34 = pneg %p28
    %p35 = scmp.eq.s32.totalorder %s19, 1
    %p36 = por %p34, %p35
    %p37 = scmp.ne.s32.totalorder %s29, %s32
    %p38 = scmp.eq.s32.totalorder %s19, 0
    %p39 = por %p37, %p38
    %p40 = scmp.ne.s32.totalorder %s29, %s32
    %p41 = scmp.eq.s32.totalorder %s24, 1
    %p42 = por %p40, %p41
    %p43 = scmp.ne.s32.totalorder %s32, %s33
    %p44 = scmp.eq.s32.totalorder %s24, 0
    %p45 = por %p43, %p44
    %p46 = scmp.ne.s32.totalorder %s32, %s33
    %p47 = scmp.eq.s32.totalorder %s25, 1
    %p48 = por %p46, %p47
    %p50 = scmp.ne.s32.totalorder %s33, %s49
    %p51 = scmp.eq.s32.totalorder %s25, 0
    %p52 = por %p50, %p51
    %s54 = sadd.s32 %s53, 1
    %p57 = scmp.eq.s32.totalorder %s19, 1
    %p58 = scmp.ne.s32.totalorder %s53, %s55
    %p59 = scmp.eq.s32.totalorder %s19, 0
    %p60 = por %p58, %p59
    %p61 = scmp.ne.s32.totalorder %s53, %s55
    %p62 = scmp.eq.s32.totalorder %s24, 1
    %p63 = por %p61, %p62
    %p64 = scmp.ne.s32.totalorder %s55, %s56
    %p65 = scmp.eq.s32.totalorder %s24, 0
    %p66 = por %p64, %p65
    %p67 = scmp.ne.s32.totalorder %s55, %s56
    %p68 = scmp.eq.s32.totalorder %s25, 1
    %p69 = por %p67, %p68
    %p71 = scmp.ne.s32.totalorder %s56, %s70
    %p72 = scmp.eq.s32.totalorder %s25, 0
    %p73 = por %p71, %p72
    %s75 = sadd.s32 %s74, 1
    %p78 = scmp.eq.s32.totalorder %s19, 1
    %p79 = scmp.ne.s32.totalorder %s74, %s76
    %p80 = scmp.eq.s32.totalorder %s19, 0
    %p81 = por %p79, %p80
    %p82 = scmp.ne.s32.totalorder %s74, %s76
    %p83 = scmp.eq.s32.totalorder %s24, 1
    %p84 = por %p82, %p83
    %p85 = scmp.ne.s32.totalorder %s76, %s77
    %p86 = scmp.eq.s32.totalorder %s24, 0
    %p87 = por %p85, %p86
    %p88 = scmp.ne.s32.totalorder %s76, %s77
    %p89 = scmp.eq.s32.totalorder %s25, 1
    %p90 = por %p88, %p89
    %p92 = scmp.ne.s32.totalorder %s77, %s91
    %p93 = scmp.eq.s32.totalorder %s25, 0
    %p94 = por %p92, %p93
    %s96 = sadd.s32 %s95, 1
    %p99 = scmp.eq.s32.totalorder %s19, 1
    %p100 = scmp.ne.s32.totalorder %s95, %s97
    %p101 = scmp.eq.s32.totalorder %s19, 0
    %p102 = por %p100, %p101
    %p103 = scmp.ne.s32.totalorder %s95, %s97
    %p104 = scmp.eq.s32.totalorder %s24, 1
    %p105 = por %p103, %p104
    %p106 = scmp.ne.s32.totalorder %s97, %s98
    %p107 = scmp.eq.s32.totalorder %s24, 0
    %p108 = por %p106, %p107
    %p109 = scmp.ne.s32.totalorder %s97, %s98
    %p110 = scmp.eq.s32.totalorder %s25, 1
    %p111 = por %p109, %p110
    %p113 = scmp.ne.s32.totalorder %s98, %s112
    %p114 = scmp.eq.s32.totalorder %s25, 0
    %p115 = por %p113, %p114
    %s117 = sadd.s32 %s116, 1
    %p120 = scmp.eq.s32.totalorder %s19, 1
    %p121 = scmp.ne.s32.totalorder %s116, %s118
    %p122 = scmp.eq.s32.totalorder %s19, 0
    %p123 = por %p121, %p122
    %p124 = scmp.ne.s32.totalorder %s116, %s118
    %p125 = scmp.eq.s32.totalorder %s24, 1
    %p126 = por %p124, %p125
    %p127 = scmp.ne.s32.totalorder %s118, %s119
    %p128 = scmp.eq.s32.totalorder %s24, 0
    %p129 = por %p127, %p128
    %p130 = scmp.ne.s32.totalorder %s118, %s119
    %p131 = scmp.eq.s32.totalorder %s25, 1
    %p132 = por %p130, %p131
    %p134 = scmp.ne.s32.totalorder %s119, %s133
    %p135 = scmp.eq.s32.totalorder %s25, 0
    %p136 = por %p134, %p135
    %s138 = sadd.s32 %s137, 1
    %p141 = scmp.eq.s32.totalorder %s19, 1
    %p142 = scmp.ne.s32.totalorder %s137, %s139
    %p143 = scmp.eq.s32.totalorder %s19, 0
    %p144 = por %p142, %p143
    %p145 = scmp.ne.s32.totalorder %s137, %s139
    %p146 = scmp.eq.s32.totalorder %s24, 1
    %p147 = por %p145, %p146
    %p148 = scmp.ne.s32.totalorder %s139, %s140
    %p149 = scmp.eq.s32.totalorder %s24, 0
    %p150 = por %p148, %p149
    %p151 = scmp.ne.s32.totalorder %s139, %s140
    %p152 = scmp.eq.s32.totalorder %s25, 1
    %p153 = por %p151, %p152
    %p155 = scmp.ne.s32.totalorder %s140, %s154
    %p156 = scmp.eq.s32.totalorder %s25, 0
    %p157 = por %p155, %p156
    %s159 = sadd.s32 %s158, 1
    %p162 = scmp.eq.s32.totalorder %s19, 1
    %p163 = scmp.ne.s32.totalorder %s158, %s160
    %p164 = scmp.eq.s32.totalorder %s19, 0
    %p165 = por %p163, %p164
    %p166 = scmp.ne.s32.totalorder %s158, %s160
    %p167 = scmp.eq.s32.totalorder %s24, 1
    %p168 = por %p166, %p167
    %p169 = scmp.ne.s32.totalorder %s160, %s161
    %p170 = scmp.eq.s32.totalorder %s24, 0
    %p171 = por %p169, %p170
    %p172 = scmp.ne.s32.totalorder %s160, %s161
    %p173 = scmp.eq.s32.totalorder %s25, 1
    %p174 = por %p172, %p173
    %p176 = scmp.ne.s32.totalorder %s161, %s175
    %p177 = scmp.eq.s32.totalorder %s25, 0
    %p178 = por %p176, %p177
    %s180 = sadd.s32 %s179, 1
    %p183 = scmp.eq.s32.totalorder %s19, 1
    %p184 = scmp.ne.s32.totalorder %s179, %s181
    %p185 = scmp.eq.s32.totalorder %s19, 0
    %p186 = por %p184, %p185
    %p187 = scmp.ne.s32.totalorder %s179, %s181
    %p188 = scmp.eq.s32.totalorder %s24, 1
    %p189 = por %p187, %p188
    %p190 = scmp.ne.s32.totalorder %s181, %s182
    %p191 = scmp.eq.s32.totalorder %s24, 0
    %p192 = por %p190, %p191
    %p193 = scmp.ne.s32.totalorder %s181, %s182
    %p194 = scmp.eq.s32.totalorder %s25, 1
    %p195 = por %p193, %p194
    %p197 = scmp.ne.s32.totalorder %s182, %s196
    %p198 = scmp.eq.s32.totalorder %s25, 0
    %p199 = por %p197, %p198
    %s201 = sadd.s32 %s200, 1
    %p204 = scmp.eq.s32.totalorder %s19, 1
    %p205 = scmp.ne.s32.totalorder %s200, %s202
    %p206 = scmp.eq.s32.totalorder %s19, 0
    %p207 = por %p205, %p206
    %p208 = scmp.ne.s32.totalorder %s200, %s202
    %p209 = scmp.eq.s32.totalorder %s24, 1
    %p210 = por %p208, %p209
    %p211 = scmp.ne.s32.totalorder %s202, %s203
    %p212 = scmp.eq.s32.totalorder %s24, 0
    %p213 = por %p211, %p212
    %p214 = scmp.ne.s32.totalorder %s202, %s203
    %p215 = scmp.eq.s32.totalorder %s25, 1
    %p216 = por %p214, %p215
    %p218 = scmp.ne.s32.totalorder %s203, %s217
    %p219 = scmp.eq.s32.totalorder %s25, 0
    %p220 = por %p218, %p219
    %s222 = sadd.s32 %s221, 1
    %p225 = scmp.eq.s32.totalorder %s19, 1
    %p226 = scmp.ne.s32.totalorder %s221, %s223
    %p227 = scmp.eq.s32.totalorder %s19, 0
    %p228 = por %p226, %p227
    %p229 = scmp.ne.s32.totalorder %s221, %s223
    %p230 = scmp.eq.s32.totalorder %s24, 1
    %p231 = por %p229, %p230
    %p232 = scmp.ne.s32.totalorder %s223, %s224
    %p233 = scmp.eq.s32.totalorder %s24, 0
    %p234 = por %p232, %p233
    %p235 = scmp.ne.s32.totalorder %s223, %s224
    %p236 = scmp.eq.s32.totalorder %s25, 1
    %p237 = por %p235, %p236
    %p239 = scmp.ne.s32.totalorder %s224, %s238
    %p240 = scmp.eq.s32.totalorder %s25, 0
    %p241 = por %p239, %p240
    %s243 = sadd.s32 %s242, 1
    %p246 = scmp.eq.s32.totalorder %s19, 1
    %p247 = scmp.ne.s32.totalorder %s242, %s244
    %p248 = scmp.eq.s32.totalorder %s19, 0
    %p249 = por %p247, %p248
    %p250 = scmp.ne.s32.totalorder %s242, %s244
    %p251 = scmp.eq.s32.totalorder %s24, 1
    %p252 = por %p250, %p251
    %p253 = scmp.ne.s32.totalorder %s244, %s245
    %p254 = scmp.eq.s32.totalorder %s24, 0
    %p255 = por %p253, %p254
    %p256 = scmp.ne.s32.totalorder %s244, %s245
    %p257 = scmp.eq.s32.totalorder %s25, 1
    %p258 = por %p256, %p257
    %p260 = scmp.ne.s32.totalorder %s245, %s259
    %p261 = scmp.eq.s32.totalorder %s25, 0
    %p262 = por %p260, %p261
    %s264 = sadd.s32 %s263, 1
    %p267 = scmp.eq.s32.totalorder %s19, 1
    %p268 = scmp.ne.s32.totalorder %s263, %s265
    %p269 = scmp.eq.s32.totalorder %s19, 0
    %p270 = por %p268, %p269
    %p271 = scmp.ne.s32.totalorder %s263, %s265
    %p272 = scmp.eq.s32.totalorder %s24, 1
    %p273 = por %p271, %p272
    %p274 = scmp.ne.s32.totalorder %s265, %s266
    %p275 = scmp.eq.s32.totalorder %s24, 0
    %p276 = por %p274, %p275
    %p277 = scmp.ne.s32.totalorder %s265, %s266
    %p278 = scmp.eq.s32.totalorder %s25, 1
    %p279 = por %p277, %p278
    %p281 = scmp.ne.s32.totalorder %s266, %s280
    %p282 = scmp.eq.s32.totalorder %s25, 0
    %p283 = por %p281, %p282
    %s285 = sadd.s32 %s284, 1
    %p288 = scmp.eq.s32.totalorder %s19, 1
    %p289 = scmp.ne.s32.totalorder %s284, %s286
    %p290 = scmp.eq.s32.totalorder %s19, 0
    %p291 = por %p289, %p290
    %p292 = scmp.ne.s32.totalorder %s284, %s286
    %p293 = scmp.eq.s32.totalorder %s24, 1
    %p294 = por %p292, %p293
    %p295 = scmp.ne.s32.totalorder %s286, %s287
    %p296 = scmp.eq.s32.totalorder %s24, 0
    %p297 = por %p295, %p296
    %p298 = scmp.ne.s32.totalorder %s286, %s287
    %p299 = scmp.eq.s32.totalorder %s25, 1
    %p300 = por %p298, %p299
    %p302 = scmp.ne.s32.totalorder %s287, %s301
    %p303 = scmp.eq.s32.totalorder %s25, 0
    %p304 = por %p302, %p303
    %s305 = ssub.s32 %s19, %s26
    %p306 = scmp.eq.s32.totalorder %s305, 0
    %s308 = sadd.s32 %s307, 1
    %s309 = scalar_select %p306, %s307, %s308
    %p312 = pneg %p306
    %p313 = scmp.eq.s32.totalorder %s19, 1
    %p314 = por %p312, %p313
    %p315 = scmp.ne.s32.totalorder %s307, %s310
    %p316 = scmp.eq.s32.totalorder %s19, 0
    %p317 = por %p315, %p316
    %p318 = scmp.ne.s32.totalorder %s307, %s310
    %p319 = scmp.eq.s32.totalorder %s24, 1
    %p320 = por %p318, %p319
    %p321 = scmp.ne.s32.totalorder %s310, %s311
    %p322 = scmp.eq.s32.totalorder %s24, 0
    %p323 = por %p321, %p322
    %p324 = scmp.ne.s32.totalorder %s310, %s311
    %p325 = scmp.eq.s32.totalorder %s25, 1
    %p326 = por %p324, %p325
    %p328 = scmp.ne.s32.totalorder %s311, %s327
    %p329 = scmp.eq.s32.totalorder %s25, 0
    %p330 = por %p328, %p329
    %p331 = scmp.le.s32.totalorder 1, %s19
    %p332 = scmp.lt.s32.totalorder %s19, 3
    %p333 = pnand %p331, %p332
    %p334 = pneg %p333
    // Predicated region
    $region9: #{wavenet_pallas.1} parent=5 // pred_check
      _
    $region10: #{wavenet_pallas.1} parent=5 // pred_check_branch
      %336 = sbr.rel (%p333) target = $region12
    $region11: #{wavenet_pallas.1} parent=5 // pred_region
      %s337 = ssub.s32 %s19, 1
      // Predicated region
      $region13: #{wavenet_pallas.1} parent=11 // pred_check
        %p338 = pneg %p66
      $region14: #{wavenet_pallas.1} parent=11 // pred_check_branch
        %340 = sbr.rel (%p338) target = $region16
      $region15: #{wavenet_pallas.1} parent=11 // pred_region
        _
      $region16: #{wavenet_pallas.1} parent=11 // pred_fallthru
        _
      // Predicated region
      $region17: #{wavenet_pallas.1} parent=11 // pred_check
        %p341 = pneg %p87
      $region18: #{wavenet_pallas.1} parent=11 // pred_check_branch
        %343 = sbr.rel (%p341) target = $region20
      $region19: #{wavenet_pallas.1} parent=11 // pred_region
        _
      $region20: #{wavenet_pallas.1} parent=11 // pred_fallthru
        _
      // Predicated region
      $region21: #{wavenet_pallas.1} parent=11 // pred_check
        %p344 = pneg %p108
      $region22: #{wavenet_pallas.1} parent=11 // pred_check_branch
        %346 = sbr.rel (%p344) target = $region24
      $region23: #{wavenet_pallas.1} parent=11 // pred_region
        _
      $region24: #{wavenet_pallas.1} parent=11 // pred_fallthru
        _
      // Predicated region
      $region25: #{wavenet_pallas.1} parent=11 // pred_check
        %p347 = pneg %p129
      $region26: #{wavenet_pallas.1} parent=11 // pred_check_branch
        %349 = sbr.rel (%p347) target = $region28
      $region27: #{wavenet_pallas.1} parent=11 // pred_region
        _
      $region28: #{wavenet_pallas.1} parent=11 // pred_fallthru
        _
      // Predicated region
      $region29: #{wavenet_pallas.1} parent=11 // pred_check
        %p350 = pneg %p150
      $region30: #{wavenet_pallas.1} parent=11 // pred_check_branch
        %352 = sbr.rel (%p350) target = $region32
      $region31: #{wavenet_pallas.1} parent=11 // pred_region
        _
      $region32: #{wavenet_pallas.1} parent=11 // pred_fallthru
        _
      // Predicated region
      $region33: #{wavenet_pallas.1} parent=11 // pred_check
        %p353 = pneg %p171
      $region34: #{wavenet_pallas.1} parent=11 // pred_check_branch
        %355 = sbr.rel (%p353) target = $region36
      $region35: #{wavenet_pallas.1} parent=11 // pred_region
        _
      $region36: #{wavenet_pallas.1} parent=11 // pred_fallthru
        _
      // Predicated region
      $region37: #{wavenet_pallas.1} parent=11 // pred_check
        %p356 = pneg %p192
      $region38: #{wavenet_pallas.1} parent=11 // pred_check_branch
        %358 = sbr.rel (%p356) target = $region40
      $region39: #{wavenet_pallas.1} parent=11 // pred_region
        _
      $region40: #{wavenet_pallas.1} parent=11 // pred_fallthru
        _
      // Predicated region
      $region41: #{wavenet_pallas.1} parent=11 // pred_check
        %p359 = pneg %p213
      $region42: #{wavenet_pallas.1} parent=11 // pred_check_branch
        %361 = sbr.rel (%p359) target = $region44
      $region43: #{wavenet_pallas.1} parent=11 // pred_region
        _
      $region44: #{wavenet_pallas.1} parent=11 // pred_fallthru
        _
      // Predicated region
      $region45: #{wavenet_pallas.1} parent=11 // pred_check
        %p362 = pneg %p234
      $region46: #{wavenet_pallas.1} parent=11 // pred_check_branch
        %364 = sbr.rel (%p362) target = $region48
      $region47: #{wavenet_pallas.1} parent=11 // pred_region
        _
      $region48: #{wavenet_pallas.1} parent=11 // pred_fallthru
        _
      // Predicated region
      $region49: #{wavenet_pallas.1} parent=11 // pred_check
        %p365 = pneg %p255
      $region50: #{wavenet_pallas.1} parent=11 // pred_check_branch
        %367 = sbr.rel (%p365) target = $region52
      $region51: #{wavenet_pallas.1} parent=11 // pred_region
        _
      $region52: #{wavenet_pallas.1} parent=11 // pred_fallthru
        _
      // Predicated region
      $region53: #{wavenet_pallas.1} parent=11 // pred_check
        %p368 = pneg %p276
      $region54: #{wavenet_pallas.1} parent=11 // pred_check_branch
        %370 = sbr.rel (%p368) target = $region56
      $region55: #{wavenet_pallas.1} parent=11 // pred_region
        _
      $region56: #{wavenet_pallas.1} parent=11 // pred_fallthru
        _
      // Predicated region
      $region57: #{wavenet_pallas.1} parent=11 // pred_check
        %p371 = pneg %p297
      $region58: #{wavenet_pallas.1} parent=11 // pred_check_branch
        %373 = sbr.rel (%p371) target = $region60
      $region59: #{wavenet_pallas.1} parent=11 // pred_region
        _
      $region60: #{wavenet_pallas.1} parent=11 // pred_fallthru
        _
    $region12: #{wavenet_pallas.1} parent=5 // pred_fallthru
      _
    %p374 = scmp.lt.s32.totalorder %s19, 2
    // Predicated region
    $region61: #{wavenet_pallas.1} parent=5 // pred_check
      %p375 = pneg %p374
    $region62: #{wavenet_pallas.1} parent=5 // pred_check_branch
      %377 = sbr.rel (%p375) target = $region64
    $region63: #{wavenet_pallas.1} parent=5 // pred_region
      // Predicated region
      $region65: #{wavenet_pallas.1} parent=63 // pred_check
        %p378 = pneg %p39
      $region66: #{wavenet_pallas.1} parent=63 // pred_check_branch
        %380 = sbr.rel (%p378) target = $region68
      $region67: #{wavenet_pallas.1} parent=63 // pred_region
        %s381 = smul.u32 8, %s19
        %p382 = scmp.lt.s32.totalorder %s381, 15
        %s383 = scalar_select %p382, %s381, 15
        %s384 = smul.addr %s383, 2
        %s385 = smul.addr %s384, 8
        %s386 = scalar_lea.vmem %s0, %s385
        %s387 = smul.u32 8, %s19
      $region68: #{wavenet_pallas.1} parent=63 // pred_fallthru
        _
    $region64: #{wavenet_pallas.1} parent=5 // pred_fallthru
      _
    %p388 = scmp.le.s32.totalorder 1, %s19
    %p389 = scmp.lt.s32.totalorder %s19, 3
    %p390 = pnand %p388, %p389
    %p391 = pneg %p390
    // Predicated region
    $region69: #{wavenet_pallas.1} parent=5 // pred_check
      _
    $region70: #{wavenet_pallas.1} parent=5 // pred_check_branch
      %393 = sbr.rel (%p390) target = $region72
    $region71: #{wavenet_pallas.1} parent=5 // pred_region
      %s394 = ssub.s32 %s19, 1
      %s395 = smul.u32 8, %s24
      %p396 = scmp.lt.s32.totalorder %s395, 15
      %s397 = scalar_select %p396, %s395, 15
      %s398 = smul.addr %s397, 2
      %s399 = smul.addr %s398, 8
      %s400 = scalar_lea.vmem %s0, %s399
      %p401 = pneg %p45
      %p402 = pneg %p42
      %p403 = pneg %p66
      %p404 = pneg %p63
      %p405 = pneg %p87
      %p406 = pneg %p84
      %p407 = pneg %p108
      %p408 = pneg %p105
      %p409 = pneg %p129
      %p410 = pneg %p126
      %p411 = pneg %p150
      %p412 = pneg %p147
      %p413 = pneg %p171
      %p414 = pneg %p168
      %p415 = pneg %p192
      %p416 = pneg %p189
      %p417 = pneg %p213
      %p418 = pneg %p210
      %p419 = pneg %p234
      %p420 = pneg %p231
      %p421 = pneg %p255
      %p422 = pneg %p252
      %p423 = pneg %p276
      %p424 = pneg %p273
      %p425 = pneg %p297
      %p426 = pneg %p294
      %p427 = pneg %p323
      %p428 = pneg %p320
      %p429 = scmp.lt.s32.totalorder %s24, 1
      %s430 = scalar_select %p429, %s24, 1
      %s431 = smul.addr %s430, 8
      %s432 = scalar_lea.vmem %s13, %s431
      %s433 = smul.u32 8, %s24
      %p434 = scmp.lt.s32.totalorder %s433, 15
      %s435 = scalar_select %p434, %s433, 15
      %s436 = smul.addr %s435, 2
      %s437 = smul.addr %s436, 8
      %s438 = scalar_lea.vmem %s0, %s437
      %s439 = smul.u32 8, %s24
      %p440 = scmp.lt.s32.totalorder %s24, 1
      %s441 = scalar_select %p440, %s24, 1
      %s442 = smul.addr %s441, 8
      %s443 = scalar_lea.vmem %s13, %s442
      %v444 = vld [vmem:[%s438] sm:$0xff]
      %v445 = vld [vmem:[%s438 + $0x8] sm:$0xff]
      %v446 = vld [vmem:[%s438 + $0x10] sm:$0xff]
      %v447 = vld [vmem:[%s438 + $0x18] sm:$0xff]
      %v448 = vld [vmem:[%s438 + $0x20] sm:$0xff]
      %v449 = vld [vmem:[%s438 + $0x28] sm:$0xff]
      %v450 = vld [vmem:[%s438 + $0x30] sm:$0xff]
      %v451 = vld [vmem:[%s438 + $0x38] sm:$0xff]
      %v452 = vld [vmem:[%s438 + $0x40] sm:$0xff]
      %v453 = vld [vmem:[%s438 + $0x48] sm:$0xff]
      %v454 = vld [vmem:[%s438 + $0x50] sm:$0xff]
      %v455 = vld [vmem:[%s438 + $0x58] sm:$0xff]
      %v456 = vld [vmem:[%s438 + $0x60] sm:$0xff]
      %v457 = vld [vmem:[%s438 + $0x68] sm:$0xff]
      %v458 = vld [vmem:[%s438 + $0x70] sm:$0xff]
      %v459 = vld [vmem:[%s438 + $0x78] sm:$0xff]
      %vm460 = vcmask 121856
      %v461 = vsel %vm460, %v444, 0.0
      %v462 = vsel %vm460, %v445, 0.0
      %v463 = vadd.f32 %v461, %v462
      %v464 = vrot.slane %v463, 4
      %v465 = vadd.f32 %v463, %v464
      %v466 = vrot.slane %v465, 2
      %v467 = vadd.f32 %v465, %v466
      %v468 = vrot.slane %v467, 1
      %v469 = vadd.f32 %v467, %v468
      %v470 = vsel %vm460, %v446, 0.0
      %v471 = vsel %vm460, %v447, 0.0
      %v472 = vadd.f32 %v470, %v471
      %v473 = vrot.slane %v472, 4
      %v474 = vadd.f32 %v472, %v473
      %v475 = vrot.slane %v474, 2
      %v476 = vadd.f32 %v474, %v475
      %v477 = vrot.slane %v476, 1
      %v478 = vadd.f32 %v476, %v477
      %v479 = vsel %vm460, %v448, 0.0
      %v480 = vsel %vm460, %v449, 0.0
      %v481 = vadd.f32 %v479, %v480
      %v482 = vrot.slane %v481, 4
      %v483 = vadd.f32 %v481, %v482
      %v484 = vrot.slane %v483, 2
      %v485 = vadd.f32 %v483, %v484
      %v486 = vrot.slane %v485, 1
      %v487 = vadd.f32 %v485, %v486
      %v488 = vsel %vm460, %v450, 0.0
      %v489 = vsel %vm460, %v451, 0.0
      %v490 = vadd.f32 %v488, %v489
      %v491 = vrot.slane %v490, 4
      %v492 = vadd.f32 %v490, %v491
      %v493 = vrot.slane %v492, 2
      %v494 = vadd.f32 %v492, %v493
      %v495 = vrot.slane %v494, 1
      %v496 = vadd.f32 %v494, %v495
      %v497 = vsel %vm460, %v452, 0.0
      %v498 = vsel %vm460, %v453, 0.0
      %v499 = vadd.f32 %v497, %v498
      %v500 = vrot.slane %v499, 4
      %v501 = vadd.f32 %v499, %v500
      %v502 = vrot.slane %v501, 2
      %v503 = vadd.f32 %v501, %v502
      %v504 = vrot.slane %v503, 1
      %v505 = vadd.f32 %v503, %v504
      %v506 = vsel %vm460, %v454, 0.0
      %v507 = vsel %vm460, %v455, 0.0
      %v508 = vadd.f32 %v506, %v507
      %v509 = vrot.slane %v508, 4
      %v510 = vadd.f32 %v508, %v509
      %v511 = vrot.slane %v510, 2
      %v512 = vadd.f32 %v510, %v511
      %v513 = vrot.slane %v512, 1
      %v514 = vadd.f32 %v512, %v513
      %v515 = vsel %vm460, %v456, 0.0
      %v516 = vsel %vm460, %v457, 0.0
      %v517 = vadd.f32 %v515, %v516
      %v518 = vrot.slane %v517, 4
      %v519 = vadd.f32 %v517, %v518
      %v520 = vrot.slane %v519, 2
      %v521 = vadd.f32 %v519, %v520
      %v522 = vrot.slane %v521, 1
      %v523 = vadd.f32 %v521, %v522
      %v524 = vsel %vm460, %v458, 0.0
      %v525 = vsel %vm460, %v459, 0.0
      %v526 = vadd.f32 %v524, %v525
      %v527 = vrot.slane %v526, 4
      %v528 = vadd.f32 %v526, %v527
      %v529 = vrot.slane %v528, 2
      %v530 = vadd.f32 %v528, %v529
      %v531 = vrot.slane %v530, 1
      %v532 = vadd.f32 %v530, %v531
      %v533 = vrcp.pop 16.0
      %v534 = vmul.f32 16.0, %v533
      %v535 = vsub.f32 1.0, %v534
      %v536 = vmul.f32 %v533, %v535
      %v537 = vadd.f32 %v533, %v536
      %vm538 = vweird.f32 %v533
      %v539 = vsel %vm538, %v533, %v537
      %v540 = vmul.f32 %v469, %v539
      %v541 = vmul.f32 %v478, %v539
      %v542 = vmul.f32 %v487, %v539
      %v543 = vmul.f32 %v496, %v539
      %v544 = vmul.f32 %v505, %v539
      %v545 = vmul.f32 %v514, %v539
      %v546 = vmul.f32 %v523, %v539
      %v547 = vmul.f32 %v532, %v539
      %v548 = vsub.f32 %v444, %v540
      %v549 = vsub.f32 %v445, %v540
      %v550 = vsub.f32 %v446, %v541
      %v551 = vsub.f32 %v447, %v541
      %v552 = vsub.f32 %v448, %v542
      %v553 = vsub.f32 %v449, %v542
      %v554 = vsub.f32 %v450, %v543
      %v555 = vsub.f32 %v451, %v543
      %v556 = vsub.f32 %v452, %v544
      %v557 = vsub.f32 %v453, %v544
      %v558 = vsub.f32 %v454, %v545
      %v559 = vsub.f32 %v455, %v545
      %v560 = vsub.f32 %v456, %v546
      %v561 = vsub.f32 %v457, %v546
      %v562 = vsub.f32 %v458, %v547
      %v563 = vsub.f32 %v459, %v547
      %v564 = vmul.f32 %v548, %v548
      %v565 = vmul.f32 %v549, %v549
      %v566 = vmul.f32 %v550, %v550
      %v567 = vmul.f32 %v551, %v551
      %v568 = vmul.f32 %v552, %v552
      %v569 = vmul.f32 %v553, %v553
      %v570 = vmul.f32 %v554, %v554
      %v571 = vmul.f32 %v555, %v555
      %v572 = vmul.f32 %v556, %v556
      %v573 = vmul.f32 %v557, %v557
      %v574 = vmul.f32 %v558, %v558
      %v575 = vmul.f32 %v559, %v559
      %v576 = vmul.f32 %v560, %v560
      %v577 = vmul.f32 %v561, %v561
      %v578 = vmul.f32 %v562, %v562
      %v579 = vmul.f32 %v563, %v563
      %v580 = vsel %vm460, %v564, 0.0
      %v581 = vsel %vm460, %v565, 0.0
      %v582 = vadd.f32 %v580, %v581
      %v583 = vrot.slane %v582, 4
      %v584 = vadd.f32 %v582, %v583
      %v585 = vrot.slane %v584, 2
      %v586 = vadd.f32 %v584, %v585
      %v587 = vrot.slane %v586, 1
      %v588 = vadd.f32 %v586, %v587
      %v589 = vsel %vm460, %v566, 0.0
      %v590 = vsel %vm460, %v567, 0.0
      %v591 = vadd.f32 %v589, %v590
      %v592 = vrot.slane %v591, 4
      %v593 = vadd.f32 %v591, %v592
      %v594 = vrot.slane %v593, 2
      %v595 = vadd.f32 %v593, %v594
      %v596 = vrot.slane %v595, 1
      %v597 = vadd.f32 %v595, %v596
      %v598 = vsel %vm460, %v568, 0.0
      %v599 = vsel %vm460, %v569, 0.0
      %v600 = vadd.f32 %v598, %v599
      %v601 = vrot.slane %v600, 4
      %v602 = vadd.f32 %v600, %v601
      %v603 = vrot.slane %v602, 2
      %v604 = vadd.f32 %v602, %v603
      %v605 = vrot.slane %v604, 1
      %v606 = vadd.f32 %v604, %v605
      %v607 = vsel %vm460, %v570, 0.0
      %v608 = vsel %vm460, %v571, 0.0
      %v609 = vadd.f32 %v607, %v608
      %v610 = vrot.slane %v609, 4
      %v611 = vadd.f32 %v609, %v610
      %v612 = vrot.slane %v611, 2
      %v613 = vadd.f32 %v611, %v612
      %v614 = vrot.slane %v613, 1
      %v615 = vadd.f32 %v613, %v614
      %v616 = vsel %vm460, %v572, 0.0
      %v617 = vsel %vm460, %v573, 0.0
      %v618 = vadd.f32 %v616, %v617
      %v619 = vrot.slane %v618, 4
      %v620 = vadd.f32 %v618, %v619
      %v621 = vrot.slane %v620, 2
      %v622 = vadd.f32 %v620, %v621
      %v623 = vrot.slane %v622, 1
      %v624 = vadd.f32 %v622, %v623
      %v625 = vsel %vm460, %v574, 0.0
      %v626 = vsel %vm460, %v575, 0.0
      %v627 = vadd.f32 %v625, %v626
      %v628 = vrot.slane %v627, 4
      %v629 = vadd.f32 %v627, %v628
      %v630 = vrot.slane %v629, 2
      %v631 = vadd.f32 %v629, %v630
      %v632 = vrot.slane %v631, 1
      %v633 = vadd.f32 %v631, %v632
      %v634 = vsel %vm460, %v576, 0.0
      %v635 = vsel %vm460, %v577, 0.0
      %v636 = vadd.f32 %v634, %v635
      %v637 = vrot.slane %v636, 4
      %v638 = vadd.f32 %v636, %v637
      %v639 = vrot.slane %v638, 2
      %v640 = vadd.f32 %v638, %v639
      %v641 = vrot.slane %v640, 1
      %v642 = vadd.f32 %v640, %v641
      %v643 = vsel %vm460, %v578, 0.0
      %v644 = vsel %vm460, %v579, 0.0
      %v645 = vadd.f32 %v643, %v644
      %v646 = vrot.slane %v645, 4
      %v647 = vadd.f32 %v645, %v646
      %v648 = vrot.slane %v647, 2
      %v649 = vadd.f32 %v647, %v648
      %v650 = vrot.slane %v649, 1
      %v651 = vadd.f32 %v649, %v650
      %v652 = vmul.f32 %v588, 0.06666667
      %v653 = vmul.f32 %v597, 0.06666667
      %v654 = vmul.f32 %v606, 0.06666667
      %v655 = vmul.f32 %v615, 0.06666667
      %v656 = vmul.f32 %v624, 0.06666667
      %v657 = vmul.f32 %v633, 0.06666667
      %v658 = vmul.f32 %v642, 0.06666667
      %v659 = vmul.f32 %v651, 0.06666667
      %v660 = vrsqrt.pop %v652
      %v661 = vmul.f32 %v660, %v652
      %v662 = vmul.f32 %v661, %v660
      %v663 = vmul.f32 0.5, %v662
      %v664 = vsub.f32 1.5, %v663
      %v665 = vmul.f32 %v660, %v664
      %v666 = vmul.f32 %v652, %v665
      %vm667 = vcmp.eq.f32.partialorder %v652, inf
      %v668 = vsel %vm667, %v652, %v666
      %vm669 = vcmp.eq.f32.partialorder %v652, 0.0
      %v670 = vand.u32 %v652, 2147483648
      %v671 = vsel %vm669, %v670, %v668
      %v672 = vrsqrt.pop %v653
      %v673 = vmul.f32 %v672, %v653
      %v674 = vmul.f32 %v673, %v672
      %v675 = vmul.f32 0.5, %v674
      %v676 = vsub.f32 1.5, %v675
      %v677 = vmul.f32 %v672, %v676
      %v678 = vmul.f32 %v653, %v677
      %vm679 = vcmp.eq.f32.partialorder %v653, inf
      %v680 = vsel %vm679, %v653, %v678
      %vm681 = vcmp.eq.f32.partialorder %v653, 0.0
      %v682 = vand.u32 %v653, 2147483648
      %v683 = vsel %vm681, %v682, %v680
      %v684 = vrsqrt.pop %v654
      %v685 = vmul.f32 %v684, %v654
      %v686 = vmul.f32 %v685, %v684
      %v687 = vmul.f32 0.5, %v686
      %v688 = vsub.f32 1.5, %v687
      %v689 = vmul.f32 %v684, %v688
      %v690 = vmul.f32 %v654, %v689
      %vm691 = vcmp.eq.f32.partialorder %v654, inf
      %v692 = vsel %vm691, %v654, %v690
      %vm693 = vcmp.eq.f32.partialorder %v654, 0.0
      %v694 = vand.u32 %v654, 2147483648
      %v695 = vsel %vm693, %v694, %v692
      %v696 = vrsqrt.pop %v655
      %v697 = vmul.f32 %v696, %v655
      %v698 = vmul.f32 %v697, %v696
      %v699 = vmul.f32 0.5, %v698
      %v700 = vsub.f32 1.5, %v699
      %v701 = vmul.f32 %v696, %v700
      %v702 = vmul.f32 %v655, %v701
      %vm703 = vcmp.eq.f32.partialorder %v655, inf
      %v704 = vsel %vm703, %v655, %v702
      %vm705 = vcmp.eq.f32.partialorder %v655, 0.0
      %v706 = vand.u32 %v655, 2147483648
      %v707 = vsel %vm705, %v706, %v704
      %v708 = vrsqrt.pop %v656
      %v709 = vmul.f32 %v708, %v656
      %v710 = vmul.f32 %v709, %v708
      %v711 = vmul.f32 0.5, %v710
      %v712 = vsub.f32 1.5, %v711
      %v713 = vmul.f32 %v708, %v712
      %v714 = vmul.f32 %v656, %v713
      %vm715 = vcmp.eq.f32.partialorder %v656, inf
      %v716 = vsel %vm715, %v656, %v714
      %vm717 = vcmp.eq.f32.partialorder %v656, 0.0
      %v718 = vand.u32 %v656, 2147483648
      %v719 = vsel %vm717, %v718, %v716
      %v720 = vrsqrt.pop %v657
      %v721 = vmul.f32 %v720, %v657
      %v722 = vmul.f32 %v721, %v720
      %v723 = vmul.f32 0.5, %v722
      %v724 = vsub.f32 1.5, %v723
      %v725 = vmul.f32 %v720, %v724
      %v726 = vmul.f32 %v657, %v725
      %vm727 = vcmp.eq.f32.partialorder %v657, inf
      %v728 = vsel %vm727, %v657, %v726
      %vm729 = vcmp.eq.f32.partialorder %v657, 0.0
      %v730 = vand.u32 %v657, 2147483648
      %v731 = vsel %vm729, %v730, %v728
      %v732 = vrsqrt.pop %v658
      %v733 = vmul.f32 %v732, %v658
      %v734 = vmul.f32 %v733, %v732
      %v735 = vmul.f32 0.5, %v734
      %v736 = vsub.f32 1.5, %v735
      %v737 = vmul.f32 %v732, %v736
      %v738 = vmul.f32 %v658, %v737
      %vm739 = vcmp.eq.f32.partialorder %v658, inf
      %v740 = vsel %vm739, %v658, %v738
      %vm741 = vcmp.eq.f32.partialorder %v658, 0.0
      %v742 = vand.u32 %v658, 2147483648
      %v743 = vsel %vm741, %v742, %v740
      %v744 = vrsqrt.pop %v659
      %v745 = vmul.f32 %v744, %v659
      %v746 = vmul.f32 %v745, %v744
      %v747 = vmul.f32 0.5, %v746
      %v748 = vsub.f32 1.5, %v747
      %v749 = vmul.f32 %v744, %v748
      %v750 = vmul.f32 %v659, %v749
      %vm751 = vcmp.eq.f32.partialorder %v659, inf
      %v752 = vsel %vm751, %v659, %v750
      %vm753 = vcmp.eq.f32.partialorder %v659, 0.0
      %v754 = vand.u32 %v659, 2147483648
      %v755 = vsel %vm753, %v754, %v752
      %v756 = vadd.f32 %v671, 1e-08
      %v757 = vadd.f32 %v683, 1e-08
      %v758 = vadd.f32 %v695, 1e-08
      %v759 = vadd.f32 %v707, 1e-08
      %v760 = vadd.f32 %v719, 1e-08
      %v761 = vadd.f32 %v731, 1e-08
      %v762 = vadd.f32 %v743, 1e-08
      %v763 = vadd.f32 %v755, 1e-08
      %v764 = vrcp.pop %v756
      %v765 = vmul.f32 %v756, %v764
      %v766 = vsub.f32 1.0, %v765
      %v767 = vmul.f32 %v764, %v766
      %v768 = vadd.f32 %v764, %v767
      %vm769 = vweird.f32 %v756
      %vm770 = vweird.f32 %v764
      %vm771 = vmor %vm769, %vm770
      %v772 = vsel %vm771, %v764, %v768
      %v773 = vand.u32 2147483647, %v756
      %vm774 = vcmp.eq.f32.partialorder %v773, 8.507059e+37
      %v775 = vand.u32 %v756, 2147483648
      %v776 = vor.u32 1.1754944e-38, %v775
      %v777 = vsel %vm774, %v776, %v772
      %v778 = vrcp.pop %v757
      %v779 = vmul.f32 %v757, %v778
      %v780 = vsub.f32 1.0, %v779
      %v781 = vmul.f32 %v778, %v780
      %v782 = vadd.f32 %v778, %v781
      %vm783 = vweird.f32 %v757
      %vm784 = vweird.f32 %v778
      %vm785 = vmor %vm783, %vm784
      %v786 = vsel %vm785, %v778, %v782
      %v787 = vand.u32 2147483647, %v757
      %vm788 = vcmp.eq.f32.partialorder %v787, 8.507059e+37
      %v789 = vand.u32 %v757, 2147483648
      %v790 = vor.u32 1.1754944e-38, %v789
      %v791 = vsel %vm788, %v790, %v786
      %v792 = vrcp.pop %v758
      %v793 = vmul.f32 %v758, %v792
      %v794 = vsub.f32 1.0, %v793
      %v795 = vmul.f32 %v792, %v794
      %v796 = vadd.f32 %v792, %v795
      %vm797 = vweird.f32 %v758
      %vm798 = vweird.f32 %v792
      %vm799 = vmor %vm797, %vm798
      %v800 = vsel %vm799, %v792, %v796
      %v801 = vand.u32 2147483647, %v758
      %vm802 = vcmp.eq.f32.partialorder %v801, 8.507059e+37
      %v803 = vand.u32 %v758, 2147483648
      %v804 = vor.u32 1.1754944e-38, %v803
      %v805 = vsel %vm802, %v804, %v800
      %v806 = vrcp.pop %v759
      %v807 = vmul.f32 %v759, %v806
      %v808 = vsub.f32 1.0, %v807
      %v809 = vmul.f32 %v806, %v808
      %v810 = vadd.f32 %v806, %v809
      %vm811 = vweird.f32 %v759
      %vm812 = vweird.f32 %v806
      %vm813 = vmor %vm811, %vm812
      %v814 = vsel %vm813, %v806, %v810
      %v815 = vand.u32 2147483647, %v759
      %vm816 = vcmp.eq.f32.partialorder %v815, 8.507059e+37
      %v817 = vand.u32 %v759, 2147483648
      %v818 = vor.u32 1.1754944e-38, %v817
      %v819 = vsel %vm816, %v818, %v814
      %v820 = vrcp.pop %v760
      %v821 = vmul.f32 %v760, %v820
      %v822 = vsub.f32 1.0, %v821
      %v823 = vmul.f32 %v820, %v822
      %v824 = vadd.f32 %v820, %v823
      %vm825 = vweird.f32 %v760
      %vm826 = vweird.f32 %v820
      %vm827 = vmor %vm825, %vm826
      %v828 = vsel %vm827, %v820, %v824
      %v829 = vand.u32 2147483647, %v760
      %vm830 = vcmp.eq.f32.partialorder %v829, 8.507059e+37
      %v831 = vand.u32 %v760, 2147483648
      %v832 = vor.u32 1.1754944e-38, %v831
      %v833 = vsel %vm830, %v832, %v828
      %v834 = vrcp.pop %v761
      %v835 = vmul.f32 %v761, %v834
      %v836 = vsub.f32 1.0, %v835
      %v837 = vmul.f32 %v834, %v836
      %v838 = vadd.f32 %v834, %v837
      %vm839 = vweird.f32 %v761
      %vm840 = vweird.f32 %v834
      %vm841 = vmor %vm839, %vm840
      %v842 = vsel %vm841, %v834, %v838
      %v843 = vand.u32 2147483647, %v761
      %vm844 = vcmp.eq.f32.partialorder %v843, 8.507059e+37
      %v845 = vand.u32 %v761, 2147483648
      %v846 = vor.u32 1.1754944e-38, %v845
      %v847 = vsel %vm844, %v846, %v842
      %v848 = vrcp.pop %v762
      %v849 = vmul.f32 %v762, %v848
      %v850 = vsub.f32 1.0, %v849
      %v851 = vmul.f32 %v848, %v850
      %v852 = vadd.f32 %v848, %v851
      %vm853 = vweird.f32 %v762
      %vm854 = vweird.f32 %v848
      %vm855 = vmor %vm853, %vm854
      %v856 = vsel %vm855, %v848, %v852
      %v857 = vand.u32 2147483647, %v762
      %vm858 = vcmp.eq.f32.partialorder %v857, 8.507059e+37
      %v859 = vand.u32 %v762, 2147483648
      %v860 = vor.u32 1.1754944e-38, %v859
      %v861 = vsel %vm858, %v860, %v856
      %v862 = vrcp.pop %v763
      %v863 = vmul.f32 %v763, %v862
      %v864 = vsub.f32 1.0, %v863
      %v865 = vmul.f32 %v862, %v864
      %v866 = vadd.f32 %v862, %v865
      %vm867 = vweird.f32 %v763
      %vm868 = vweird.f32 %v862
      %vm869 = vmor %vm867, %vm868
      %v870 = vsel %vm869, %v862, %v866
      %v871 = vand.u32 2147483647, %v763
      %vm872 = vcmp.eq.f32.partialorder %v871, 8.507059e+37
      %v873 = vand.u32 %v763, 2147483648
      %v874 = vor.u32 1.1754944e-38, %v873
      %v875 = vsel %vm872, %v874, %v870
      %v876 = vmul.f32 %v548, %v777
      %v877 = vmul.f32 %v549, %v777
      %v878 = vmul.f32 %v550, %v791
      %v879 = vmul.f32 %v551, %v791
      %v880 = vmul.f32 %v552, %v805
      %v881 = vmul.f32 %v553, %v805
      %v882 = vmul.f32 %v554, %v819
      %v883 = vmul.f32 %v555, %v819
      %v884 = vmul.f32 %v556, %v833
      %v885 = vmul.f32 %v557, %v833
      %v886 = vmul.f32 %v558, %v847
      %v887 = vmul.f32 %v559, %v847
      %v888 = vmul.f32 %v560, %v861
      %v889 = vmul.f32 %v561, %v861
      %v890 = vmul.f32 %v562, %v875
      %v891 = vmul.f32 %v563, %v875
      %v892 = vld [vmem:[%s2] sm:$0xff]
      %v893 = vld [vmem:[%s2 + $0x8] sm:$0x7f]
      %v894 = vld [vmem:[%s3] sm:$0xff]
      %v895 = vld [vmem:[%s3 + $0x8] sm:$0x7f]
      %vm904 = vcmask 1041409
      %v905 = vsel %vm904, %v757, %v756
      %vm906 = vcmask 1042434
      %v907 = vsel %vm906, %v758, %v905
      %vm908 = vcmask 1043459
      %v909 = vsel %vm908, %v759, %v907
      %vm910 = vcmask 1044484
      %v911 = vsel %vm910, %v760, %v909
      %vm912 = vcmask 1045509
      %v913 = vsel %vm912, %v761, %v911
      %vm914 = vcmask 1046534
      %v915 = vsel %vm914, %v762, %v913
      %vm916 = vcmask 1047559
      %v917 = vsel %vm916, %v763, %v915
      %v918 = vsel %vm460, %v917, 0
      %vm920 = vcmask 1046528
      %v922 = vsel %vm920, %v895, 0
      %924 = vmatpush.msra.mxu0 0.0
      %925 = vmatpush.msra.mxu0 0.0
      %926 = vmatpush.msra.mxu0 0.0
      %927 = vmatpush.msra.mxu0 0.0
      %928 = vmatpush.msra.mxu0 0.0
      %929 = vmatpush.msra.mxu0 0.0
      %930 = vmatpush.msra.mxu0 0.0
      %931 = vmatpush.msra.mxu0 0.0
      %932 = vmatpush.msra.mxu0 0.0
      %933 = vmatpush.msra.mxu0 0.0
      %934 = vmatpush.msra.mxu0 0.0
      %935 = vmatpush.msra.mxu0 0.0
      %936 = vmatpush.msra.mxu0 0.0
      %937 = vmatpush.msra.mxu0 0.0
      %938 = vmatpush.msra.mxu0 %v922
      %939 = vmatpush.msra.mxu0 %v894
      %940 = vmatmul.f32.gmra.mxu0 %v918
      %v941 = vpop.f32.mrf.mxu0
      %v942 = vadd.f32 0.0, %v941
      %943 = vdwg.mxu0
      %v952 = vsel %vm904, %v541, %v540
      %v953 = vsel %vm906, %v542, %v952
      %v954 = vsel %vm908, %v543, %v953
      %v955 = vsel %vm910, %v544, %v954
      %v956 = vsel %vm912, %v545, %v955
      %v957 = vsel %vm914, %v546, %v956
      %v958 = vsel %vm916, %v547, %v957
      %v959 = vsel %vm460, %v958, 0
      %v962 = vsel %vm920, %v893, 0
      %964 = vmatpush.msra.mxu0 0.0
      %965 = vmatpush.msra.mxu0 0.0
      %966 = vmatpush.msra.mxu0 0.0
      %967 = vmatpush.msra.mxu0 0.0
      %968 = vmatpush.msra.mxu0 0.0
      %969 = vmatpush.msra.mxu0 0.0
      %970 = vmatpush.msra.mxu0 0.0
      %971 = vmatpush.msra.mxu0 0.0
      %972 = vmatpush.msra.mxu0 0.0
      %973 = vmatpush.msra.mxu0 0.0
      %974 = vmatpush.msra.mxu0 0.0
      %975 = vmatpush.msra.mxu0 0.0
      %976 = vmatpush.msra.mxu0 0.0
      %977 = vmatpush.msra.mxu0 0.0
      %978 = vmatpush.msra.mxu0 %v962
      %979 = vmatpush.msra.mxu0 %v892
      %980 = vmatmul.f32.gmra.mxu0 %v959
      %v981 = vpop.f32.mrf.mxu0
      %v982 = vadd.f32 %v942, %v981
      %983 = vdwg.mxu0
      %v984 = vld [vmem:[%s4] sm:$0x1]
      %v986 = vperm.slane %v984, 0
      %v988 = vadd.f32 %v982, %v986
      %v990 = vrot.slane %v988, 1
      %v991 = vrot.slane %v988, 2
      %v992 = vrot.slane %v988, 3
      %v993 = vrot.slane %v988, 4
      %v994 = vrot.slane %v988, 5
      %v995 = vrot.slane %v988, 6
      %v996 = vrot.slane %v988, 7
      %v997 = vperm.slane %v988, 0
      %v998 = vperm.slane %v990, 0
      %v999 = vperm.slane %v991, 0
      %v1000 = vperm.slane %v992, 0
      %v1001 = vperm.slane %v993, 0
      %v1002 = vperm.slane %v994, 0
      %v1003 = vperm.slane %v995, 0
      %v1004 = vperm.slane %v996, 0
      %v1013 = vld [vmem:[%s1] sm:$0xff]
      %v1014 = vld [vmem:[%s1 + $0x8] sm:$0x7f]
      %v1016 = vsel %vm460, %v876, 0
      %v1019 = vsel %vm460, %v877, 0
      %v1022 = vsel %vm460, %v878, 0
      %v1025 = vsel %vm460, %v879, 0
      %v1028 = vsel %vm460, %v880, 0
      %v1031 = vsel %vm460, %v881, 0
      %v1034 = vsel %vm460, %v882, 0
      %v1037 = vsel %vm460, %v883, 0
      %v1040 = vsel %vm460, %v884, 0
      %v1043 = vsel %vm460, %v885, 0
      %v1046 = vsel %vm460, %v886, 0
      %v1049 = vsel %vm460, %v887, 0
      %v1052 = vsel %vm460, %v888, 0
      %v1055 = vsel %vm460, %v889, 0
      %v1058 = vsel %vm460, %v890, 0
      %v1061 = vsel %vm460, %v891, 0
      %v1064 = vsel %vm920, %v1014, 0
      %1066 = vmatpush.msra.mxu0 0.0
      %1067 = vmatpush.msra.mxu0 0.0
      %1068 = vmatpush.msra.mxu0 0.0
      %1069 = vmatpush.msra.mxu0 0.0
      %1070 = vmatpush.msra.mxu0 0.0
      %1071 = vmatpush.msra.mxu0 0.0
      %1072 = vmatpush.msra.mxu0 0.0
      %1073 = vmatpush.msra.mxu0 0.0
      %1074 = vmatpush.msra.mxu0 0.0
      %1075 = vmatpush.msra.mxu0 0.0
      %1076 = vmatpush.msra.mxu0 0.0
      %1077 = vmatpush.msra.mxu0 0.0
      %1078 = vmatpush.msra.mxu0 0.0
      %1079 = vmatpush.msra.mxu0 0.0
      %1080 = vmatpush.msra.mxu0 %v1064
      %1081 = vmatpush.msra.mxu0 %v1013
      %1082 = vmatmul.f32.gmra.mxu0 %v1016
      %v1083 = vpop.f32.mrf.mxu0
      %v1084 = vadd.f32 %v997, %v1083
      %1085 = vmatmul.f32.gmra.mxu0 %v1019
      %v1086 = vpop.f32.mrf.mxu0
      %v1087 = vadd.f32 %v997, %v1086
      %1088 = vmatmul.f32.gmra.mxu0 %v1022
      %v1089 = vpop.f32.mrf.mxu0
      %v1090 = vadd.f32 %v998, %v1089
      %1091 = vmatmul.f32.gmra.mxu0 %v1025
      %v1092 = vpop.f32.mrf.mxu0
      %v1093 = vadd.f32 %v998, %v1092
      %1094 = vmatmul.f32.gmra.mxu0 %v1028
      %v1095 = vpop.f32.mrf.mxu0
      %v1096 = vadd.f32 %v999, %v1095
      %1097 = vmatmul.f32.gmra.mxu0 %v1031
      %v1098 = vpop.f32.mrf.mxu0
      %v1099 = vadd.f32 %v999, %v1098
      %1100 = vmatmul.f32.gmra.mxu0 %v1034
      %v1101 = vpop.f32.mrf.mxu0
      %v1102 = vadd.f32 %v1000, %v1101
      %1103 = vmatmul.f32.gmra.mxu0 %v1037
      %v1104 = vpop.f32.mrf.mxu0
      %v1105 = vadd.f32 %v1000, %v1104
      %1106 = vmatmul.f32.gmra.mxu0 %v1040
      %v1107 = vpop.f32.mrf.mxu0
      %v1108 = vadd.f32 %v1001, %v1107
      %1109 = vmatmul.f32.gmra.mxu0 %v1043
      %v1110 = vpop.f32.mrf.mxu0
      %v1111 = vadd.f32 %v1001, %v1110
      %1112 = vmatmul.f32.gmra.mxu0 %v1046
      %v1113 = vpop.f32.mrf.mxu0
      %v1114 = vadd.f32 %v1002, %v1113
      %1115 = vmatmul.f32.gmra.mxu0 %v1049
      %v1116 = vpop.f32.mrf.mxu0
      %v1117 = vadd.f32 %v1002, %v1116
      %1118 = vmatmul.f32.gmra.mxu0 %v1052
      %v1119 = vpop.f32.mrf.mxu0
      %v1120 = vadd.f32 %v1003, %v1119
      %1121 = vmatmul.f32.gmra.mxu0 %v1055
      %v1122 = vpop.f32.mrf.mxu0
      %v1123 = vadd.f32 %v1003, %v1122
      %1124 = vmatmul.f32.gmra.mxu0 %v1058
      %v1125 = vpop.f32.mrf.mxu0
      %v1126 = vadd.f32 %v1004, %v1125
      %1127 = vmatmul.f32.gmra.mxu0 %v1061
      %v1128 = vpop.f32.mrf.mxu0
      %v1129 = vadd.f32 %v1004, %v1128
      %1130 = vdwg.mxu0
      %v1131 = vlaneseq
      %v1132 = vshrl.u32 %v1131, 7
      %v1133 = vadd.s32 %v1132, 8
      %vm1134 = vcmp.ge.s32.totalorder %v1132, 1
      %vm1135 = vcmp.ge.s32.totalorder %v1133, 1
      %vm1136 = vcmp.ge.s32.totalorder %v1132, 2
      %vm1137 = vcmp.ge.s32.totalorder %v1133, 2
      %vm1138 = vcmp.ge.s32.totalorder %v1132, 4
      %vm1139 = vcmp.ge.s32.totalorder %v1133, 4
      %v1140 = vrot.slane %v1084, 7
      %v1141 = vrot.slane %v1087, 7
      %v1142 = vrot.slane %v1090, 7
      %v1143 = vrot.slane %v1093, 7
      %v1144 = vrot.slane %v1096, 7
      %v1145 = vrot.slane %v1099, 7
      %v1146 = vrot.slane %v1102, 7
      %v1147 = vrot.slane %v1105, 7
      %v1148 = vrot.slane %v1108, 7
      %v1149 = vrot.slane %v1111, 7
      %v1150 = vrot.slane %v1114, 7
      %v1151 = vrot.slane %v1117, 7
      %v1152 = vrot.slane %v1120, 7
      %v1153 = vrot.slane %v1123, 7
      %v1154 = vrot.slane %v1126, 7
      %v1155 = vrot.slane %v1129, 7
      %vm1156 = vcmp.lt.s32.totalorder %v1132, 1
      %v1157 = vsel %vm1156, %v1154, %v1155
      %v1158 = vsel %vm1156, %v1153, %v1154
      %v1159 = vsel %vm1156, %v1152, %v1153
      %v1160 = vsel %vm1156, %v1151, %v1152
      %v1161 = vsel %vm1156, %v1150, %v1151
      %v1162 = vsel %vm1156, %v1149, %v1150
      %v1163 = vsel %vm1156, %v1148, %v1149
      %v1164 = vsel %vm1156, %v1147, %v1148
      %v1165 = vsel %vm1156, %v1146, %v1147
      %v1166 = vsel %vm1156, %v1145, %v1146
      %v1167 = vsel %vm1156, %v1144, %v1145
      %v1168 = vsel %vm1156, %v1143, %v1144
      %v1169 = vsel %vm1156, %v1142, %v1143
      %v1170 = vsel %vm1156, %v1141, %v1142
      %v1171 = vsel %vm1156, %v1140, %v1141
      %v1172 = vsel %vm1156, %v1155, %v1140
      %v1173 = vsel %vm1134, %v1172, 0.0
      %v1174 = vsel %vm1135, %v1171, 0.0
      %v1175 = vsel %vm1134, %v1170, 0.0
      %v1176 = vsel %vm1135, %v1169, 0.0
      %v1177 = vsel %vm1134, %v1168, 0.0
      %v1178 = vsel %vm1135, %v1167, 0.0
      %v1179 = vsel %vm1134, %v1166, 0.0
      %v1180 = vsel %vm1135, %v1165, 0.0
      %v1181 = vsel %vm1134, %v1164, 0.0
      %v1182 = vsel %vm1135, %v1163, 0.0
      %v1183 = vsel %vm1134, %v1162, 0.0
      %v1184 = vsel %vm1135, %v1161, 0.0
      %v1185 = vsel %vm1134, %v1160, 0.0
      %v1186 = vsel %vm1135, %v1159, 0.0
      %v1187 = vsel %vm1134, %v1158, 0.0
      %v1188 = vsel %vm1135, %v1157, 0.0
      %v1189 = vld [vmem:[%s5] sm:$0xff]
      %v1190 = vld [vmem:[%s5 + $0x8] sm:$0xff]
      %v1191 = vld [vmem:[%s5 + $0x10] sm:$0xff]
      %v1192 = vld [vmem:[%s5 + $0x18] sm:$0xff]
      %s1193 = scalar_lea.vmem %s5, 32
      %v1194 = vld [vmem:[%s1193] sm:$0xff]
      %v1195 = vld [vmem:[%s1193 + $0x8] sm:$0xff]
      %v1196 = vld [vmem:[%s1193 + $0x10] sm:$0xff]
      %v1197 = vld [vmem:[%s1193 + $0x18] sm:$0xff]
      %vm1198 = vcmask 261120
      %v1200 = vsel %vm1198, %v1084, 0
      %v1203 = vsel %vm1198, %v1087, 0
      %v1206 = vsel %vm1198, %v1090, 0
      %v1209 = vsel %vm1198, %v1093, 0
      %v1212 = vsel %vm1198, %v1096, 0
      %v1215 = vsel %vm1198, %v1099, 0
      %v1218 = vsel %vm1198, %v1102, 0
      %v1221 = vsel %vm1198, %v1105, 0
      %v1224 = vsel %vm1198, %v1108, 0
      %v1227 = vsel %vm1198, %v1111, 0
      %v1230 = vsel %vm1198, %v1114, 0
      %v1233 = vsel %vm1198, %v1117, 0
      %v1236 = vsel %vm1198, %v1120, 0
      %v1239 = vsel %vm1198, %v1123, 0
      %v1242 = vsel %vm1198, %v1126, 0
      %v1245 = vsel %vm1198, %v1129, 0
      %1247 = vmatpush.msra.mxu0 0.0
      %1248 = vmatpush.msra.mxu0 0.0
      %1249 = vmatpush.msra.mxu0 0.0
      %1250 = vmatpush.msra.mxu0 0.0
      %1251 = vmatpush.msra.mxu0 0.0
      %1252 = vmatpush.msra.mxu0 0.0
      %1253 = vmatpush.msra.mxu0 0.0
      %1254 = vmatpush.msra.mxu0 0.0
      %1255 = vmatpush.msra.mxu0 0.0
      %1256 = vmatpush.msra.mxu0 0.0
      %1257 = vmatpush.msra.mxu0 0.0
      %1258 = vmatpush.msra.mxu0 0.0
      %1259 = vmatpush.msra.mxu0 %v1197
      %1260 = vmatpush.msra.mxu0 %v1196
      %1261 = vmatpush.msra.mxu0 %v1195
      %1262 = vmatpush.msra.mxu0 %v1194
      %1263 = vmatmul.f32.gmra.mxu0 %v1200
      %v1264 = vpop.f32.mrf.mxu0
      %v1265 = vadd.f32 0.0, %v1264
      %1266 = vmatmul.f32.gmra.mxu0 %v1203
      %v1267 = vpop.f32.mrf.mxu0
      %v1268 = vadd.f32 0.0, %v1267
      %1269 = vmatmul.f32.gmra.mxu0 %v1206
      %v1270 = vpop.f32.mrf.mxu0
      %v1271 = vadd.f32 0.0, %v1270
      %1272 = vmatmul.f32.gmra.mxu0 %v1209
      %v1273 = vpop.f32.mrf.mxu0
      %v1274 = vadd.f32 0.0, %v1273
      %1275 = vmatmul.f32.gmra.mxu0 %v1212
      %v1276 = vpop.f32.mrf.mxu0
      %v1277 = vadd.f32 0.0, %v1276
      %1278 = vmatmul.f32.gmra.mxu0 %v1215
      %v1279 = vpop.f32.mrf.mxu0
      %v1280 = vadd.f32 0.0, %v1279
      %1281 = vmatmul.f32.gmra.mxu0 %v1218
      %v1282 = vpop.f32.mrf.mxu0
      %v1283 = vadd.f32 0.0, %v1282
      %1284 = vmatmul.f32.gmra.mxu0 %v1221
      %v1285 = vpop.f32.mrf.mxu0
      %v1286 = vadd.f32 0.0, %v1285
      %1287 = vmatmul.f32.gmra.mxu0 %v1224
      %v1288 = vpop.f32.mrf.mxu0
      %v1289 = vadd.f32 0.0, %v1288
      %1290 = vmatmul.f32.gmra.mxu0 %v1227
      %v1291 = vpop.f32.mrf.mxu0
      %v1292 = vadd.f32 0.0, %v1291
      %1293 = vmatmul.f32.gmra.mxu0 %v1230
      %v1294 = vpop.f32.mrf.mxu0
      %v1295 = vadd.f32 0.0, %v1294
      %1296 = vmatmul.f32.gmra.mxu0 %v1233
      %v1297 = vpop.f32.mrf.mxu0
      %v1298 = vadd.f32 0.0, %v1297
      %1299 = vmatmul.f32.gmra.mxu0 %v1236
      %v1300 = vpop.f32.mrf.mxu0
      %v1301 = vadd.f32 0.0, %v1300
      %1302 = vmatmul.f32.gmra.mxu0 %v1239
      %v1303 = vpop.f32.mrf.mxu0
      %v1304 = vadd.f32 0.0, %v1303
      %1305 = vmatmul.f32.gmra.mxu0 %v1242
      %v1306 = vpop.f32.mrf.mxu0
      %v1307 = vadd.f32 0.0, %v1306
      %1308 = vmatmul.f32.gmra.mxu0 %v1245
      %v1309 = vpop.f32.mrf.mxu0
      %v1310 = vadd.f32 0.0, %v1309
      %1311 = vdwg.mxu0
      %v1313 = vsel %vm1198, %v1173, 0
      %v1316 = vsel %vm1198, %v1174, 0
      %v1319 = vsel %vm1198, %v1175, 0
      %v1322 = vsel %vm1198, %v1176, 0
      %v1325 = vsel %vm1198, %v1177, 0
      %v1328 = vsel %vm1198, %v1178, 0
      %v1331 = vsel %vm1198, %v1179, 0
      %v1334 = vsel %vm1198, %v1180, 0
      %v1337 = vsel %vm1198, %v1181, 0
      %v1340 = vsel %vm1198, %v1182, 0
      %v1343 = vsel %vm1198, %v1183, 0
      %v1346 = vsel %vm1198, %v1184, 0
      %v1349 = vsel %vm1198, %v1185, 0
      %v1352 = vsel %vm1198, %v1186, 0
      %v1355 = vsel %vm1198, %v1187, 0
      %v1358 = vsel %vm1198, %v1188, 0
      %1360 = vmatpush.msra.mxu0 0.0
      %1361 = vmatpush.msra.mxu0 0.0
      %1362 = vmatpush.msra.mxu0 0.0
      %1363 = vmatpush.msra.mxu0 0.0
      %1364 = vmatpush.msra.mxu0 0.0
      %1365 = vmatpush.msra.mxu0 0.0
      %1366 = vmatpush.msra.mxu0 0.0
      %1367 = vmatpush.msra.mxu0 0.0
      %1368 = vmatpush.msra.mxu0 0.0
      %1369 = vmatpush.msra.mxu0 0.0
      %1370 = vmatpush.msra.mxu0 0.0
      %1371 = vmatpush.msra.mxu0 0.0
      %1372 = vmatpush.msra.mxu0 %v1192
      %1373 = vmatpush.msra.mxu0 %v1191
      %1374 = vmatpush.msra.mxu0 %v1190
      %1375 = vmatpush.msra.mxu0 %v1189
      %1376 = vmatmul.f32.gmra.mxu0 %v1313
      %v1377 = vpop.f32.mrf.mxu0
      %v1378 = vadd.f32 %v1265, %v1377
      %1379 = vmatmul.f32.gmra.mxu0 %v1316
      %v1380 = vpop.f32.mrf.mxu0
      %v1381 = vadd.f32 %v1268, %v1380
      %1382 = vmatmul.f32.gmra.mxu0 %v1319
      %v1383 = vpop.f32.mrf.mxu0
      %v1384 = vadd.f32 %v1271, %v1383
      %1385 = vmatmul.f32.gmra.mxu0 %v1322
      %v1386 = vpop.f32.mrf.mxu0
      %v1387 = vadd.f32 %v1274, %v1386
      %1388 = vmatmul.f32.gmra.mxu0 %v1325
      %v1389 = vpop.f32.mrf.mxu0
      %v1390 = vadd.f32 %v1277, %v1389
      %1391 = vmatmul.f32.gmra.mxu0 %v1328
      %v1392 = vpop.f32.mrf.mxu0
      %v1393 = vadd.f32 %v1280, %v1392
      %1394 = vmatmul.f32.gmra.mxu0 %v1331
      %v1395 = vpop.f32.mrf.mxu0
      %v1396 = vadd.f32 %v1283, %v1395
      %1397 = vmatmul.f32.gmra.mxu0 %v1334
      %v1398 = vpop.f32.mrf.mxu0
      %v1399 = vadd.f32 %v1286, %v1398
      %1400 = vmatmul.f32.gmra.mxu0 %v1337
      %v1401 = vpop.f32.mrf.mxu0
      %v1402 = vadd.f32 %v1289, %v1401
      %1403 = vmatmul.f32.gmra.mxu0 %v1340
      %v1404 = vpop.f32.mrf.mxu0
      %v1405 = vadd.f32 %v1292, %v1404
      %1406 = vmatmul.f32.gmra.mxu0 %v1343
      %v1407 = vpop.f32.mrf.mxu0
      %v1408 = vadd.f32 %v1295, %v1407
      %1409 = vmatmul.f32.gmra.mxu0 %v1346
      %v1410 = vpop.f32.mrf.mxu0
      %v1411 = vadd.f32 %v1298, %v1410
      %1412 = vmatmul.f32.gmra.mxu0 %v1349
      %v1413 = vpop.f32.mrf.mxu0
      %v1414 = vadd.f32 %v1301, %v1413
      %1415 = vmatmul.f32.gmra.mxu0 %v1352
      %v1416 = vpop.f32.mrf.mxu0
      %v1417 = vadd.f32 %v1304, %v1416
      %1418 = vmatmul.f32.gmra.mxu0 %v1355
      %v1419 = vpop.f32.mrf.mxu0
      %v1420 = vadd.f32 %v1307, %v1419
      %1421 = vmatmul.f32.gmra.mxu0 %v1358
      %v1422 = vpop.f32.mrf.mxu0
      %v1423 = vadd.f32 %v1310, %v1422
      %1424 = vdwg.mxu0
      %v1425 = vld [vmem:[%s6] sm:$0x1]
      %v1426 = vperm.slane %v1425, 0
      %v1427 = vadd.f32 %v1378, %v1426
      %v1428 = vadd.f32 %v1381, %v1426
      %v1429 = vadd.f32 %v1384, %v1426
      %v1430 = vadd.f32 %v1387, %v1426
      %v1431 = vadd.f32 %v1390, %v1426
      %v1432 = vadd.f32 %v1393, %v1426
      %v1433 = vadd.f32 %v1396, %v1426
      %v1434 = vadd.f32 %v1399, %v1426
      %v1435 = vadd.f32 %v1402, %v1426
      %v1436 = vadd.f32 %v1405, %v1426
      %v1437 = vadd.f32 %v1408, %v1426
      %v1438 = vadd.f32 %v1411, %v1426
      %v1439 = vadd.f32 %v1414, %v1426
      %v1440 = vadd.f32 %v1417, %v1426
      %v1441 = vadd.f32 %v1420, %v1426
      %v1442 = vadd.f32 %v1423, %v1426
      %v1443 = vtanh.pop %v1427
      %v1444 = vtanh.pop %v1428
      %v1445 = vtanh.pop %v1429
      %v1446 = vtanh.pop %v1430
      %v1447 = vtanh.pop %v1431
      %v1448 = vtanh.pop %v1432
      %v1449 = vtanh.pop %v1433
      %v1450 = vtanh.pop %v1434
      %v1451 = vtanh.pop %v1435
      %v1452 = vtanh.pop %v1436
      %v1453 = vtanh.pop %v1437
      %v1454 = vtanh.pop %v1438
      %v1455 = vtanh.pop %v1439
      %v1456 = vtanh.pop %v1440
      %v1457 = vtanh.pop %v1441
      %v1458 = vtanh.pop %v1442
      %v1459 = vxor.u32 %v1427, 2147483648
      %v1460 = vxor.u32 %v1428, 2147483648
      %v1461 = vxor.u32 %v1429, 2147483648
      %v1462 = vxor.u32 %v1430, 2147483648
      %v1463 = vxor.u32 %v1431, 2147483648
      %v1464 = vxor.u32 %v1432, 2147483648
      %v1465 = vxor.u32 %v1433, 2147483648
      %v1466 = vxor.u32 %v1434, 2147483648
      %v1467 = vxor.u32 %v1435, 2147483648
      %v1468 = vxor.u32 %v1436, 2147483648
      %v1469 = vxor.u32 %v1437, 2147483648
      %v1470 = vxor.u32 %v1438, 2147483648
      %v1471 = vxor.u32 %v1439, 2147483648
      %v1472 = vxor.u32 %v1440, 2147483648
      %v1473 = vxor.u32 %v1441, 2147483648
      %v1474 = vxor.u32 %v1442, 2147483648
      %v1475 = vmul.f32 %v1459, 1.442695
      %v1476 = vpow.pop %v1475
      %v1477 = vmul.f32 %v1460, 1.442695
      %v1478 = vpow.pop %v1477
      %v1479 = vmul.f32 %v1461, 1.442695
      %v1480 = vpow.pop %v1479
      %v1481 = vmul.f32 %v1462, 1.442695
      %v1482 = vpow.pop %v1481
      %v1483 = vmul.f32 %v1463, 1.442695
      %v1484 = vpow.pop %v1483
      %v1485 = vmul.f32 %v1464, 1.442695
      %v1486 = vpow.pop %v1485
      %v1487 = vmul.f32 %v1465, 1.442695
      %v1488 = vpow.pop %v1487
      %v1489 = vmul.f32 %v1466, 1.442695
      %v1490 = vpow.pop %v1489
      %v1491 = vmul.f32 %v1467, 1.442695
      %v1492 = vpow.pop %v1491
      %v1493 = vmul.f32 %v1468, 1.442695
      %v1494 = vpow.pop %v1493
      %v1495 = vmul.f32 %v1469, 1.442695
      %v1496 = vpow.pop %v1495
      %v1497 = vmul.f32 %v1470, 1.442695
      %v1498 = vpow.pop %v1497
      %v1499 = vmul.f32 %v1471, 1.442695
      %v1500 = vpow.pop %v1499
      %v1501 = vmul.f32 %v1472, 1.442695
      %v1502 = vpow.pop %v1501
      %v1503 = vmul.f32 %v1473, 1.442695
      %v1504 = vpow.pop %v1503
      %v1505 = vmul.f32 %v1474, 1.442695
      %v1506 = vpow.pop %v1505
      %v1507 = vadd.f32 %v1476, 1.0
      %v1508 = vadd.f32 %v1478, 1.0
      %v1509 = vadd.f32 %v1480, 1.0
      %v1510 = vadd.f32 %v1482, 1.0
      %v1511 = vadd.f32 %v1484, 1.0
      %v1512 = vadd.f32 %v1486, 1.0
      %v1513 = vadd.f32 %v1488, 1.0
      %v1514 = vadd.f32 %v1490, 1.0
      %v1515 = vadd.f32 %v1492, 1.0
      %v1516 = vadd.f32 %v1494, 1.0
      %v1517 = vadd.f32 %v1496, 1.0
      %v1518 = vadd.f32 %v1498, 1.0
      %v1519 = vadd.f32 %v1500, 1.0
      %v1520 = vadd.f32 %v1502, 1.0
      %v1521 = vadd.f32 %v1504, 1.0
      %v1522 = vadd.f32 %v1506, 1.0
      %v1523 = vrcp.pop %v1507
      %v1524 = vmul.f32 %v1507, %v1523
      %v1525 = vsub.f32 1.0, %v1524
      %v1526 = vmul.f32 %v1523, %v1525
      %v1527 = vadd.f32 %v1523, %v1526
      %vm1528 = vweird.f32 %v1507
      %vm1529 = vweird.f32 %v1523
      %vm1530 = vmor %vm1528, %vm1529
      %v1531 = vsel %vm1530, %v1523, %v1527
      %v1532 = vand.u32 2147483647, %v1507
      %vm1533 = vcmp.eq.f32.partialorder %v1532, 8.507059e+37
      %v1534 = vand.u32 %v1507, 2147483648
      %v1535 = vor.u32 1.1754944e-38, %v1534
      %v1536 = vsel %vm1533, %v1535, %v1531
      %v1537 = vmul.f32 1.0, %v1536
      %v1538 = vrcp.pop %v1508
      %v1539 = vmul.f32 %v1508, %v1538
      %v1540 = vsub.f32 1.0, %v1539
      %v1541 = vmul.f32 %v1538, %v1540
      %v1542 = vadd.f32 %v1538, %v1541
      %vm1543 = vweird.f32 %v1508
      %vm1544 = vweird.f32 %v1538
      %vm1545 = vmor %vm1543, %vm1544
      %v1546 = vsel %vm1545, %v1538, %v1542
      %v1547 = vand.u32 2147483647, %v1508
      %vm1548 = vcmp.eq.f32.partialorder %v1547, 8.507059e+37
      %v1549 = vand.u32 %v1508, 2147483648
      %v1550 = vor.u32 1.1754944e-38, %v1549
      %v1551 = vsel %vm1548, %v1550, %v1546
      %v1552 = vmul.f32 1.0, %v1551
      %v1553 = vrcp.pop %v1509
      %v1554 = vmul.f32 %v1509, %v1553
      %v1555 = vsub.f32 1.0, %v1554
      %v1556 = vmul.f32 %v1553, %v1555
      %v1557 = vadd.f32 %v1553, %v1556
      %vm1558 = vweird.f32 %v1509
      %vm1559 = vweird.f32 %v1553
      %vm1560 = vmor %vm1558, %vm1559
      %v1561 = vsel %vm1560, %v1553, %v1557
      %v1562 = vand.u32 2147483647, %v1509
      %vm1563 = vcmp.eq.f32.partialorder %v1562, 8.507059e+37
      %v1564 = vand.u32 %v1509, 2147483648
      %v1565 = vor.u32 1.1754944e-38, %v1564
      %v1566 = vsel %vm1563, %v1565, %v1561
      %v1567 = vmul.f32 1.0, %v1566
      %v1568 = vrcp.pop %v1510
      %v1569 = vmul.f32 %v1510, %v1568
      %v1570 = vsub.f32 1.0, %v1569
      %v1571 = vmul.f32 %v1568, %v1570
      %v1572 = vadd.f32 %v1568, %v1571
      %vm1573 = vweird.f32 %v1510
      %vm1574 = vweird.f32 %v1568
      %vm1575 = vmor %vm1573, %vm1574
      %v1576 = vsel %vm1575, %v1568, %v1572
      %v1577 = vand.u32 2147483647, %v1510
      %vm1578 = vcmp.eq.f32.partialorder %v1577, 8.507059e+37
      %v1579 = vand.u32 %v1510, 2147483648
      %v1580 = vor.u32 1.1754944e-38, %v1579
      %v1581 = vsel %vm1578, %v1580, %v1576
      %v1582 = vmul.f32 1.0, %v1581
      %v1583 = vrcp.pop %v1511
      %v1584 = vmul.f32 %v1511, %v1583
      %v1585 = vsub.f32 1.0, %v1584
      %v1586 = vmul.f32 %v1583, %v1585
      %v1587 = vadd.f32 %v1583, %v1586
      %vm1588 = vweird.f32 %v1511
      %vm1589 = vweird.f32 %v1583
      %vm1590 = vmor %vm1588, %vm1589
      %v1591 = vsel %vm1590, %v1583, %v1587
      %v1592 = vand.u32 2147483647, %v1511
      %vm1593 = vcmp.eq.f32.partialorder %v1592, 8.507059e+37
      %v1594 = vand.u32 %v1511, 2147483648
      %v1595 = vor.u32 1.1754944e-38, %v1594
      %v1596 = vsel %vm1593, %v1595, %v1591
      %v1597 = vmul.f32 1.0, %v1596
      %v1598 = vrcp.pop %v1512
      %v1599 = vmul.f32 %v1512, %v1598
      %v1600 = vsub.f32 1.0, %v1599
      %v1601 = vmul.f32 %v1598, %v1600
      %v1602 = vadd.f32 %v1598, %v1601
      %vm1603 = vweird.f32 %v1512
      %vm1604 = vweird.f32 %v1598
      %vm1605 = vmor %vm1603, %vm1604
      %v1606 = vsel %vm1605, %v1598, %v1602
      %v1607 = vand.u32 2147483647, %v1512
      %vm1608 = vcmp.eq.f32.partialorder %v1607, 8.507059e+37
      %v1609 = vand.u32 %v1512, 2147483648
      %v1610 = vor.u32 1.1754944e-38, %v1609
      %v1611 = vsel %vm1608, %v1610, %v1606
      %v1612 = vmul.f32 1.0, %v1611
      %v1613 = vrcp.pop %v1513
      %v1614 = vmul.f32 %v1513, %v1613
      %v1615 = vsub.f32 1.0, %v1614
      %v1616 = vmul.f32 %v1613, %v1615
      %v1617 = vadd.f32 %v1613, %v1616
      %vm1618 = vweird.f32 %v1513
      %vm1619 = vweird.f32 %v1613
      %vm1620 = vmor %vm1618, %vm1619
      %v1621 = vsel %vm1620, %v1613, %v1617
      %v1622 = vand.u32 2147483647, %v1513
      %vm1623 = vcmp.eq.f32.partialorder %v1622, 8.507059e+37
      %v1624 = vand.u32 %v1513, 2147483648
      %v1625 = vor.u32 1.1754944e-38, %v1624
      %v1626 = vsel %vm1623, %v1625, %v1621
      %v1627 = vmul.f32 1.0, %v1626
      %v1628 = vrcp.pop %v1514
      %v1629 = vmul.f32 %v1514, %v1628
      %v1630 = vsub.f32 1.0, %v1629
      %v1631 = vmul.f32 %v1628, %v1630
      %v1632 = vadd.f32 %v1628, %v1631
      %vm1633 = vweird.f32 %v1514
      %vm1634 = vweird.f32 %v1628
      %vm1635 = vmor %vm1633, %vm1634
      %v1636 = vsel %vm1635, %v1628, %v1632
      %v1637 = vand.u32 2147483647, %v1514
      %vm1638 = vcmp.eq.f32.partialorder %v1637, 8.507059e+37
      %v1639 = vand.u32 %v1514, 2147483648
      %v1640 = vor.u32 1.1754944e-38, %v1639
      %v1641 = vsel %vm1638, %v1640, %v1636
      %v1642 = vmul.f32 1.0, %v1641
      %v1643 = vrcp.pop %v1515
      %v1644 = vmul.f32 %v1515, %v1643
      %v1645 = vsub.f32 1.0, %v1644
      %v1646 = vmul.f32 %v1643, %v1645
      %v1647 = vadd.f32 %v1643, %v1646
      %vm1648 = vweird.f32 %v1515
      %vm1649 = vweird.f32 %v1643
      %vm1650 = vmor %vm1648, %vm1649
      %v1651 = vsel %vm1650, %v1643, %v1647
      %v1652 = vand.u32 2147483647, %v1515
      %vm1653 = vcmp.eq.f32.partialorder %v1652, 8.507059e+37
      %v1654 = vand.u32 %v1515, 2147483648
      %v1655 = vor.u32 1.1754944e-38, %v1654
      %v1656 = vsel %vm1653, %v1655, %v1651
      %v1657 = vmul.f32 1.0, %v1656
      %v1658 = vrcp.pop %v1516
      %v1659 = vmul.f32 %v1516, %v1658
      %v1660 = vsub.f32 1.0, %v1659
      %v1661 = vmul.f32 %v1658, %v1660
      %v1662 = vadd.f32 %v1658, %v1661
      %vm1663 = vweird.f32 %v1516
      %vm1664 = vweird.f32 %v1658
      %vm1665 = vmor %vm1663, %vm1664
      %v1666 = vsel %vm1665, %v1658, %v1662
      %v1667 = vand.u32 2147483647, %v1516
      %vm1668 = vcmp.eq.f32.partialorder %v1667, 8.507059e+37
      %v1669 = vand.u32 %v1516, 2147483648
      %v1670 = vor.u32 1.1754944e-38, %v1669
      %v1671 = vsel %vm1668, %v1670, %v1666
      %v1672 = vmul.f32 1.0, %v1671
      %v1673 = vrcp.pop %v1517
      %v1674 = vmul.f32 %v1517, %v1673
      %v1675 = vsub.f32 1.0, %v1674
      %v1676 = vmul.f32 %v1673, %v1675
      %v1677 = vadd.f32 %v1673, %v1676
      %vm1678 = vweird.f32 %v1517
      %vm1679 = vweird.f32 %v1673
      %vm1680 = vmor %vm1678, %vm1679
      %v1681 = vsel %vm1680, %v1673, %v1677
      %v1682 = vand.u32 2147483647, %v1517
      %vm1683 = vcmp.eq.f32.partialorder %v1682, 8.507059e+37
      %v1684 = vand.u32 %v1517, 2147483648
      %v1685 = vor.u32 1.1754944e-38, %v1684
      %v1686 = vsel %vm1683, %v1685, %v1681
      %v1687 = vmul.f32 1.0, %v1686
      %v1688 = vrcp.pop %v1518
      %v1689 = vmul.f32 %v1518, %v1688
      %v1690 = vsub.f32 1.0, %v1689
      %v1691 = vmul.f32 %v1688, %v1690
      %v1692 = vadd.f32 %v1688, %v1691
      %vm1693 = vweird.f32 %v1518
      %vm1694 = vweird.f32 %v1688
      %vm1695 = vmor %vm1693, %vm1694
      %v1696 = vsel %vm1695, %v1688, %v1692
      %v1697 = vand.u32 2147483647, %v1518
      %vm1698 = vcmp.eq.f32.partialorder %v1697, 8.507059e+37
      %v1699 = vand.u32 %v1518, 2147483648
      %v1700 = vor.u32 1.1754944e-38, %v1699
      %v1701 = vsel %vm1698, %v1700, %v1696
      %v1702 = vmul.f32 1.0, %v1701
      %v1703 = vrcp.pop %v1519
      %v1704 = vmul.f32 %v1519, %v1703
      %v1705 = vsub.f32 1.0, %v1704
      %v1706 = vmul.f32 %v1703, %v1705
      %v1707 = vadd.f32 %v1703, %v1706
      %vm1708 = vweird.f32 %v1519
      %vm1709 = vweird.f32 %v1703
      %vm1710 = vmor %vm1708, %vm1709
      %v1711 = vsel %vm1710, %v1703, %v1707
      %v1712 = vand.u32 2147483647, %v1519
      %vm1713 = vcmp.eq.f32.partialorder %v1712, 8.507059e+37
      %v1714 = vand.u32 %v1519, 2147483648
      %v1715 = vor.u32 1.1754944e-38, %v1714
      %v1716 = vsel %vm1713, %v1715, %v1711
      %v1717 = vmul.f32 1.0, %v1716
      %v1718 = vrcp.pop %v1520
      %v1719 = vmul.f32 %v1520, %v1718
      %v1720 = vsub.f32 1.0, %v1719
      %v1721 = vmul.f32 %v1718, %v1720
      %v1722 = vadd.f32 %v1718, %v1721
      %vm1723 = vweird.f32 %v1520
      %vm1724 = vweird.f32 %v1718
      %vm1725 = vmor %vm1723, %vm1724
      %v1726 = vsel %vm1725, %v1718, %v1722
      %v1727 = vand.u32 2147483647, %v1520
      %vm1728 = vcmp.eq.f32.partialorder %v1727, 8.507059e+37
      %v1729 = vand.u32 %v1520, 2147483648
      %v1730 = vor.u32 1.1754944e-38, %v1729
      %v1731 = vsel %vm1728, %v1730, %v1726
      %v1732 = vmul.f32 1.0, %v1731
      %v1733 = vrcp.pop %v1521
      %v1734 = vmul.f32 %v1521, %v1733
      %v1735 = vsub.f32 1.0, %v1734
      %v1736 = vmul.f32 %v1733, %v1735
      %v1737 = vadd.f32 %v1733, %v1736
      %vm1738 = vweird.f32 %v1521
      %vm1739 = vweird.f32 %v1733
      %vm1740 = vmor %vm1738, %vm1739
      %v1741 = vsel %vm1740, %v1733, %v1737
      %v1742 = vand.u32 2147483647, %v1521
      %vm1743 = vcmp.eq.f32.partialorder %v1742, 8.507059e+37
      %v1744 = vand.u32 %v1521, 2147483648
      %v1745 = vor.u32 1.1754944e-38, %v1744
      %v1746 = vsel %vm1743, %v1745, %v1741
      %v1747 = vmul.f32 1.0, %v1746
      %v1748 = vrcp.pop %v1522
      %v1749 = vmul.f32 %v1522, %v1748
      %v1750 = vsub.f32 1.0, %v1749
      %v1751 = vmul.f32 %v1748, %v1750
      %v1752 = vadd.f32 %v1748, %v1751
      %vm1753 = vweird.f32 %v1522
      %vm1754 = vweird.f32 %v1748
      %vm1755 = vmor %vm1753, %vm1754
      %v1756 = vsel %vm1755, %v1748, %v1752
      %v1757 = vand.u32 2147483647, %v1522
      %vm1758 = vcmp.eq.f32.partialorder %v1757, 8.507059e+37
      %v1759 = vand.u32 %v1522, 2147483648
      %v1760 = vor.u32 1.1754944e-38, %v1759
      %v1761 = vsel %vm1758, %v1760, %v1756
      %v1762 = vmul.f32 1.0, %v1761
      %1779 = vrot.lane.b32.xlu0 %v1537, 96
      %v1780 = vpop.permute.xlu0 %1779
      %1781 = vrot.lane.b32.xlu0 %v1552, 96
      %v1782 = vpop.permute.xlu0 %1781
      %1783 = vrot.lane.b32.xlu0 %v1567, 96
      %v1784 = vpop.permute.xlu0 %1783
      %1785 = vrot.lane.b32.xlu0 %v1582, 96
      %v1786 = vpop.permute.xlu0 %1785
      %1787 = vrot.lane.b32.xlu0 %v1597, 96
      %v1788 = vpop.permute.xlu0 %1787
      %1789 = vrot.lane.b32.xlu0 %v1612, 96
      %v1790 = vpop.permute.xlu0 %1789
      %1791 = vrot.lane.b32.xlu0 %v1627, 96
      %v1792 = vpop.permute.xlu0 %1791
      %1793 = vrot.lane.b32.xlu0 %v1642, 96
      %v1794 = vpop.permute.xlu0 %1793
      %1795 = vrot.lane.b32.xlu0 %v1657, 96
      %v1796 = vpop.permute.xlu0 %1795
      %1797 = vrot.lane.b32.xlu0 %v1672, 96
      %v1798 = vpop.permute.xlu0 %1797
      %1799 = vrot.lane.b32.xlu0 %v1687, 96
      %v1800 = vpop.permute.xlu0 %1799
      %1801 = vrot.lane.b32.xlu0 %v1702, 96
      %v1802 = vpop.permute.xlu0 %1801
      %1803 = vrot.lane.b32.xlu0 %v1717, 96
      %v1804 = vpop.permute.xlu0 %1803
      %1805 = vrot.lane.b32.xlu0 %v1732, 96
      %v1806 = vpop.permute.xlu0 %1805
      %1807 = vrot.lane.b32.xlu0 %v1747, 96
      %v1808 = vpop.permute.xlu0 %1807
      %1809 = vrot.lane.b32.xlu0 %v1762, 96
      %v1810 = vpop.permute.xlu0 %1809
      %v1827 = vmul.f32 %v1443, %v1780
      %v1828 = vmul.f32 %v1444, %v1782
      %v1829 = vmul.f32 %v1445, %v1784
      %v1830 = vmul.f32 %v1446, %v1786
      %v1831 = vmul.f32 %v1447, %v1788
      %v1832 = vmul.f32 %v1448, %v1790
      %v1833 = vmul.f32 %v1449, %v1792
      %v1834 = vmul.f32 %v1450, %v1794
      %v1835 = vmul.f32 %v1451, %v1796
      %v1836 = vmul.f32 %v1452, %v1798
      %v1837 = vmul.f32 %v1453, %v1800
      %v1838 = vmul.f32 %v1454, %v1802
      %v1839 = vmul.f32 %v1455, %v1804
      %v1840 = vmul.f32 %v1456, %v1806
      %v1841 = vmul.f32 %v1457, %v1808
      %v1842 = vmul.f32 %v1458, %v1810
      %v1843 = vld [vmem:[%s7] sm:$0xff]
      %v1844 = vld [vmem:[%s7 + $0x8] sm:$0xff]
      %v1845 = vld [vmem:[%s7 + $0x10] sm:$0xff]
      %v1846 = vld [vmem:[%s7 + $0x18] sm:$0xff]
      %v1847 = vld [vmem:[%s8] sm:$0x1]
      %v1848 = vperm.slane %v1847, 0
      %v1850 = vsel %vm1198, %v1827, 0
      %v1853 = vsel %vm1198, %v1828, 0
      %v1856 = vsel %vm1198, %v1829, 0
      %v1859 = vsel %vm1198, %v1830, 0
      %v1862 = vsel %vm1198, %v1831, 0
      %v1865 = vsel %vm1198, %v1832, 0
      %v1868 = vsel %vm1198, %v1833, 0
      %v1871 = vsel %vm1198, %v1834, 0
      %v1874 = vsel %vm1198, %v1835, 0
      %v1877 = vsel %vm1198, %v1836, 0
      %v1880 = vsel %vm1198, %v1837, 0
      %v1883 = vsel %vm1198, %v1838, 0
      %v1886 = vsel %vm1198, %v1839, 0
      %v1889 = vsel %vm1198, %v1840, 0
      %v1892 = vsel %vm1198, %v1841, 0
      %v1895 = vsel %vm1198, %v1842, 0
      %1897 = vmatpush.msra.mxu0 0.0
      %1898 = vmatpush.msra.mxu0 0.0
      %1899 = vmatpush.msra.mxu0 0.0
      %1900 = vmatpush.msra.mxu0 0.0
      %1901 = vmatpush.msra.mxu0 0.0
      %1902 = vmatpush.msra.mxu0 0.0
      %1903 = vmatpush.msra.mxu0 0.0
      %1904 = vmatpush.msra.mxu0 0.0
      %1905 = vmatpush.msra.mxu0 0.0
      %1906 = vmatpush.msra.mxu0 0.0
      %1907 = vmatpush.msra.mxu0 0.0
      %1908 = vmatpush.msra.mxu0 0.0
      %1909 = vmatpush.msra.mxu0 %v1846
      %1910 = vmatpush.msra.mxu0 %v1845
      %1911 = vmatpush.msra.mxu0 %v1844
      %1912 = vmatpush.msra.mxu0 %v1843
      %1913 = vmatmul.f32.gmra.mxu0 %v1850
      %v1914 = vpop.f32.mrf.mxu0
      %v1915 = vadd.f32 %v1848, %v1914
      %1916 = vmatmul.f32.gmra.mxu0 %v1853
      %v1917 = vpop.f32.mrf.mxu0
      %v1918 = vadd.f32 %v1848, %v1917
      %1919 = vmatmul.f32.gmra.mxu0 %v1856
      %v1920 = vpop.f32.mrf.mxu0
      %v1921 = vadd.f32 %v1848, %v1920
      %1922 = vmatmul.f32.gmra.mxu0 %v1859
      %v1923 = vpop.f32.mrf.mxu0
      %v1924 = vadd.f32 %v1848, %v1923
      %1925 = vmatmul.f32.gmra.mxu0 %v1862
      %v1926 = vpop.f32.mrf.mxu0
      %v1927 = vadd.f32 %v1848, %v1926
      %1928 = vmatmul.f32.gmra.mxu0 %v1865
      %v1929 = vpop.f32.mrf.mxu0
      %v1930 = vadd.f32 %v1848, %v1929
      %1931 = vmatmul.f32.gmra.mxu0 %v1868
      %v1932 = vpop.f32.mrf.mxu0
      %v1933 = vadd.f32 %v1848, %v1932
      %1934 = vmatmul.f32.gmra.mxu0 %v1871
      %v1935 = vpop.f32.mrf.mxu0
      %v1936 = vadd.f32 %v1848, %v1935
      %1937 = vmatmul.f32.gmra.mxu0 %v1874
      %v1938 = vpop.f32.mrf.mxu0
      %v1939 = vadd.f32 %v1848, %v1938
      %1940 = vmatmul.f32.gmra.mxu0 %v1877
      %v1941 = vpop.f32.mrf.mxu0
      %v1942 = vadd.f32 %v1848, %v1941
      %1943 = vmatmul.f32.gmra.mxu0 %v1880
      %v1944 = vpop.f32.mrf.mxu0
      %v1945 = vadd.f32 %v1848, %v1944
      %1946 = vmatmul.f32.gmra.mxu0 %v1883
      %v1947 = vpop.f32.mrf.mxu0
      %v1948 = vadd.f32 %v1848, %v1947
      %1949 = vmatmul.f32.gmra.mxu0 %v1886
      %v1950 = vpop.f32.mrf.mxu0
      %v1951 = vadd.f32 %v1848, %v1950
      %1952 = vmatmul.f32.gmra.mxu0 %v1889
      %v1953 = vpop.f32.mrf.mxu0
      %v1954 = vadd.f32 %v1848, %v1953
      %1955 = vmatmul.f32.gmra.mxu0 %v1892
      %v1956 = vpop.f32.mrf.mxu0
      %v1957 = vadd.f32 %v1848, %v1956
      %1958 = vmatmul.f32.gmra.mxu0 %v1895
      %v1959 = vpop.f32.mrf.mxu0
      %v1960 = vadd.f32 %v1848, %v1959
      %1961 = vdwg.mxu0
      %v1962 = vadd.f32 %v1915, %v1084
      %v1963 = vadd.f32 %v1918, %v1087
      %v1964 = vadd.f32 %v1921, %v1090
      %v1965 = vadd.f32 %v1924, %v1093
      %v1966 = vadd.f32 %v1927, %v1096
      %v1967 = vadd.f32 %v1930, %v1099
      %v1968 = vadd.f32 %v1933, %v1102
      %v1969 = vadd.f32 %v1936, %v1105
      %v1970 = vadd.f32 %v1939, %v1108
      %v1971 = vadd.f32 %v1942, %v1111
      %v1972 = vadd.f32 %v1945, %v1114
      %v1973 = vadd.f32 %v1948, %v1117
      %v1974 = vadd.f32 %v1951, %v1120
      %v1975 = vadd.f32 %v1954, %v1123
      %v1976 = vadd.f32 %v1957, %v1126
      %v1977 = vadd.f32 %v1960, %v1129
      %v1978 = vmax.f32 %v1918, 0.0
      %v1979 = vmax.f32 %v1924, 0.0
      %v1980 = vmax.f32 %v1930, 0.0
      %v1981 = vmax.f32 %v1936, 0.0
      %v1982 = vmax.f32 %v1942, 0.0
      %v1983 = vmax.f32 %v1948, 0.0
      %v1984 = vmax.f32 %v1954, 0.0
      %v1985 = vmax.f32 %v1960, 0.0
      %v1986 = vld [vmem:[%s9] sm:$0xff]
      %v1987 = vld [vmem:[%s9 + $0x8] sm:$0xff]
      %v1988 = vld [vmem:[%s9 + $0x10] sm:$0xff]
      %v1989 = vld [vmem:[%s9 + $0x18] sm:$0xff]
      %v1990 = vrot.slane %v1962, 6
      %v1991 = vrot.slane %v1963, 6
      %v1992 = vrot.slane %v1964, 6
      %v1993 = vrot.slane %v1965, 6
      %v1994 = vrot.slane %v1966, 6
      %v1995 = vrot.slane %v1967, 6
      %v1996 = vrot.slane %v1968, 6
      %v1997 = vrot.slane %v1969, 6
      %v1998 = vrot.slane %v1970, 6
      %v1999 = vrot.slane %v1971, 6
      %v2000 = vrot.slane %v1972, 6
      %v2001 = vrot.slane %v1973, 6
      %v2002 = vrot.slane %v1974, 6
      %v2003 = vrot.slane %v1975, 6
      %v2004 = vrot.slane %v1976, 6
      %v2005 = vrot.slane %v1977, 6
      %vm2006 = vcmp.lt.s32.totalorder %v1132, 2
      %v2007 = vsel %vm2006, %v2004, %v2005
      %v2008 = vsel %vm2006, %v2003, %v2004
      %v2009 = vsel %vm2006, %v2002, %v2003
      %v2010 = vsel %vm2006, %v2001, %v2002
      %v2011 = vsel %vm2006, %v2000, %v2001
      %v2012 = vsel %vm2006, %v1999, %v2000
      %v2013 = vsel %vm2006, %v1998, %v1999
      %v2014 = vsel %vm2006, %v1997, %v1998
      %v2015 = vsel %vm2006, %v1996, %v1997
      %v2016 = vsel %vm2006, %v1995, %v1996
      %v2017 = vsel %vm2006, %v1994, %v1995
      %v2018 = vsel %vm2006, %v1993, %v1994
      %v2019 = vsel %vm2006, %v1992, %v1993
      %v2020 = vsel %vm2006, %v1991, %v1992
      %v2021 = vsel %vm2006, %v1990, %v1991
      %v2022 = vsel %vm2006, %v2005, %v1990
      %v2023 = vsel %vm1136, %v2022, 0.0
      %v2024 = vsel %vm1137, %v2021, 0.0
      %v2025 = vsel %vm1136, %v2020, 0.0
      %v2026 = vsel %vm1137, %v2019, 0.0
      %v2027 = vsel %vm1136, %v2018, 0.0
      %v2028 = vsel %vm1137, %v2017, 0.0
      %v2029 = vsel %vm1136, %v2016, 0.0
      %v2030 = vsel %vm1137, %v2015, 0.0
      %v2031 = vsel %vm1136, %v2014, 0.0
      %v2032 = vsel %vm1137, %v2013, 0.0
      %v2033 = vsel %vm1136, %v2012, 0.0
      %v2034 = vsel %vm1137, %v2011, 0.0
      %v2035 = vsel %vm1136, %v2010, 0.0
      %v2036 = vsel %vm1137, %v2009, 0.0
      %v2037 = vsel %vm1136, %v2008, 0.0
      %v2038 = vsel %vm1137, %v2007, 0.0
      %s2039 = scalar_lea.vmem %s5, 64
      %v2040 = vld [vmem:[%s2039] sm:$0xff]
      %v2041 = vld [vmem:[%s2039 + $0x8] sm:$0xff]
      %v2042 = vld [vmem:[%s2039 + $0x10] sm:$0xff]
      %v2043 = vld [vmem:[%s2039 + $0x18] sm:$0xff]
      %s2044 = scalar_lea.vmem %s5, 96
      %v2045 = vld [vmem:[%s2044] sm:$0xff]
      %v2046 = vld [vmem:[%s2044 + $0x8] sm:$0xff]
      %v2047 = vld [vmem:[%s2044 + $0x10] sm:$0xff]
      %v2048 = vld [vmem:[%s2044 + $0x18] sm:$0xff]
      %v2050 = vsel %vm1198, %v1962, 0
      %v2053 = vsel %vm1198, %v1963, 0
      %v2056 = vsel %vm1198, %v1964, 0
      %v2059 = vsel %vm1198, %v1965, 0
      %v2062 = vsel %vm1198, %v1966, 0
      %v2065 = vsel %vm1198, %v1967, 0
      %v2068 = vsel %vm1198, %v1968, 0
      %v2071 = vsel %vm1198, %v1969, 0
      %v2074 = vsel %vm1198, %v1970, 0
      %v2077 = vsel %vm1198, %v1971, 0
      %v2080 = vsel %vm1198, %v1972, 0
      %v2083 = vsel %vm1198, %v1973, 0
      %v2086 = vsel %vm1198, %v1974, 0
      %v2089 = vsel %vm1198, %v1975, 0
      %v2092 = vsel %vm1198, %v1976, 0
      %v2095 = vsel %vm1198, %v1977, 0
      %2097 = vmatpush.msra.mxu0 0.0
      %2098 = vmatpush.msra.mxu0 0.0
      %2099 = vmatpush.msra.mxu0 0.0
      %2100 = vmatpush.msra.mxu0 0.0
      %2101 = vmatpush.msra.mxu0 0.0
      %2102 = vmatpush.msra.mxu0 0.0
      %2103 = vmatpush.msra.mxu0 0.0
      %2104 = vmatpush.msra.mxu0 0.0
      %2105 = vmatpush.msra.mxu0 0.0
      %2106 = vmatpush.msra.mxu0 0.0
      %2107 = vmatpush.msra.mxu0 0.0
      %2108 = vmatpush.msra.mxu0 0.0
      %2109 = vmatpush.msra.mxu0 %v2048
      %2110 = vmatpush.msra.mxu0 %v2047
      %2111 = vmatpush.msra.mxu0 %v2046
      %2112 = vmatpush.msra.mxu0 %v2045
      %2113 = vmatmul.f32.gmra.mxu0 %v2050
      %v2114 = vpop.f32.mrf.mxu0
      %v2115 = vadd.f32 0.0, %v2114
      %2116 = vmatmul.f32.gmra.mxu0 %v2053
      %v2117 = vpop.f32.mrf.mxu0
      %v2118 = vadd.f32 0.0, %v2117
      %2119 = vmatmul.f32.gmra.mxu0 %v2056
      %v2120 = vpop.f32.mrf.mxu0
      %v2121 = vadd.f32 0.0, %v2120
      %2122 = vmatmul.f32.gmra.mxu0 %v2059
      %v2123 = vpop.f32.mrf.mxu0
      %v2124 = vadd.f32 0.0, %v2123
      %2125 = vmatmul.f32.gmra.mxu0 %v2062
      %v2126 = vpop.f32.mrf.mxu0
      %v2127 = vadd.f32 0.0, %v2126
      %2128 = vmatmul.f32.gmra.mxu0 %v2065
      %v2129 = vpop.f32.mrf.mxu0
      %v2130 = vadd.f32 0.0, %v2129
      %2131 = vmatmul.f32.gmra.mxu0 %v2068
      %v2132 = vpop.f32.mrf.mxu0
      %v2133 = vadd.f32 0.0, %v2132
      %2134 = vmatmul.f32.gmra.mxu0 %v2071
      %v2135 = vpop.f32.mrf.mxu0
      %v2136 = vadd.f32 0.0, %v2135
      %2137 = vmatmul.f32.gmra.mxu0 %v2074
      %v2138 = vpop.f32.mrf.mxu0
      %v2139 = vadd.f32 0.0, %v2138
      %2140 = vmatmul.f32.gmra.mxu0 %v2077
      %v2141 = vpop.f32.mrf.mxu0
      %v2142 = vadd.f32 0.0, %v2141
      %2143 = vmatmul.f32.gmra.mxu0 %v2080
      %v2144 = vpop.f32.mrf.mxu0
      %v2145 = vadd.f32 0.0, %v2144
      %2146 = vmatmul.f32.gmra.mxu0 %v2083
      %v2147 = vpop.f32.mrf.mxu0
      %v2148 = vadd.f32 0.0, %v2147
      %2149 = vmatmul.f32.gmra.mxu0 %v2086
      %v2150 = vpop.f32.mrf.mxu0
      %v2151 = vadd.f32 0.0, %v2150
      %2152 = vmatmul.f32.gmra.mxu0 %v2089
      %v2153 = vpop.f32.mrf.mxu0
      %v2154 = vadd.f32 0.0, %v2153
      %2155 = vmatmul.f32.gmra.mxu0 %v2092
      %v2156 = vpop.f32.mrf.mxu0
      %v2157 = vadd.f32 0.0, %v2156
      %2158 = vmatmul.f32.gmra.mxu0 %v2095
      %v2159 = vpop.f32.mrf.mxu0
      %v2160 = vadd.f32 0.0, %v2159
      %2161 = vdwg.mxu0
      %v2163 = vsel %vm1198, %v2023, 0
      %v2166 = vsel %vm1198, %v2024, 0
      %v2169 = vsel %vm1198, %v2025, 0
      %v2172 = vsel %vm1198, %v2026, 0
      %v2175 = vsel %vm1198, %v2027, 0
      %v2178 = vsel %vm1198, %v2028, 0
      %v2181 = vsel %vm1198, %v2029, 0
      %v2184 = vsel %vm1198, %v2030, 0
      %v2187 = vsel %vm1198, %v2031, 0
      %v2190 = vsel %vm1198, %v2032, 0
      %v2193 = vsel %vm1198, %v2033, 0
      %v2196 = vsel %vm1198, %v2034, 0
      %v2199 = vsel %vm1198, %v2035, 0
      %v2202 = vsel %vm1198, %v2036, 0
      %v2205 = vsel %vm1198, %v2037, 0
      %v2208 = vsel %vm1198, %v2038, 0
      %2210 = vmatpush.msra.mxu0 0.0
      %2211 = vmatpush.msra.mxu0 0.0
      %2212 = vmatpush.msra.mxu0 0.0
      %2213 = vmatpush.msra.mxu0 0.0
      %2214 = vmatpush.msra.mxu0 0.0
      %2215 = vmatpush.msra.mxu0 0.0
      %2216 = vmatpush.msra.mxu0 0.0
      %2217 = vmatpush.msra.mxu0 0.0
      %2218 = vmatpush.msra.mxu0 0.0
      %2219 = vmatpush.msra.mxu0 0.0
      %2220 = vmatpush.msra.mxu0 0.0
      %2221 = vmatpush.msra.mxu0 0.0
      %2222 = vmatpush.msra.mxu0 %v2043
      %2223 = vmatpush.msra.mxu0 %v2042
      %2224 = vmatpush.msra.mxu0 %v2041
      %2225 = vmatpush.msra.mxu0 %v2040
      %2226 = vmatmul.f32.gmra.mxu0 %v2163
      %v2227 = vpop.f32.mrf.mxu0
      %v2228 = vadd.f32 %v2115, %v2227
      %2229 = vmatmul.f32.gmra.mxu0 %v2166
      %v2230 = vpop.f32.mrf.mxu0
      %v2231 = vadd.f32 %v2118, %v2230
      %2232 = vmatmul.f32.gmra.mxu0 %v2169
      %v2233 = vpop.f32.mrf.mxu0
      %v2234 = vadd.f32 %v2121, %v2233
      %2235 = vmatmul.f32.gmra.mxu0 %v2172
      %v2236 = vpop.f32.mrf.mxu0
      %v2237 = vadd.f32 %v2124, %v2236
      %2238 = vmatmul.f32.gmra.mxu0 %v2175
      %v2239 = vpop.f32.mrf.mxu0
      %v2240 = vadd.f32 %v2127, %v2239
      %2241 = vmatmul.f32.gmra.mxu0 %v2178
      %v2242 = vpop.f32.mrf.mxu0
      %v2243 = vadd.f32 %v2130, %v2242
      %2244 = vmatmul.f32.gmra.mxu0 %v2181
      %v2245 = vpop.f32.mrf.mxu0
      %v2246 = vadd.f32 %v2133, %v2245
      %2247 = vmatmul.f32.gmra.mxu0 %v2184
      %v2248 = vpop.f32.mrf.mxu0
      %v2249 = vadd.f32 %v2136, %v2248
      %2250 = vmatmul.f32.gmra.mxu0 %v2187
      %v2251 = vpop.f32.mrf.mxu0
      %v2252 = vadd.f32 %v2139, %v2251
      %2253 = vmatmul.f32.gmra.mxu0 %v2190
      %v2254 = vpop.f32.mrf.mxu0
      %v2255 = vadd.f32 %v2142, %v2254
      %2256 = vmatmul.f32.gmra.mxu0 %v2193
      %v2257 = vpop.f32.mrf.mxu0
      %v2258 = vadd.f32 %v2145, %v2257
      %2259 = vmatmul.f32.gmra.mxu0 %v2196
      %v2260 = vpop.f32.mrf.mxu0
      %v2261 = vadd.f32 %v2148, %v2260
      %2262 = vmatmul.f32.gmra.mxu0 %v2199
      %v2263 = vpop.f32.mrf.mxu0
      %v2264 = vadd.f32 %v2151, %v2263
      %2265 = vmatmul.f32.gmra.mxu0 %v2202
      %v2266 = vpop.f32.mrf.mxu0
      %v2267 = vadd.f32 %v2154, %v2266
      %2268 = vmatmul.f32.gmra.mxu0 %v2205
      %v2269 = vpop.f32.mrf.mxu0
      %v2270 = vadd.f32 %v2157, %v2269
      %2271 = vmatmul.f32.gmra.mxu0 %v2208
      %v2272 = vpop.f32.mrf.mxu0
      %v2273 = vadd.f32 %v2160, %v2272
      %2274 = vdwg.mxu0
      %v2275 = vld [vmem:[%s6 + $0x1] sm:$0x1]
      %v2276 = vperm.slane %v2275, 0
      %v2277 = vadd.f32 %v2228, %v2276
      %v2278 = vadd.f32 %v2231, %v2276
      %v2279 = vadd.f32 %v2234, %v2276
      %v2280 = vadd.f32 %v2237, %v2276
      %v2281 = vadd.f32 %v2240, %v2276
      %v2282 = vadd.f32 %v2243, %v2276
      %v2283 = vadd.f32 %v2246, %v2276
      %v2284 = vadd.f32 %v2249, %v2276
      %v2285 = vadd.f32 %v2252, %v2276
      %v2286 = vadd.f32 %v2255, %v2276
      %v2287 = vadd.f32 %v2258, %v2276
      %v2288 = vadd.f32 %v2261, %v2276
      %v2289 = vadd.f32 %v2264, %v2276
      %v2290 = vadd.f32 %v2267, %v2276
      %v2291 = vadd.f32 %v2270, %v2276
      %v2292 = vadd.f32 %v2273, %v2276
      %v2293 = vtanh.pop %v2277
      %v2294 = vtanh.pop %v2278
      %v2295 = vtanh.pop %v2279
      %v2296 = vtanh.pop %v2280
      %v2297 = vtanh.pop %v2281
      %v2298 = vtanh.pop %v2282
      %v2299 = vtanh.pop %v2283
      %v2300 = vtanh.pop %v2284
      %v2301 = vtanh.pop %v2285
      %v2302 = vtanh.pop %v2286
      %v2303 = vtanh.pop %v2287
      %v2304 = vtanh.pop %v2288
      %v2305 = vtanh.pop %v2289
      %v2306 = vtanh.pop %v2290
      %v2307 = vtanh.pop %v2291
      %v2308 = vtanh.pop %v2292
      %v2309 = vxor.u32 %v2277, 2147483648
      %v2310 = vxor.u32 %v2278, 2147483648
      %v2311 = vxor.u32 %v2279, 2147483648
      %v2312 = vxor.u32 %v2280, 2147483648
      %v2313 = vxor.u32 %v2281, 2147483648
      %v2314 = vxor.u32 %v2282, 2147483648
      %v2315 = vxor.u32 %v2283, 2147483648
      %v2316 = vxor.u32 %v2284, 2147483648
      %v2317 = vxor.u32 %v2285, 2147483648
      %v2318 = vxor.u32 %v2286, 2147483648
      %v2319 = vxor.u32 %v2287, 2147483648
      %v2320 = vxor.u32 %v2288, 2147483648
      %v2321 = vxor.u32 %v2289, 2147483648
      %v2322 = vxor.u32 %v2290, 2147483648
      %v2323 = vxor.u32 %v2291, 2147483648
      %v2324 = vxor.u32 %v2292, 2147483648
      %v2325 = vmul.f32 %v2309, 1.442695
      %v2326 = vpow.pop %v2325
      %v2327 = vmul.f32 %v2310, 1.442695
      %v2328 = vpow.pop %v2327
      %v2329 = vmul.f32 %v2311, 1.442695
      %v2330 = vpow.pop %v2329
      %v2331 = vmul.f32 %v2312, 1.442695
      %v2332 = vpow.pop %v2331
      %v2333 = vmul.f32 %v2313, 1.442695
      %v2334 = vpow.pop %v2333
      %v2335 = vmul.f32 %v2314, 1.442695
      %v2336 = vpow.pop %v2335
      %v2337 = vmul.f32 %v2315, 1.442695
      %v2338 = vpow.pop %v2337
      %v2339 = vmul.f32 %v2316, 1.442695
      %v2340 = vpow.pop %v2339
      %v2341 = vmul.f32 %v2317, 1.442695
      %v2342 = vpow.pop %v2341
      %v2343 = vmul.f32 %v2318, 1.442695
      %v2344 = vpow.pop %v2343
      %v2345 = vmul.f32 %v2319, 1.442695
      %v2346 = vpow.pop %v2345
      %v2347 = vmul.f32 %v2320, 1.442695
      %v2348 = vpow.pop %v2347
      %v2349 = vmul.f32 %v2321, 1.442695
      %v2350 = vpow.pop %v2349
      %v2351 = vmul.f32 %v2322, 1.442695
      %v2352 = vpow.pop %v2351
      %v2353 = vmul.f32 %v2323, 1.442695
      %v2354 = vpow.pop %v2353
      %v2355 = vmul.f32 %v2324, 1.442695
      %v2356 = vpow.pop %v2355
      %v2357 = vadd.f32 %v2326, 1.0
      %v2358 = vadd.f32 %v2328, 1.0
      %v2359 = vadd.f32 %v2330, 1.0
      %v2360 = vadd.f32 %v2332, 1.0
      %v2361 = vadd.f32 %v2334, 1.0
      %v2362 = vadd.f32 %v2336, 1.0
      %v2363 = vadd.f32 %v2338, 1.0
      %v2364 = vadd.f32 %v2340, 1.0
      %v2365 = vadd.f32 %v2342, 1.0
      %v2366 = vadd.f32 %v2344, 1.0
      %v2367 = vadd.f32 %v2346, 1.0
      %v2368 = vadd.f32 %v2348, 1.0
      %v2369 = vadd.f32 %v2350, 1.0
      %v2370 = vadd.f32 %v2352, 1.0
      %v2371 = vadd.f32 %v2354, 1.0
      %v2372 = vadd.f32 %v2356, 1.0
      %v2373 = vrcp.pop %v2357
      %v2374 = vmul.f32 %v2357, %v2373
      %v2375 = vsub.f32 1.0, %v2374
      %v2376 = vmul.f32 %v2373, %v2375
      %v2377 = vadd.f32 %v2373, %v2376
      %vm2378 = vweird.f32 %v2357
      %vm2379 = vweird.f32 %v2373
      %vm2380 = vmor %vm2378, %vm2379
      %v2381 = vsel %vm2380, %v2373, %v2377
      %v2382 = vand.u32 2147483647, %v2357
      %vm2383 = vcmp.eq.f32.partialorder %v2382, 8.507059e+37
      %v2384 = vand.u32 %v2357, 2147483648
      %v2385 = vor.u32 1.1754944e-38, %v2384
      %v2386 = vsel %vm2383, %v2385, %v2381
      %v2387 = vmul.f32 1.0, %v2386
      %v2388 = vrcp.pop %v2358
      %v2389 = vmul.f32 %v2358, %v2388
      %v2390 = vsub.f32 1.0, %v2389
      %v2391 = vmul.f32 %v2388, %v2390
      %v2392 = vadd.f32 %v2388, %v2391
      %vm2393 = vweird.f32 %v2358
      %vm2394 = vweird.f32 %v2388
      %vm2395 = vmor %vm2393, %vm2394
      %v2396 = vsel %vm2395, %v2388, %v2392
      %v2397 = vand.u32 2147483647, %v2358
      %vm2398 = vcmp.eq.f32.partialorder %v2397, 8.507059e+37
      %v2399 = vand.u32 %v2358, 2147483648
      %v2400 = vor.u32 1.1754944e-38, %v2399
      %v2401 = vsel %vm2398, %v2400, %v2396
      %v2402 = vmul.f32 1.0, %v2401
      %v2403 = vrcp.pop %v2359
      %v2404 = vmul.f32 %v2359, %v2403
      %v2405 = vsub.f32 1.0, %v2404
      %v2406 = vmul.f32 %v2403, %v2405
      %v2407 = vadd.f32 %v2403, %v2406
      %vm2408 = vweird.f32 %v2359
      %vm2409 = vweird.f32 %v2403
      %vm2410 = vmor %vm2408, %vm2409
      %v2411 = vsel %vm2410, %v2403, %v2407
      %v2412 = vand.u32 2147483647, %v2359
      %vm2413 = vcmp.eq.f32.partialorder %v2412, 8.507059e+37
      %v2414 = vand.u32 %v2359, 2147483648
      %v2415 = vor.u32 1.1754944e-38, %v2414
      %v2416 = vsel %vm2413, %v2415, %v2411
      %v2417 = vmul.f32 1.0, %v2416
      %v2418 = vrcp.pop %v2360
      %v2419 = vmul.f32 %v2360, %v2418
      %v2420 = vsub.f32 1.0, %v2419
      %v2421 = vmul.f32 %v2418, %v2420
      %v2422 = vadd.f32 %v2418, %v2421
      %vm2423 = vweird.f32 %v2360
      %vm2424 = vweird.f32 %v2418
      %vm2425 = vmor %vm2423, %vm2424
      %v2426 = vsel %vm2425, %v2418, %v2422
      %v2427 = vand.u32 2147483647, %v2360
      %vm2428 = vcmp.eq.f32.partialorder %v2427, 8.507059e+37
      %v2429 = vand.u32 %v2360, 2147483648
      %v2430 = vor.u32 1.1754944e-38, %v2429
      %v2431 = vsel %vm2428, %v2430, %v2426
      %v2432 = vmul.f32 1.0, %v2431
      %v2433 = vrcp.pop %v2361
      %v2434 = vmul.f32 %v2361, %v2433
      %v2435 = vsub.f32 1.0, %v2434
      %v2436 = vmul.f32 %v2433, %v2435
      %v2437 = vadd.f32 %v2433, %v2436
      %vm2438 = vweird.f32 %v2361
      %vm2439 = vweird.f32 %v2433
      %vm2440 = vmor %vm2438, %vm2439
      %v2441 = vsel %vm2440, %v2433, %v2437
      %v2442 = vand.u32 2147483647, %v2361
      %vm2443 = vcmp.eq.f32.partialorder %v2442, 8.507059e+37
      %v2444 = vand.u32 %v2361, 2147483648
      %v2445 = vor.u32 1.1754944e-38, %v2444
      %v2446 = vsel %vm2443, %v2445, %v2441
      %v2447 = vmul.f32 1.0, %v2446
      %v2448 = vrcp.pop %v2362
      %v2449 = vmul.f32 %v2362, %v2448
      %v2450 = vsub.f32 1.0, %v2449
      %v2451 = vmul.f32 %v2448, %v2450
      %v2452 = vadd.f32 %v2448, %v2451
      %vm2453 = vweird.f32 %v2362
      %vm2454 = vweird.f32 %v2448
      %vm2455 = vmor %vm2453, %vm2454
      %v2456 = vsel %vm2455, %v2448, %v2452
      %v2457 = vand.u32 2147483647, %v2362
      %vm2458 = vcmp.eq.f32.partialorder %v2457, 8.507059e+37
      %v2459 = vand.u32 %v2362, 2147483648
      %v2460 = vor.u32 1.1754944e-38, %v2459
      %v2461 = vsel %vm2458, %v2460, %v2456
      %v2462 = vmul.f32 1.0, %v2461
      %v2463 = vrcp.pop %v2363
      %v2464 = vmul.f32 %v2363, %v2463
      %v2465 = vsub.f32 1.0, %v2464
      %v2466 = vmul.f32 %v2463, %v2465
      %v2467 = vadd.f32 %v2463, %v2466
      %vm2468 = vweird.f32 %v2363
      %vm2469 = vweird.f32 %v2463
      %vm2470 = vmor %vm2468, %vm2469
      %v2471 = vsel %vm2470, %v2463, %v2467
      %v2472 = vand.u32 2147483647, %v2363
      %vm2473 = vcmp.eq.f32.partialorder %v2472, 8.507059e+37
      %v2474 = vand.u32 %v2363, 2147483648
      %v2475 = vor.u32 1.1754944e-38, %v2474
      %v2476 = vsel %vm2473, %v2475, %v2471
      %v2477 = vmul.f32 1.0, %v2476
      %v2478 = vrcp.pop %v2364
      %v2479 = vmul.f32 %v2364, %v2478
      %v2480 = vsub.f32 1.0, %v2479
      %v2481 = vmul.f32 %v2478, %v2480
      %v2482 = vadd.f32 %v2478, %v2481
      %vm2483 = vweird.f32 %v2364
      %vm2484 = vweird.f32 %v2478
      %vm2485 = vmor %vm2483, %vm2484
      %v2486 = vsel %vm2485, %v2478, %v2482
      %v2487 = vand.u32 2147483647, %v2364
      %vm2488 = vcmp.eq.f32.partialorder %v2487, 8.507059e+37
      %v2489 = vand.u32 %v2364, 2147483648
      %v2490 = vor.u32 1.1754944e-38, %v2489
      %v2491 = vsel %vm2488, %v2490, %v2486
      %v2492 = vmul.f32 1.0, %v2491
      %v2493 = vrcp.pop %v2365
      %v2494 = vmul.f32 %v2365, %v2493
      %v2495 = vsub.f32 1.0, %v2494
      %v2496 = vmul.f32 %v2493, %v2495
      %v2497 = vadd.f32 %v2493, %v2496
      %vm2498 = vweird.f32 %v2365
      %vm2499 = vweird.f32 %v2493
      %vm2500 = vmor %vm2498, %vm2499
      %v2501 = vsel %vm2500, %v2493, %v2497
      %v2502 = vand.u32 2147483647, %v2365
      %vm2503 = vcmp.eq.f32.partialorder %v2502, 8.507059e+37
      %v2504 = vand.u32 %v2365, 2147483648
      %v2505 = vor.u32 1.1754944e-38, %v2504
      %v2506 = vsel %vm2503, %v2505, %v2501
      %v2507 = vmul.f32 1.0, %v2506
      %v2508 = vrcp.pop %v2366
      %v2509 = vmul.f32 %v2366, %v2508
      %v2510 = vsub.f32 1.0, %v2509
      %v2511 = vmul.f32 %v2508, %v2510
      %v2512 = vadd.f32 %v2508, %v2511
      %vm2513 = vweird.f32 %v2366
      %vm2514 = vweird.f32 %v2508
      %vm2515 = vmor %vm2513, %vm2514
      %v2516 = vsel %vm2515, %v2508, %v2512
      %v2517 = vand.u32 2147483647, %v2366
      %vm2518 = vcmp.eq.f32.partialorder %v2517, 8.507059e+37
      %v2519 = vand.u32 %v2366, 2147483648
      %v2520 = vor.u32 1.1754944e-38, %v2519
      %v2521 = vsel %vm2518, %v2520, %v2516
      %v2522 = vmul.f32 1.0, %v2521
      %v2523 = vrcp.pop %v2367
      %v2524 = vmul.f32 %v2367, %v2523
      %v2525 = vsub.f32 1.0, %v2524
      %v2526 = vmul.f32 %v2523, %v2525
      %v2527 = vadd.f32 %v2523, %v2526
      %vm2528 = vweird.f32 %v2367
      %vm2529 = vweird.f32 %v2523
      %vm2530 = vmor %vm2528, %vm2529
      %v2531 = vsel %vm2530, %v2523, %v2527
      %v2532 = vand.u32 2147483647, %v2367
      %vm2533 = vcmp.eq.f32.partialorder %v2532, 8.507059e+37
      %v2534 = vand.u32 %v2367, 2147483648
      %v2535 = vor.u32 1.1754944e-38, %v2534
      %v2536 = vsel %vm2533, %v2535, %v2531
      %v2537 = vmul.f32 1.0, %v2536
      %v2538 = vrcp.pop %v2368
      %v2539 = vmul.f32 %v2368, %v2538
      %v2540 = vsub.f32 1.0, %v2539
      %v2541 = vmul.f32 %v2538, %v2540
      %v2542 = vadd.f32 %v2538, %v2541
      %vm2543 = vweird.f32 %v2368
      %vm2544 = vweird.f32 %v2538
      %vm2545 = vmor %vm2543, %vm2544
      %v2546 = vsel %vm2545, %v2538, %v2542
      %v2547 = vand.u32 2147483647, %v2368
      %vm2548 = vcmp.eq.f32.partialorder %v2547, 8.507059e+37
      %v2549 = vand.u32 %v2368, 2147483648
      %v2550 = vor.u32 1.1754944e-38, %v2549
      %v2551 = vsel %vm2548, %v2550, %v2546
      %v2552 = vmul.f32 1.0, %v2551
      %v2553 = vrcp.pop %v2369
      %v2554 = vmul.f32 %v2369, %v2553
      %v2555 = vsub.f32 1.0, %v2554
      %v2556 = vmul.f32 %v2553, %v2555
      %v2557 = vadd.f32 %v2553, %v2556
      %vm2558 = vweird.f32 %v2369
      %vm2559 = vweird.f32 %v2553
      %vm2560 = vmor %vm2558, %vm2559
      %v2561 = vsel %vm2560, %v2553, %v2557
      %v2562 = vand.u32 2147483647, %v2369
      %vm2563 = vcmp.eq.f32.partialorder %v2562, 8.507059e+37
      %v2564 = vand.u32 %v2369, 2147483648
      %v2565 = vor.u32 1.1754944e-38, %v2564
      %v2566 = vsel %vm2563, %v2565, %v2561
      %v2567 = vmul.f32 1.0, %v2566
      %v2568 = vrcp.pop %v2370
      %v2569 = vmul.f32 %v2370, %v2568
      %v2570 = vsub.f32 1.0, %v2569
      %v2571 = vmul.f32 %v2568, %v2570
      %v2572 = vadd.f32 %v2568, %v2571
      %vm2573 = vweird.f32 %v2370
      %vm2574 = vweird.f32 %v2568
      %vm2575 = vmor %vm2573, %vm2574
      %v2576 = vsel %vm2575, %v2568, %v2572
      %v2577 = vand.u32 2147483647, %v2370
      %vm2578 = vcmp.eq.f32.partialorder %v2577, 8.507059e+37
      %v2579 = vand.u32 %v2370, 2147483648
      %v2580 = vor.u32 1.1754944e-38, %v2579
      %v2581 = vsel %vm2578, %v2580, %v2576
      %v2582 = vmul.f32 1.0, %v2581
      %v2583 = vrcp.pop %v2371
      %v2584 = vmul.f32 %v2371, %v2583
      %v2585 = vsub.f32 1.0, %v2584
      %v2586 = vmul.f32 %v2583, %v2585
      %v2587 = vadd.f32 %v2583, %v2586
      %vm2588 = vweird.f32 %v2371
      %vm2589 = vweird.f32 %v2583
      %vm2590 = vmor %vm2588, %vm2589
      %v2591 = vsel %vm2590, %v2583, %v2587
      %v2592 = vand.u32 2147483647, %v2371
      %vm2593 = vcmp.eq.f32.partialorder %v2592, 8.507059e+37
      %v2594 = vand.u32 %v2371, 2147483648
      %v2595 = vor.u32 1.1754944e-38, %v2594
      %v2596 = vsel %vm2593, %v2595, %v2591
      %v2597 = vmul.f32 1.0, %v2596
      %v2598 = vrcp.pop %v2372
      %v2599 = vmul.f32 %v2372, %v2598
      %v2600 = vsub.f32 1.0, %v2599
      %v2601 = vmul.f32 %v2598, %v2600
      %v2602 = vadd.f32 %v2598, %v2601
      %vm2603 = vweird.f32 %v2372
      %vm2604 = vweird.f32 %v2598
      %vm2605 = vmor %vm2603, %vm2604
      %v2606 = vsel %vm2605, %v2598, %v2602
      %v2607 = vand.u32 2147483647, %v2372
      %vm2608 = vcmp.eq.f32.partialorder %v2607, 8.507059e+37
      %v2609 = vand.u32 %v2372, 2147483648
      %v2610 = vor.u32 1.1754944e-38, %v2609
      %v2611 = vsel %vm2608, %v2610, %v2606
      %v2612 = vmul.f32 1.0, %v2611
      %2629 = vrot.lane.b32.xlu0 %v2387, 96
      %v2630 = vpop.permute.xlu0 %2629
      %2631 = vrot.lane.b32.xlu0 %v2402, 96
      %v2632 = vpop.permute.xlu0 %2631
      %2633 = vrot.lane.b32.xlu0 %v2417, 96
      %v2634 = vpop.permute.xlu0 %2633
      %2635 = vrot.lane.b32.xlu0 %v2432, 96
      %v2636 = vpop.permute.xlu0 %2635
      %2637 = vrot.lane.b32.xlu0 %v2447, 96
      %v2638 = vpop.permute.xlu0 %2637
      %2639 = vrot.lane.b32.xlu0 %v2462, 96
      %v2640 = vpop.permute.xlu0 %2639
      %2641 = vrot.lane.b32.xlu0 %v2477, 96
      %v2642 = vpop.permute.xlu0 %2641
      %2643 = vrot.lane.b32.xlu0 %v2492, 96
      %v2644 = vpop.permute.xlu0 %2643
      %2645 = vrot.lane.b32.xlu0 %v2507, 96
      %v2646 = vpop.permute.xlu0 %2645
      %2647 = vrot.lane.b32.xlu0 %v2522, 96
      %v2648 = vpop.permute.xlu0 %2647
      %2649 = vrot.lane.b32.xlu0 %v2537, 96
      %v2650 = vpop.permute.xlu0 %2649
      %2651 = vrot.lane.b32.xlu0 %v2552, 96
      %v2652 = vpop.permute.xlu0 %2651
      %2653 = vrot.lane.b32.xlu0 %v2567, 96
      %v2654 = vpop.permute.xlu0 %2653
      %2655 = vrot.lane.b32.xlu0 %v2582, 96
      %v2656 = vpop.permute.xlu0 %2655
      %2657 = vrot.lane.b32.xlu0 %v2597, 96
      %v2658 = vpop.permute.xlu0 %2657
      %2659 = vrot.lane.b32.xlu0 %v2612, 96
      %v2660 = vpop.permute.xlu0 %2659
      %v2677 = vmul.f32 %v2293, %v2630
      %v2678 = vmul.f32 %v2294, %v2632
      %v2679 = vmul.f32 %v2295, %v2634
      %v2680 = vmul.f32 %v2296, %v2636
      %v2681 = vmul.f32 %v2297, %v2638
      %v2682 = vmul.f32 %v2298, %v2640
      %v2683 = vmul.f32 %v2299, %v2642
      %v2684 = vmul.f32 %v2300, %v2644
      %v2685 = vmul.f32 %v2301, %v2646
      %v2686 = vmul.f32 %v2302, %v2648
      %v2687 = vmul.f32 %v2303, %v2650
      %v2688 = vmul.f32 %v2304, %v2652
      %v2689 = vmul.f32 %v2305, %v2654
      %v2690 = vmul.f32 %v2306, %v2656
      %v2691 = vmul.f32 %v2307, %v2658
      %v2692 = vmul.f32 %v2308, %v2660
      %s2693 = scalar_lea.vmem %s7, 32
      %v2694 = vld [vmem:[%s2693] sm:$0xff]
      %v2695 = vld [vmem:[%s2693 + $0x8] sm:$0xff]
      %v2696 = vld [vmem:[%s2693 + $0x10] sm:$0xff]
      %v2697 = vld [vmem:[%s2693 + $0x18] sm:$0xff]
      %v2698 = vld [vmem:[%s8 + $0x1] sm:$0x1]
      %v2699 = vperm.slane %v2698, 0
      %v2701 = vsel %vm1198, %v2677, 0
      %v2704 = vsel %vm1198, %v2678, 0
      %v2707 = vsel %vm1198, %v2679, 0
      %v2710 = vsel %vm1198, %v2680, 0
      %v2713 = vsel %vm1198, %v2681, 0
      %v2716 = vsel %vm1198, %v2682, 0
      %v2719 = vsel %vm1198, %v2683, 0
      %v2722 = vsel %vm1198, %v2684, 0
      %v2725 = vsel %vm1198, %v2685, 0
      %v2728 = vsel %vm1198, %v2686, 0
      %v2731 = vsel %vm1198, %v2687, 0
      %v2734 = vsel %vm1198, %v2688, 0
      %v2737 = vsel %vm1198, %v2689, 0
      %v2740 = vsel %vm1198, %v2690, 0
      %v2743 = vsel %vm1198, %v2691, 0
      %v2746 = vsel %vm1198, %v2692, 0
      %2748 = vmatpush.msra.mxu0 0.0
      %2749 = vmatpush.msra.mxu0 0.0
      %2750 = vmatpush.msra.mxu0 0.0
      %2751 = vmatpush.msra.mxu0 0.0
      %2752 = vmatpush.msra.mxu0 0.0
      %2753 = vmatpush.msra.mxu0 0.0
      %2754 = vmatpush.msra.mxu0 0.0
      %2755 = vmatpush.msra.mxu0 0.0
      %2756 = vmatpush.msra.mxu0 0.0
      %2757 = vmatpush.msra.mxu0 0.0
      %2758 = vmatpush.msra.mxu0 0.0
      %2759 = vmatpush.msra.mxu0 0.0
      %2760 = vmatpush.msra.mxu0 %v2697
      %2761 = vmatpush.msra.mxu0 %v2696
      %2762 = vmatpush.msra.mxu0 %v2695
      %2763 = vmatpush.msra.mxu0 %v2694
      %2764 = vmatmul.f32.gmra.mxu0 %v2701
      %v2765 = vpop.f32.mrf.mxu0
      %v2766 = vadd.f32 %v2699, %v2765
      %2767 = vmatmul.f32.gmra.mxu0 %v2704
      %v2768 = vpop.f32.mrf.mxu0
      %v2769 = vadd.f32 %v2699, %v2768
      %2770 = vmatmul.f32.gmra.mxu0 %v2707
      %v2771 = vpop.f32.mrf.mxu0
      %v2772 = vadd.f32 %v2699, %v2771
      %2773 = vmatmul.f32.gmra.mxu0 %v2710
      %v2774 = vpop.f32.mrf.mxu0
      %v2775 = vadd.f32 %v2699, %v2774
      %2776 = vmatmul.f32.gmra.mxu0 %v2713
      %v2777 = vpop.f32.mrf.mxu0
      %v2778 = vadd.f32 %v2699, %v2777
      %2779 = vmatmul.f32.gmra.mxu0 %v2716
      %v2780 = vpop.f32.mrf.mxu0
      %v2781 = vadd.f32 %v2699, %v2780
      %2782 = vmatmul.f32.gmra.mxu0 %v2719
      %v2783 = vpop.f32.mrf.mxu0
      %v2784 = vadd.f32 %v2699, %v2783
      %2785 = vmatmul.f32.gmra.mxu0 %v2722
      %v2786 = vpop.f32.mrf.mxu0
      %v2787 = vadd.f32 %v2699, %v2786
      %2788 = vmatmul.f32.gmra.mxu0 %v2725
      %v2789 = vpop.f32.mrf.mxu0
      %v2790 = vadd.f32 %v2699, %v2789
      %2791 = vmatmul.f32.gmra.mxu0 %v2728
      %v2792 = vpop.f32.mrf.mxu0
      %v2793 = vadd.f32 %v2699, %v2792
      %2794 = vmatmul.f32.gmra.mxu0 %v2731
      %v2795 = vpop.f32.mrf.mxu0
      %v2796 = vadd.f32 %v2699, %v2795
      %2797 = vmatmul.f32.gmra.mxu0 %v2734
      %v2798 = vpop.f32.mrf.mxu0
      %v2799 = vadd.f32 %v2699, %v2798
      %2800 = vmatmul.f32.gmra.mxu0 %v2737
      %v2801 = vpop.f32.mrf.mxu0
      %v2802 = vadd.f32 %v2699, %v2801
      %2803 = vmatmul.f32.gmra.mxu0 %v2740
      %v2804 = vpop.f32.mrf.mxu0
      %v2805 = vadd.f32 %v2699, %v2804
      %2806 = vmatmul.f32.gmra.mxu0 %v2743
      %v2807 = vpop.f32.mrf.mxu0
      %v2808 = vadd.f32 %v2699, %v2807
      %2809 = vmatmul.f32.gmra.mxu0 %v2746
      %v2810 = vpop.f32.mrf.mxu0
      %v2811 = vadd.f32 %v2699, %v2810
      %2812 = vdwg.mxu0
      %v2813 = vadd.f32 %v2766, %v1962
      %v2814 = vadd.f32 %v2769, %v1963
      %v2815 = vadd.f32 %v2772, %v1964
      %v2816 = vadd.f32 %v2775, %v1965
      %v2817 = vadd.f32 %v2778, %v1966
      %v2818 = vadd.f32 %v2781, %v1967
      %v2819 = vadd.f32 %v2784, %v1968
      %v2820 = vadd.f32 %v2787, %v1969
      %v2821 = vadd.f32 %v2790, %v1970
      %v2822 = vadd.f32 %v2793, %v1971
      %v2823 = vadd.f32 %v2796, %v1972
      %v2824 = vadd.f32 %v2799, %v1973
      %v2825 = vadd.f32 %v2802, %v1974
      %v2826 = vadd.f32 %v2805, %v1975
      %v2827 = vadd.f32 %v2808, %v1976
      %v2828 = vadd.f32 %v2811, %v1977
      %v2829 = vmax.f32 %v2769, 0.0
      %v2830 = vmax.f32 %v2775, 0.0
      %v2831 = vmax.f32 %v2781, 0.0
      %v2832 = vmax.f32 %v2787, 0.0
      %v2833 = vmax.f32 %v2793, 0.0
      %v2834 = vmax.f32 %v2799, 0.0
      %v2835 = vmax.f32 %v2805, 0.0
      %v2836 = vmax.f32 %v2811, 0.0
      %s2837 = scalar_lea.vmem %s9, 32
      %v2838 = vld [vmem:[%s2837] sm:$0xff]
      %v2839 = vld [vmem:[%s2837 + $0x8] sm:$0xff]
      %v2840 = vld [vmem:[%s2837 + $0x10] sm:$0xff]
      %v2841 = vld [vmem:[%s2837 + $0x18] sm:$0xff]
      %v2850 = vrot.slane %v2829, 7
      %v2851 = vrot.slane %v2830, 6
      %v2852 = vsel %vm904, %v2851, %v2850
      %v2853 = vrot.slane %v2831, 5
      %v2854 = vsel %vm906, %v2853, %v2852
      %v2855 = vrot.slane %v2832, 4
      %v2856 = vsel %vm908, %v2855, %v2854
      %v2857 = vrot.slane %v2833, 3
      %v2858 = vsel %vm910, %v2857, %v2856
      %v2859 = vrot.slane %v2834, 2
      %v2860 = vsel %vm912, %v2859, %v2858
      %v2861 = vrot.slane %v2835, 1
      %v2862 = vsel %vm914, %v2861, %v2860
      %v2863 = vsel %vm916, %v2836, %v2862
      %2864 = vrot.lane.b32.xlu0 %v2863, 96
      %v2865 = vpop.permute.xlu0 %2864
      %v2866 = vsel %vm1198, %v2865, 0
      %2868 = vmatpush.msra.mxu0 0.0
      %2869 = vmatpush.msra.mxu0 0.0
      %2870 = vmatpush.msra.mxu0 0.0
      %2871 = vmatpush.msra.mxu0 0.0
      %2872 = vmatpush.msra.mxu0 0.0
      %2873 = vmatpush.msra.mxu0 0.0
      %2874 = vmatpush.msra.mxu0 0.0
      %2875 = vmatpush.msra.mxu0 0.0
      %2876 = vmatpush.msra.mxu0 0.0
      %2877 = vmatpush.msra.mxu0 0.0
      %2878 = vmatpush.msra.mxu0 0.0
      %2879 = vmatpush.msra.mxu0 0.0
      %2880 = vmatpush.msra.mxu0 %v2841
      %2881 = vmatpush.msra.mxu0 %v2840
      %2882 = vmatpush.msra.mxu0 %v2839
      %2883 = vmatpush.msra.mxu0 %v2838
      %2884 = vmatmul.f32.gmra.mxu0 %v2866
      %v2885 = vpop.f32.mrf.mxu0
      %v2886 = vadd.f32 0.0, %v2885
      %2887 = vdwg.mxu0
      %v2896 = vrot.slane %v1978, 7
      %v2897 = vrot.slane %v1979, 6
      %v2898 = vsel %vm904, %v2897, %v2896
      %v2899 = vrot.slane %v1980, 5
      %v2900 = vsel %vm906, %v2899, %v2898
      %v2901 = vrot.slane %v1981, 4
      %v2902 = vsel %vm908, %v2901, %v2900
      %v2903 = vrot.slane %v1982, 3
      %v2904 = vsel %vm910, %v2903, %v2902
      %v2905 = vrot.slane %v1983, 2
      %v2906 = vsel %vm912, %v2905, %v2904
      %v2907 = vrot.slane %v1984, 1
      %v2908 = vsel %vm914, %v2907, %v2906
      %v2909 = vsel %vm916, %v1985, %v2908
      %2910 = vrot.lane.b32.xlu0 %v2909, 96
      %v2911 = vpop.permute.xlu0 %2910
      %v2912 = vsel %vm1198, %v2911, 0
      %2914 = vmatpush.msra.mxu0 0.0
      %2915 = vmatpush.msra.mxu0 0.0
      %2916 = vmatpush.msra.mxu0 0.0
      %2917 = vmatpush.msra.mxu0 0.0
      %2918 = vmatpush.msra.mxu0 0.0
      %2919 = vmatpush.msra.mxu0 0.0
      %2920 = vmatpush.msra.mxu0 0.0
      %2921 = vmatpush.msra.mxu0 0.0
      %2922 = vmatpush.msra.mxu0 0.0
      %2923 = vmatpush.msra.mxu0 0.0
      %2924 = vmatpush.msra.mxu0 0.0
      %2925 = vmatpush.msra.mxu0 0.0
      %2926 = vmatpush.msra.mxu0 %v1989
      %2927 = vmatpush.msra.mxu0 %v1988
      %2928 = vmatpush.msra.mxu0 %v1987
      %2929 = vmatpush.msra.mxu0 %v1986
      %2930 = vmatmul.f32.gmra.mxu0 %v2912
      %v2931 = vpop.f32.mrf.mxu0
      %v2932 = vadd.f32 %v2886, %v2931
      %2933 = vdwg.mxu0
      %v2934 = vrot.slane %v2813, 4
      %v2935 = vrot.slane %v2814, 4
      %v2936 = vrot.slane %v2815, 4
      %v2937 = vrot.slane %v2816, 4
      %v2938 = vrot.slane %v2817, 4
      %v2939 = vrot.slane %v2818, 4
      %v2940 = vrot.slane %v2819, 4
      %v2941 = vrot.slane %v2820, 4
      %v2942 = vrot.slane %v2821, 4
      %v2943 = vrot.slane %v2822, 4
      %v2944 = vrot.slane %v2823, 4
      %v2945 = vrot.slane %v2824, 4
      %v2946 = vrot.slane %v2825, 4
      %v2947 = vrot.slane %v2826, 4
      %v2948 = vrot.slane %v2827, 4
      %v2949 = vrot.slane %v2828, 4
      %vm2950 = vcmp.lt.s32.totalorder %v1132, 4
      %v2951 = vsel %vm2950, %v2948, %v2949
      %v2952 = vsel %vm2950, %v2947, %v2948
      %v2953 = vsel %vm2950, %v2946, %v2947
      %v2954 = vsel %vm2950, %v2945, %v2946
      %v2955 = vsel %vm2950, %v2944, %v2945
      %v2956 = vsel %vm2950, %v2943, %v2944
      %v2957 = vsel %vm2950, %v2942, %v2943
      %v2958 = vsel %vm2950, %v2941, %v2942
      %v2959 = vsel %vm2950, %v2940, %v2941
      %v2960 = vsel %vm2950, %v2939, %v2940
      %v2961 = vsel %vm2950, %v2938, %v2939
      %v2962 = vsel %vm2950, %v2937, %v2938
      %v2963 = vsel %vm2950, %v2936, %v2937
      %v2964 = vsel %vm2950, %v2935, %v2936
      %v2965 = vsel %vm2950, %v2934, %v2935
      %v2966 = vsel %vm2950, %v2949, %v2934
      %v2967 = vsel %vm1138, %v2966, 0.0
      %v2968 = vsel %vm1139, %v2965, 0.0
      %v2969 = vsel %vm1138, %v2964, 0.0
      %v2970 = vsel %vm1139, %v2963, 0.0
      %v2971 = vsel %vm1138, %v2962, 0.0
      %v2972 = vsel %vm1139, %v2961, 0.0
      %v2973 = vsel %vm1138, %v2960, 0.0
      %v2974 = vsel %vm1139, %v2959, 0.0
      %v2975 = vsel %vm1138, %v2958, 0.0
      %v2976 = vsel %vm1139, %v2957, 0.0
      %v2977 = vsel %vm1138, %v2956, 0.0
      %v2978 = vsel %vm1139, %v2955, 0.0
      %v2979 = vsel %vm1138, %v2954, 0.0
      %v2980 = vsel %vm1139, %v2953, 0.0
      %v2981 = vsel %vm1138, %v2952, 0.0
      %v2982 = vsel %vm1139, %v2951, 0.0
      %s2983 = scalar_lea.vmem %s5, 128
      %v2984 = vld [vmem:[%s2983] sm:$0xff]
      %v2985 = vld [vmem:[%s2983 + $0x8] sm:$0xff]
      %v2986 = vld [vmem:[%s2983 + $0x10] sm:$0xff]
      %v2987 = vld [vmem:[%s2983 + $0x18] sm:$0xff]
      %s2988 = scalar_lea.vmem %s5, 160
      %v2989 = vld [vmem:[%s2988] sm:$0xff]
      %v2990 = vld [vmem:[%s2988 + $0x8] sm:$0xff]
      %v2991 = vld [vmem:[%s2988 + $0x10] sm:$0xff]
      %v2992 = vld [vmem:[%s2988 + $0x18] sm:$0xff]
      %v2994 = vsel %vm1198, %v2813, 0
      %v2997 = vsel %vm1198, %v2814, 0
      %v3000 = vsel %vm1198, %v2815, 0
      %v3003 = vsel %vm1198, %v2816, 0
      %v3006 = vsel %vm1198, %v2817, 0
      %v3009 = vsel %vm1198, %v2818, 0
      %v3012 = vsel %vm1198, %v2819, 0
      %v3015 = vsel %vm1198, %v2820, 0
      %v3018 = vsel %vm1198, %v2821, 0
      %v3021 = vsel %vm1198, %v2822, 0
      %v3024 = vsel %vm1198, %v2823, 0
      %v3027 = vsel %vm1198, %v2824, 0
      %v3030 = vsel %vm1198, %v2825, 0
      %v3033 = vsel %vm1198, %v2826, 0
      %v3036 = vsel %vm1198, %v2827, 0
      %v3039 = vsel %vm1198, %v2828, 0
      %3041 = vmatpush.msra.mxu0 0.0
      %3042 = vmatpush.msra.mxu0 0.0
      %3043 = vmatpush.msra.mxu0 0.0
      %3044 = vmatpush.msra.mxu0 0.0
      %3045 = vmatpush.msra.mxu0 0.0
      %3046 = vmatpush.msra.mxu0 0.0
      %3047 = vmatpush.msra.mxu0 0.0
      %3048 = vmatpush.msra.mxu0 0.0
      %3049 = vmatpush.msra.mxu0 0.0
      %3050 = vmatpush.msra.mxu0 0.0
      %3051 = vmatpush.msra.mxu0 0.0
      %3052 = vmatpush.msra.mxu0 0.0
      %3053 = vmatpush.msra.mxu0 %v2992
      %3054 = vmatpush.msra.mxu0 %v2991
      %3055 = vmatpush.msra.mxu0 %v2990
      %3056 = vmatpush.msra.mxu0 %v2989
      %3057 = vmatmul.f32.gmra.mxu0 %v2994
      %v3058 = vpop.f32.mrf.mxu0
      %v3059 = vadd.f32 0.0, %v3058
      %3060 = vmatmul.f32.gmra.mxu0 %v2997
      %v3061 = vpop.f32.mrf.mxu0
      %v3062 = vadd.f32 0.0, %v3061
      %3063 = vmatmul.f32.gmra.mxu0 %v3000
      %v3064 = vpop.f32.mrf.mxu0
      %v3065 = vadd.f32 0.0, %v3064
      %3066 = vmatmul.f32.gmra.mxu0 %v3003
      %v3067 = vpop.f32.mrf.mxu0
      %v3068 = vadd.f32 0.0, %v3067
      %3069 = vmatmul.f32.gmra.mxu0 %v3006
      %v3070 = vpop.f32.mrf.mxu0
      %v3071 = vadd.f32 0.0, %v3070
      %3072 = vmatmul.f32.gmra.mxu0 %v3009
      %v3073 = vpop.f32.mrf.mxu0
      %v3074 = vadd.f32 0.0, %v3073
      %3075 = vmatmul.f32.gmra.mxu0 %v3012
      %v3076 = vpop.f32.mrf.mxu0
      %v3077 = vadd.f32 0.0, %v3076
      %3078 = vmatmul.f32.gmra.mxu0 %v3015
      %v3079 = vpop.f32.mrf.mxu0
      %v3080 = vadd.f32 0.0, %v3079
      %3081 = vmatmul.f32.gmra.mxu0 %v3018
      %v3082 = vpop.f32.mrf.mxu0
      %v3083 = vadd.f32 0.0, %v3082
      %3084 = vmatmul.f32.gmra.mxu0 %v3021
      %v3085 = vpop.f32.mrf.mxu0
      %v3086 = vadd.f32 0.0, %v3085
      %3087 = vmatmul.f32.gmra.mxu0 %v3024
      %v3088 = vpop.f32.mrf.mxu0
      %v3089 = vadd.f32 0.0, %v3088
      %3090 = vmatmul.f32.gmra.mxu0 %v3027
      %v3091 = vpop.f32.mrf.mxu0
      %v3092 = vadd.f32 0.0, %v3091
      %3093 = vmatmul.f32.gmra.mxu0 %v3030
      %v3094 = vpop.f32.mrf.mxu0
      %v3095 = vadd.f32 0.0, %v3094
      %3096 = vmatmul.f32.gmra.mxu0 %v3033
      %v3097 = vpop.f32.mrf.mxu0
      %v3098 = vadd.f32 0.0, %v3097
      %3099 = vmatmul.f32.gmra.mxu0 %v3036
      %v3100 = vpop.f32.mrf.mxu0
      %v3101 = vadd.f32 0.0, %v3100
      %3102 = vmatmul.f32.gmra.mxu0 %v3039
      %v3103 = vpop.f32.mrf.mxu0
      %v3104 = vadd.f32 0.0, %v3103
      %3105 = vdwg.mxu0
      %v3107 = vsel %vm1198, %v2967, 0
      %v3110 = vsel %vm1198, %v2968, 0
      %v3113 = vsel %vm1198, %v2969, 0
      %v3116 = vsel %vm1198, %v2970, 0
      %v3119 = vsel %vm1198, %v2971, 0
      %v3122 = vsel %vm1198, %v2972, 0
      %v3125 = vsel %vm1198, %v2973, 0
      %v3128 = vsel %vm1198, %v2974, 0
      %v3131 = vsel %vm1198, %v2975, 0
      %v3134 = vsel %vm1198, %v2976, 0
      %v3137 = vsel %vm1198, %v2977, 0
      %v3140 = vsel %vm1198, %v2978, 0
      %v3143 = vsel %vm1198, %v2979, 0
      %v3146 = vsel %vm1198, %v2980, 0
      %v3149 = vsel %vm1198, %v2981, 0
      %v3152 = vsel %vm1198, %v2982, 0
      %3154 = vmatpush.msra.mxu0 0.0
      %3155 = vmatpush.msra.mxu0 0.0
      %3156 = vmatpush.msra.mxu0 0.0
      %3157 = vmatpush.msra.mxu0 0.0
      %3158 = vmatpush.msra.mxu0 0.0
      %3159 = vmatpush.msra.mxu0 0.0
      %3160 = vmatpush.msra.mxu0 0.0
      %3161 = vmatpush.msra.mxu0 0.0
      %3162 = vmatpush.msra.mxu0 0.0
      %3163 = vmatpush.msra.mxu0 0.0
      %3164 = vmatpush.msra.mxu0 0.0
      %3165 = vmatpush.msra.mxu0 0.0
      %3166 = vmatpush.msra.mxu0 %v2987
      %3167 = vmatpush.msra.mxu0 %v2986
      %3168 = vmatpush.msra.mxu0 %v2985
      %3169 = vmatpush.msra.mxu0 %v2984
      %3170 = vmatmul.f32.gmra.mxu0 %v3107
      %v3171 = vpop.f32.mrf.mxu0
      %v3172 = vadd.f32 %v3059, %v3171
      %3173 = vmatmul.f32.gmra.mxu0 %v3110
      %v3174 = vpop.f32.mrf.mxu0
      %v3175 = vadd.f32 %v3062, %v3174
      %3176 = vmatmul.f32.gmra.mxu0 %v3113
      %v3177 = vpop.f32.mrf.mxu0
      %v3178 = vadd.f32 %v3065, %v3177
      %3179 = vmatmul.f32.gmra.mxu0 %v3116
      %v3180 = vpop.f32.mrf.mxu0
      %v3181 = vadd.f32 %v3068, %v3180
      %3182 = vmatmul.f32.gmra.mxu0 %v3119
      %v3183 = vpop.f32.mrf.mxu0
      %v3184 = vadd.f32 %v3071, %v3183
      %3185 = vmatmul.f32.gmra.mxu0 %v3122
      %v3186 = vpop.f32.mrf.mxu0
      %v3187 = vadd.f32 %v3074, %v3186
      %3188 = vmatmul.f32.gmra.mxu0 %v3125
      %v3189 = vpop.f32.mrf.mxu0
      %v3190 = vadd.f32 %v3077, %v3189
      %3191 = vmatmul.f32.gmra.mxu0 %v3128
      %v3192 = vpop.f32.mrf.mxu0
      %v3193 = vadd.f32 %v3080, %v3192
      %3194 = vmatmul.f32.gmra.mxu0 %v3131
      %v3195 = vpop.f32.mrf.mxu0
      %v3196 = vadd.f32 %v3083, %v3195
      %3197 = vmatmul.f32.gmra.mxu0 %v3134
      %v3198 = vpop.f32.mrf.mxu0
      %v3199 = vadd.f32 %v3086, %v3198
      %3200 = vmatmul.f32.gmra.mxu0 %v3137
      %v3201 = vpop.f32.mrf.mxu0
      %v3202 = vadd.f32 %v3089, %v3201
      %3203 = vmatmul.f32.gmra.mxu0 %v3140
      %v3204 = vpop.f32.mrf.mxu0
      %v3205 = vadd.f32 %v3092, %v3204
      %3206 = vmatmul.f32.gmra.mxu0 %v3143
      %v3207 = vpop.f32.mrf.mxu0
      %v3208 = vadd.f32 %v3095, %v3207
      %3209 = vmatmul.f32.gmra.mxu0 %v3146
      %v3210 = vpop.f32.mrf.mxu0
      %v3211 = vadd.f32 %v3098, %v3210
      %3212 = vmatmul.f32.gmra.mxu0 %v3149
      %v3213 = vpop.f32.mrf.mxu0
      %v3214 = vadd.f32 %v3101, %v3213
      %3215 = vmatmul.f32.gmra.mxu0 %v3152
      %v3216 = vpop.f32.mrf.mxu0
      %v3217 = vadd.f32 %v3104, %v3216
      %3218 = vdwg.mxu0
      %v3219 = vld [vmem:[%s6 + $0x2] sm:$0x1]
      %v3220 = vperm.slane %v3219, 0
      %v3221 = vadd.f32 %v3172, %v3220
      %v3222 = vadd.f32 %v3175, %v3220
      %v3223 = vadd.f32 %v3178, %v3220
      %v3224 = vadd.f32 %v3181, %v3220
      %v3225 = vadd.f32 %v3184, %v3220
      %v3226 = vadd.f32 %v3187, %v3220
      %v3227 = vadd.f32 %v3190, %v3220
      %v3228 = vadd.f32 %v3193, %v3220
      %v3229 = vadd.f32 %v3196, %v3220
      %v3230 = vadd.f32 %v3199, %v3220
      %v3231 = vadd.f32 %v3202, %v3220
      %v3232 = vadd.f32 %v3205, %v3220
      %v3233 = vadd.f32 %v3208, %v3220
      %v3234 = vadd.f32 %v3211, %v3220
      %v3235 = vadd.f32 %v3214, %v3220
      %v3236 = vadd.f32 %v3217, %v3220
      %v3237 = vtanh.pop %v3221
      %v3238 = vtanh.pop %v3222
      %v3239 = vtanh.pop %v3223
      %v3240 = vtanh.pop %v3224
      %v3241 = vtanh.pop %v3225
      %v3242 = vtanh.pop %v3226
      %v3243 = vtanh.pop %v3227
      %v3244 = vtanh.pop %v3228
      %v3245 = vtanh.pop %v3229
      %v3246 = vtanh.pop %v3230
      %v3247 = vtanh.pop %v3231
      %v3248 = vtanh.pop %v3232
      %v3249 = vtanh.pop %v3233
      %v3250 = vtanh.pop %v3234
      %v3251 = vtanh.pop %v3235
      %v3252 = vtanh.pop %v3236
      %v3253 = vxor.u32 %v3221, 2147483648
      %v3254 = vxor.u32 %v3222, 2147483648
      %v3255 = vxor.u32 %v3223, 2147483648
      %v3256 = vxor.u32 %v3224, 2147483648
      %v3257 = vxor.u32 %v3225, 2147483648
      %v3258 = vxor.u32 %v3226, 2147483648
      %v3259 = vxor.u32 %v3227, 2147483648
      %v3260 = vxor.u32 %v3228, 2147483648
      %v3261 = vxor.u32 %v3229, 2147483648
      %v3262 = vxor.u32 %v3230, 2147483648
      %v3263 = vxor.u32 %v3231, 2147483648
      %v3264 = vxor.u32 %v3232, 2147483648
      %v3265 = vxor.u32 %v3233, 2147483648
      %v3266 = vxor.u32 %v3234, 2147483648
      %v3267 = vxor.u32 %v3235, 2147483648
      %v3268 = vxor.u32 %v3236, 2147483648
      %v3269 = vmul.f32 %v3253, 1.442695
      %v3270 = vpow.pop %v3269
      %v3271 = vmul.f32 %v3254, 1.442695
      %v3272 = vpow.pop %v3271
      %v3273 = vmul.f32 %v3255, 1.442695
      %v3274 = vpow.pop %v3273
      %v3275 = vmul.f32 %v3256, 1.442695
      %v3276 = vpow.pop %v3275
      %v3277 = vmul.f32 %v3257, 1.442695
      %v3278 = vpow.pop %v3277
      %v3279 = vmul.f32 %v3258, 1.442695
      %v3280 = vpow.pop %v3279
      %v3281 = vmul.f32 %v3259, 1.442695
      %v3282 = vpow.pop %v3281
      %v3283 = vmul.f32 %v3260, 1.442695
      %v3284 = vpow.pop %v3283
      %v3285 = vmul.f32 %v3261, 1.442695
      %v3286 = vpow.pop %v3285
      %v3287 = vmul.f32 %v3262, 1.442695
      %v3288 = vpow.pop %v3287
      %v3289 = vmul.f32 %v3263, 1.442695
      %v3290 = vpow.pop %v3289
      %v3291 = vmul.f32 %v3264, 1.442695
      %v3292 = vpow.pop %v3291
      %v3293 = vmul.f32 %v3265, 1.442695
      %v3294 = vpow.pop %v3293
      %v3295 = vmul.f32 %v3266, 1.442695
      %v3296 = vpow.pop %v3295
      %v3297 = vmul.f32 %v3267, 1.442695
      %v3298 = vpow.pop %v3297
      %v3299 = vmul.f32 %v3268, 1.442695
      %v3300 = vpow.pop %v3299
      %v3301 = vadd.f32 %v3270, 1.0
      %v3302 = vadd.f32 %v3272, 1.0
      %v3303 = vadd.f32 %v3274, 1.0
      %v3304 = vadd.f32 %v3276, 1.0
      %v3305 = vadd.f32 %v3278, 1.0
      %v3306 = vadd.f32 %v3280, 1.0
      %v3307 = vadd.f32 %v3282, 1.0
      %v3308 = vadd.f32 %v3284, 1.0
      %v3309 = vadd.f32 %v3286, 1.0
      %v3310 = vadd.f32 %v3288, 1.0
      %v3311 = vadd.f32 %v3290, 1.0
      %v3312 = vadd.f32 %v3292, 1.0
      %v3313 = vadd.f32 %v3294, 1.0
      %v3314 = vadd.f32 %v3296, 1.0
      %v3315 = vadd.f32 %v3298, 1.0
      %v3316 = vadd.f32 %v3300, 1.0
      %v3317 = vrcp.pop %v3301
      %v3318 = vmul.f32 %v3301, %v3317
      %v3319 = vsub.f32 1.0, %v3318
      %v3320 = vmul.f32 %v3317, %v3319
      %v3321 = vadd.f32 %v3317, %v3320
      %vm3322 = vweird.f32 %v3301
      %vm3323 = vweird.f32 %v3317
      %vm3324 = vmor %vm3322, %vm3323
      %v3325 = vsel %vm3324, %v3317, %v3321
      %v3326 = vand.u32 2147483647, %v3301
      %vm3327 = vcmp.eq.f32.partialorder %v3326, 8.507059e+37
      %v3328 = vand.u32 %v3301, 2147483648
      %v3329 = vor.u32 1.1754944e-38, %v3328
      %v3330 = vsel %vm3327, %v3329, %v3325
      %v3331 = vmul.f32 1.0, %v3330
      %v3332 = vrcp.pop %v3302
      %v3333 = vmul.f32 %v3302, %v3332
      %v3334 = vsub.f32 1.0, %v3333
      %v3335 = vmul.f32 %v3332, %v3334
      %v3336 = vadd.f32 %v3332, %v3335
      %vm3337 = vweird.f32 %v3302
      %vm3338 = vweird.f32 %v3332
      %vm3339 = vmor %vm3337, %vm3338
      %v3340 = vsel %vm3339, %v3332, %v3336
      %v3341 = vand.u32 2147483647, %v3302
      %vm3342 = vcmp.eq.f32.partialorder %v3341, 8.507059e+37
      %v3343 = vand.u32 %v3302, 2147483648
      %v3344 = vor.u32 1.1754944e-38, %v3343
      %v3345 = vsel %vm3342, %v3344, %v3340
      %v3346 = vmul.f32 1.0, %v3345
      %v3347 = vrcp.pop %v3303
      %v3348 = vmul.f32 %v3303, %v3347
      %v3349 = vsub.f32 1.0, %v3348
      %v3350 = vmul.f32 %v3347, %v3349
      %v3351 = vadd.f32 %v3347, %v3350
      %vm3352 = vweird.f32 %v3303
      %vm3353 = vweird.f32 %v3347
      %vm3354 = vmor %vm3352, %vm3353
      %v3355 = vsel %vm3354, %v3347, %v3351
      %v3356 = vand.u32 2147483647, %v3303
      %vm3357 = vcmp.eq.f32.partialorder %v3356, 8.507059e+37
      %v3358 = vand.u32 %v3303, 2147483648
      %v3359 = vor.u32 1.1754944e-38, %v3358
      %v3360 = vsel %vm3357, %v3359, %v3355
      %v3361 = vmul.f32 1.0, %v3360
      %v3362 = vrcp.pop %v3304
      %v3363 = vmul.f32 %v3304, %v3362
      %v3364 = vsub.f32 1.0, %v3363
      %v3365 = vmul.f32 %v3362, %v3364
      %v3366 = vadd.f32 %v3362, %v3365
      %vm3367 = vweird.f32 %v3304
      %vm3368 = vweird.f32 %v3362
      %vm3369 = vmor %vm3367, %vm3368
      %v3370 = vsel %vm3369, %v3362, %v3366
      %v3371 = vand.u32 2147483647, %v3304
      %vm3372 = vcmp.eq.f32.partialorder %v3371, 8.507059e+37
      %v3373 = vand.u32 %v3304, 2147483648
      %v3374 = vor.u32 1.1754944e-38, %v3373
      %v3375 = vsel %vm3372, %v3374, %v3370
      %v3376 = vmul.f32 1.0, %v3375
      %v3377 = vrcp.pop %v3305
      %v3378 = vmul.f32 %v3305, %v3377
      %v3379 = vsub.f32 1.0, %v3378
      %v3380 = vmul.f32 %v3377, %v3379
      %v3381 = vadd.f32 %v3377, %v3380
      %vm3382 = vweird.f32 %v3305
      %vm3383 = vweird.f32 %v3377
      %vm3384 = vmor %vm3382, %vm3383
      %v3385 = vsel %vm3384, %v3377, %v3381
      %v3386 = vand.u32 2147483647, %v3305
      %vm3387 = vcmp.eq.f32.partialorder %v3386, 8.507059e+37
      %v3388 = vand.u32 %v3305, 2147483648
      %v3389 = vor.u32 1.1754944e-38, %v3388
      %v3390 = vsel %vm3387, %v3389, %v3385
      %v3391 = vmul.f32 1.0, %v3390
      %v3392 = vrcp.pop %v3306
      %v3393 = vmul.f32 %v3306, %v3392
      %v3394 = vsub.f32 1.0, %v3393
      %v3395 = vmul.f32 %v3392, %v3394
      %v3396 = vadd.f32 %v3392, %v3395
      %vm3397 = vweird.f32 %v3306
      %vm3398 = vweird.f32 %v3392
      %vm3399 = vmor %vm3397, %vm3398
      %v3400 = vsel %vm3399, %v3392, %v3396
      %v3401 = vand.u32 2147483647, %v3306
      %vm3402 = vcmp.eq.f32.partialorder %v3401, 8.507059e+37
      %v3403 = vand.u32 %v3306, 2147483648
      %v3404 = vor.u32 1.1754944e-38, %v3403
      %v3405 = vsel %vm3402, %v3404, %v3400
      %v3406 = vmul.f32 1.0, %v3405
      %v3407 = vrcp.pop %v3307
      %v3408 = vmul.f32 %v3307, %v3407
      %v3409 = vsub.f32 1.0, %v3408
      %v3410 = vmul.f32 %v3407, %v3409
      %v3411 = vadd.f32 %v3407, %v3410
      %vm3412 = vweird.f32 %v3307
      %vm3413 = vweird.f32 %v3407
      %vm3414 = vmor %vm3412, %vm3413
      %v3415 = vsel %vm3414, %v3407, %v3411
      %v3416 = vand.u32 2147483647, %v3307
      %vm3417 = vcmp.eq.f32.partialorder %v3416, 8.507059e+37
      %v3418 = vand.u32 %v3307, 2147483648
      %v3419 = vor.u32 1.1754944e-38, %v3418
      %v3420 = vsel %vm3417, %v3419, %v3415
      %v3421 = vmul.f32 1.0, %v3420
      %v3422 = vrcp.pop %v3308
      %v3423 = vmul.f32 %v3308, %v3422
      %v3424 = vsub.f32 1.0, %v3423
      %v3425 = vmul.f32 %v3422, %v3424
      %v3426 = vadd.f32 %v3422, %v3425
      %vm3427 = vweird.f32 %v3308
      %vm3428 = vweird.f32 %v3422
      %vm3429 = vmor %vm3427, %vm3428
      %v3430 = vsel %vm3429, %v3422, %v3426
      %v3431 = vand.u32 2147483647, %v3308
      %vm3432 = vcmp.eq.f32.partialorder %v3431, 8.507059e+37
      %v3433 = vand.u32 %v3308, 2147483648
      %v3434 = vor.u32 1.1754944e-38, %v3433
      %v3435 = vsel %vm3432, %v3434, %v3430
      %v3436 = vmul.f32 1.0, %v3435
      %v3437 = vrcp.pop %v3309
      %v3438 = vmul.f32 %v3309, %v3437
      %v3439 = vsub.f32 1.0, %v3438
      %v3440 = vmul.f32 %v3437, %v3439
      %v3441 = vadd.f32 %v3437, %v3440
      %vm3442 = vweird.f32 %v3309
      %vm3443 = vweird.f32 %v3437
      %vm3444 = vmor %vm3442, %vm3443
      %v3445 = vsel %vm3444, %v3437, %v3441
      %v3446 = vand.u32 2147483647, %v3309
      %vm3447 = vcmp.eq.f32.partialorder %v3446, 8.507059e+37
      %v3448 = vand.u32 %v3309, 2147483648
      %v3449 = vor.u32 1.1754944e-38, %v3448
      %v3450 = vsel %vm3447, %v3449, %v3445
      %v3451 = vmul.f32 1.0, %v3450
      %v3452 = vrcp.pop %v3310
      %v3453 = vmul.f32 %v3310, %v3452
      %v3454 = vsub.f32 1.0, %v3453
      %v3455 = vmul.f32 %v3452, %v3454
      %v3456 = vadd.f32 %v3452, %v3455
      %vm3457 = vweird.f32 %v3310
      %vm3458 = vweird.f32 %v3452
      %vm3459 = vmor %vm3457, %vm3458
      %v3460 = vsel %vm3459, %v3452, %v3456
      %v3461 = vand.u32 2147483647, %v3310
      %vm3462 = vcmp.eq.f32.partialorder %v3461, 8.507059e+37
      %v3463 = vand.u32 %v3310, 2147483648
      %v3464 = vor.u32 1.1754944e-38, %v3463
      %v3465 = vsel %vm3462, %v3464, %v3460
      %v3466 = vmul.f32 1.0, %v3465
      %v3467 = vrcp.pop %v3311
      %v3468 = vmul.f32 %v3311, %v3467
      %v3469 = vsub.f32 1.0, %v3468
      %v3470 = vmul.f32 %v3467, %v3469
      %v3471 = vadd.f32 %v3467, %v3470
      %vm3472 = vweird.f32 %v3311
      %vm3473 = vweird.f32 %v3467
      %vm3474 = vmor %vm3472, %vm3473
      %v3475 = vsel %vm3474, %v3467, %v3471
      %v3476 = vand.u32 2147483647, %v3311
      %vm3477 = vcmp.eq.f32.partialorder %v3476, 8.507059e+37
      %v3478 = vand.u32 %v3311, 2147483648
      %v3479 = vor.u32 1.1754944e-38, %v3478
      %v3480 = vsel %vm3477, %v3479, %v3475
      %v3481 = vmul.f32 1.0, %v3480
      %v3482 = vrcp.pop %v3312
      %v3483 = vmul.f32 %v3312, %v3482
      %v3484 = vsub.f32 1.0, %v3483
      %v3485 = vmul.f32 %v3482, %v3484
      %v3486 = vadd.f32 %v3482, %v3485
      %vm3487 = vweird.f32 %v3312
      %vm3488 = vweird.f32 %v3482
      %vm3489 = vmor %vm3487, %vm3488
      %v3490 = vsel %vm3489, %v3482, %v3486
      %v3491 = vand.u32 2147483647, %v3312
      %vm3492 = vcmp.eq.f32.partialorder %v3491, 8.507059e+37
      %v3493 = vand.u32 %v3312, 2147483648
      %v3494 = vor.u32 1.1754944e-38, %v3493
      %v3495 = vsel %vm3492, %v3494, %v3490
      %v3496 = vmul.f32 1.0, %v3495
      %v3497 = vrcp.pop %v3313
      %v3498 = vmul.f32 %v3313, %v3497
      %v3499 = vsub.f32 1.0, %v3498
      %v3500 = vmul.f32 %v3497, %v3499
      %v3501 = vadd.f32 %v3497, %v3500
      %vm3502 = vweird.f32 %v3313
      %vm3503 = vweird.f32 %v3497
      %vm3504 = vmor %vm3502, %vm3503
      %v3505 = vsel %vm3504, %v3497, %v3501
      %v3506 = vand.u32 2147483647, %v3313
      %vm3507 = vcmp.eq.f32.partialorder %v3506, 8.507059e+37
      %v3508 = vand.u32 %v3313, 2147483648
      %v3509 = vor.u32 1.1754944e-38, %v3508
      %v3510 = vsel %vm3507, %v3509, %v3505
      %v3511 = vmul.f32 1.0, %v3510
      %v3512 = vrcp.pop %v3314
      %v3513 = vmul.f32 %v3314, %v3512
      %v3514 = vsub.f32 1.0, %v3513
      %v3515 = vmul.f32 %v3512, %v3514
      %v3516 = vadd.f32 %v3512, %v3515
      %vm3517 = vweird.f32 %v3314
      %vm3518 = vweird.f32 %v3512
      %vm3519 = vmor %vm3517, %vm3518
      %v3520 = vsel %vm3519, %v3512, %v3516
      %v3521 = vand.u32 2147483647, %v3314
      %vm3522 = vcmp.eq.f32.partialorder %v3521, 8.507059e+37
      %v3523 = vand.u32 %v3314, 2147483648
      %v3524 = vor.u32 1.1754944e-38, %v3523
      %v3525 = vsel %vm3522, %v3524, %v3520
      %v3526 = vmul.f32 1.0, %v3525
      %v3527 = vrcp.pop %v3315
      %v3528 = vmul.f32 %v3315, %v3527
      %v3529 = vsub.f32 1.0, %v3528
      %v3530 = vmul.f32 %v3527, %v3529
      %v3531 = vadd.f32 %v3527, %v3530
      %vm3532 = vweird.f32 %v3315
      %vm3533 = vweird.f32 %v3527
      %vm3534 = vmor %vm3532, %vm3533
      %v3535 = vsel %vm3534, %v3527, %v3531
      %v3536 = vand.u32 2147483647, %v3315
      %vm3537 = vcmp.eq.f32.partialorder %v3536, 8.507059e+37
      %v3538 = vand.u32 %v3315, 2147483648
      %v3539 = vor.u32 1.1754944e-38, %v3538
      %v3540 = vsel %vm3537, %v3539, %v3535
      %v3541 = vmul.f32 1.0, %v3540
      %v3542 = vrcp.pop %v3316
      %v3543 = vmul.f32 %v3316, %v3542
      %v3544 = vsub.f32 1.0, %v3543
      %v3545 = vmul.f32 %v3542, %v3544
      %v3546 = vadd.f32 %v3542, %v3545
      %vm3547 = vweird.f32 %v3316
      %vm3548 = vweird.f32 %v3542
      %vm3549 = vmor %vm3547, %vm3548
      %v3550 = vsel %vm3549, %v3542, %v3546
      %v3551 = vand.u32 2147483647, %v3316
      %vm3552 = vcmp.eq.f32.partialorder %v3551, 8.507059e+37
      %v3553 = vand.u32 %v3316, 2147483648
      %v3554 = vor.u32 1.1754944e-38, %v3553
      %v3555 = vsel %vm3552, %v3554, %v3550
      %v3556 = vmul.f32 1.0, %v3555
      %3573 = vrot.lane.b32.xlu0 %v3331, 96
      %v3574 = vpop.permute.xlu0 %3573
      %3575 = vrot.lane.b32.xlu0 %v3346, 96
      %v3576 = vpop.permute.xlu0 %3575
      %3577 = vrot.lane.b32.xlu0 %v3361, 96
      %v3578 = vpop.permute.xlu0 %3577
      %3579 = vrot.lane.b32.xlu0 %v3376, 96
      %v3580 = vpop.permute.xlu0 %3579
      %3581 = vrot.lane.b32.xlu0 %v3391, 96
      %v3582 = vpop.permute.xlu0 %3581
      %3583 = vrot.lane.b32.xlu0 %v3406, 96
      %v3584 = vpop.permute.xlu0 %3583
      %3585 = vrot.lane.b32.xlu0 %v3421, 96
      %v3586 = vpop.permute.xlu0 %3585
      %3587 = vrot.lane.b32.xlu0 %v3436, 96
      %v3588 = vpop.permute.xlu0 %3587
      %3589 = vrot.lane.b32.xlu0 %v3451, 96
      %v3590 = vpop.permute.xlu0 %3589
      %3591 = vrot.lane.b32.xlu0 %v3466, 96
      %v3592 = vpop.permute.xlu0 %3591
      %3593 = vrot.lane.b32.xlu0 %v3481, 96
      %v3594 = vpop.permute.xlu0 %3593
      %3595 = vrot.lane.b32.xlu0 %v3496, 96
      %v3596 = vpop.permute.xlu0 %3595
      %3597 = vrot.lane.b32.xlu0 %v3511, 96
      %v3598 = vpop.permute.xlu0 %3597
      %3599 = vrot.lane.b32.xlu0 %v3526, 96
      %v3600 = vpop.permute.xlu0 %3599
      %3601 = vrot.lane.b32.xlu0 %v3541, 96
      %v3602 = vpop.permute.xlu0 %3601
      %3603 = vrot.lane.b32.xlu0 %v3556, 96
      %v3604 = vpop.permute.xlu0 %3603
      %v3621 = vmul.f32 %v3237, %v3574
      %v3622 = vmul.f32 %v3238, %v3576
      %v3623 = vmul.f32 %v3239, %v3578
      %v3624 = vmul.f32 %v3240, %v3580
      %v3625 = vmul.f32 %v3241, %v3582
      %v3626 = vmul.f32 %v3242, %v3584
      %v3627 = vmul.f32 %v3243, %v3586
      %v3628 = vmul.f32 %v3244, %v3588
      %v3629 = vmul.f32 %v3245, %v3590
      %v3630 = vmul.f32 %v3246, %v3592
      %v3631 = vmul.f32 %v3247, %v3594
      %v3632 = vmul.f32 %v3248, %v3596
      %v3633 = vmul.f32 %v3249, %v3598
      %v3634 = vmul.f32 %v3250, %v3600
      %v3635 = vmul.f32 %v3251, %v3602
      %v3636 = vmul.f32 %v3252, %v3604
      %s3637 = scalar_lea.vmem %s7, 64
      %v3638 = vld [vmem:[%s3637] sm:$0xff]
      %v3639 = vld [vmem:[%s3637 + $0x8] sm:$0xff]
      %v3640 = vld [vmem:[%s3637 + $0x10] sm:$0xff]
      %v3641 = vld [vmem:[%s3637 + $0x18] sm:$0xff]
      %v3642 = vld [vmem:[%s8 + $0x2] sm:$0x1]
      %v3643 = vperm.slane %v3642, 0
      %v3645 = vsel %vm1198, %v3621, 0
      %v3648 = vsel %vm1198, %v3622, 0
      %v3651 = vsel %vm1198, %v3623, 0
      %v3654 = vsel %vm1198, %v3624, 0
      %v3657 = vsel %vm1198, %v3625, 0
      %v3660 = vsel %vm1198, %v3626, 0
      %v3663 = vsel %vm1198, %v3627, 0
      %v3666 = vsel %vm1198, %v3628, 0
      %v3669 = vsel %vm1198, %v3629, 0
      %v3672 = vsel %vm1198, %v3630, 0
      %v3675 = vsel %vm1198, %v3631, 0
      %v3678 = vsel %vm1198, %v3632, 0
      %v3681 = vsel %vm1198, %v3633, 0
      %v3684 = vsel %vm1198, %v3634, 0
      %v3687 = vsel %vm1198, %v3635, 0
      %v3690 = vsel %vm1198, %v3636, 0
      %3692 = vmatpush.msra.mxu0 0.0
      %3693 = vmatpush.msra.mxu0 0.0
      %3694 = vmatpush.msra.mxu0 0.0
      %3695 = vmatpush.msra.mxu0 0.0
      %3696 = vmatpush.msra.mxu0 0.0
      %3697 = vmatpush.msra.mxu0 0.0
      %3698 = vmatpush.msra.mxu0 0.0
      %3699 = vmatpush.msra.mxu0 0.0
      %3700 = vmatpush.msra.mxu0 0.0
      %3701 = vmatpush.msra.mxu0 0.0
      %3702 = vmatpush.msra.mxu0 0.0
      %3703 = vmatpush.msra.mxu0 0.0
      %3704 = vmatpush.msra.mxu0 %v3641
      %3705 = vmatpush.msra.mxu0 %v3640
      %3706 = vmatpush.msra.mxu0 %v3639
      %3707 = vmatpush.msra.mxu0 %v3638
      %3708 = vmatmul.f32.gmra.mxu0 %v3645
      %v3709 = vpop.f32.mrf.mxu0
      %v3710 = vadd.f32 %v3643, %v3709
      %3711 = vmatmul.f32.gmra.mxu0 %v3648
      %v3712 = vpop.f32.mrf.mxu0
      %v3713 = vadd.f32 %v3643, %v3712
      %3714 = vmatmul.f32.gmra.mxu0 %v3651
      %v3715 = vpop.f32.mrf.mxu0
      %v3716 = vadd.f32 %v3643, %v3715
      %3717 = vmatmul.f32.gmra.mxu0 %v3654
      %v3718 = vpop.f32.mrf.mxu0
      %v3719 = vadd.f32 %v3643, %v3718
      %3720 = vmatmul.f32.gmra.mxu0 %v3657
      %v3721 = vpop.f32.mrf.mxu0
      %v3722 = vadd.f32 %v3643, %v3721
      %3723 = vmatmul.f32.gmra.mxu0 %v3660
      %v3724 = vpop.f32.mrf.mxu0
      %v3725 = vadd.f32 %v3643, %v3724
      %3726 = vmatmul.f32.gmra.mxu0 %v3663
      %v3727 = vpop.f32.mrf.mxu0
      %v3728 = vadd.f32 %v3643, %v3727
      %3729 = vmatmul.f32.gmra.mxu0 %v3666
      %v3730 = vpop.f32.mrf.mxu0
      %v3731 = vadd.f32 %v3643, %v3730
      %3732 = vmatmul.f32.gmra.mxu0 %v3669
      %v3733 = vpop.f32.mrf.mxu0
      %v3734 = vadd.f32 %v3643, %v3733
      %3735 = vmatmul.f32.gmra.mxu0 %v3672
      %v3736 = vpop.f32.mrf.mxu0
      %v3737 = vadd.f32 %v3643, %v3736
      %3738 = vmatmul.f32.gmra.mxu0 %v3675
      %v3739 = vpop.f32.mrf.mxu0
      %v3740 = vadd.f32 %v3643, %v3739
      %3741 = vmatmul.f32.gmra.mxu0 %v3678
      %v3742 = vpop.f32.mrf.mxu0
      %v3743 = vadd.f32 %v3643, %v3742
      %3744 = vmatmul.f32.gmra.mxu0 %v3681
      %v3745 = vpop.f32.mrf.mxu0
      %v3746 = vadd.f32 %v3643, %v3745
      %3747 = vmatmul.f32.gmra.mxu0 %v3684
      %v3748 = vpop.f32.mrf.mxu0
      %v3749 = vadd.f32 %v3643, %v3748
      %3750 = vmatmul.f32.gmra.mxu0 %v3687
      %v3751 = vpop.f32.mrf.mxu0
      %v3752 = vadd.f32 %v3643, %v3751
      %3753 = vmatmul.f32.gmra.mxu0 %v3690
      %v3754 = vpop.f32.mrf.mxu0
      %v3755 = vadd.f32 %v3643, %v3754
      %3756 = vdwg.mxu0
      %v3757 = vadd.f32 %v3710, %v2813
      %v3758 = vadd.f32 %v3713, %v2814
      %v3759 = vadd.f32 %v3716, %v2815
      %v3760 = vadd.f32 %v3719, %v2816
      %v3761 = vadd.f32 %v3722, %v2817
      %v3762 = vadd.f32 %v3725, %v2818
      %v3763 = vadd.f32 %v3728, %v2819
      %v3764 = vadd.f32 %v3731, %v2820
      %v3765 = vadd.f32 %v3734, %v2821
      %v3766 = vadd.f32 %v3737, %v2822
      %v3767 = vadd.f32 %v3740, %v2823
      %v3768 = vadd.f32 %v3743, %v2824
      %v3769 = vadd.f32 %v3746, %v2825
      %v3770 = vadd.f32 %v3749, %v2826
      %v3771 = vadd.f32 %v3752, %v2827
      %v3772 = vadd.f32 %v3755, %v2828
      %v3773 = vmax.f32 %v3713, 0.0
      %v3774 = vmax.f32 %v3719, 0.0
      %v3775 = vmax.f32 %v3725, 0.0
      %v3776 = vmax.f32 %v3731, 0.0
      %v3777 = vmax.f32 %v3737, 0.0
      %v3778 = vmax.f32 %v3743, 0.0
      %v3779 = vmax.f32 %v3749, 0.0
      %v3780 = vmax.f32 %v3755, 0.0
      %s3781 = scalar_lea.vmem %s9, 64
      %v3782 = vld [vmem:[%s3781] sm:$0xff]
      %v3783 = vld [vmem:[%s3781 + $0x8] sm:$0xff]
      %v3784 = vld [vmem:[%s3781 + $0x10] sm:$0xff]
      %v3785 = vld [vmem:[%s3781 + $0x18] sm:$0xff]
      %v3794 = vrot.slane %v3773, 7
      %v3795 = vrot.slane %v3774, 6
      %v3796 = vsel %vm904, %v3795, %v3794
      %v3797 = vrot.slane %v3775, 5
      %v3798 = vsel %vm906, %v3797, %v3796
      %v3799 = vrot.slane %v3776, 4
      %v3800 = vsel %vm908, %v3799, %v3798
      %v3801 = vrot.slane %v3777, 3
      %v3802 = vsel %vm910, %v3801, %v3800
      %v3803 = vrot.slane %v3778, 2
      %v3804 = vsel %vm912, %v3803, %v3802
      %v3805 = vrot.slane %v3779, 1
      %v3806 = vsel %vm914, %v3805, %v3804
      %v3807 = vsel %vm916, %v3780, %v3806
      %3808 = vrot.lane.b32.xlu0 %v3807, 96
      %v3809 = vpop.permute.xlu0 %3808
      %v3810 = vsel %vm1198, %v3809, 0
      %3812 = vmatpush.msra.mxu0 0.0
      %3813 = vmatpush.msra.mxu0 0.0
      %3814 = vmatpush.msra.mxu0 0.0
      %3815 = vmatpush.msra.mxu0 0.0
      %3816 = vmatpush.msra.mxu0 0.0
      %3817 = vmatpush.msra.mxu0 0.0
      %3818 = vmatpush.msra.mxu0 0.0
      %3819 = vmatpush.msra.mxu0 0.0
      %3820 = vmatpush.msra.mxu0 0.0
      %3821 = vmatpush.msra.mxu0 0.0
      %3822 = vmatpush.msra.mxu0 0.0
      %3823 = vmatpush.msra.mxu0 0.0
      %3824 = vmatpush.msra.mxu0 %v3785
      %3825 = vmatpush.msra.mxu0 %v3784
      %3826 = vmatpush.msra.mxu0 %v3783
      %3827 = vmatpush.msra.mxu0 %v3782
      %3828 = vmatmul.f32.gmra.mxu0 %v3810
      %v3829 = vpop.f32.mrf.mxu0
      %v3830 = vadd.f32 0.0, %v3829
      %3831 = vdwg.mxu0
      %v3832 = vadd.f32 %v2932, %v3830
      %v3833 = vrot.slane %v3757, 7
      %v3834 = vrot.slane %v3758, 7
      %v3835 = vrot.slane %v3759, 7
      %v3836 = vrot.slane %v3760, 7
      %v3837 = vrot.slane %v3761, 7
      %v3838 = vrot.slane %v3762, 7
      %v3839 = vrot.slane %v3763, 7
      %v3840 = vrot.slane %v3764, 7
      %v3841 = vrot.slane %v3765, 7
      %v3842 = vrot.slane %v3766, 7
      %v3843 = vrot.slane %v3767, 7
      %v3844 = vrot.slane %v3768, 7
      %v3845 = vrot.slane %v3769, 7
      %v3846 = vrot.slane %v3770, 7
      %v3847 = vrot.slane %v3771, 7
      %v3848 = vrot.slane %v3772, 7
      %v3849 = vsel %vm1156, %v3847, %v3848
      %v3850 = vsel %vm1156, %v3846, %v3847
      %v3851 = vsel %vm1156, %v3845, %v3846
      %v3852 = vsel %vm1156, %v3844, %v3845
      %v3853 = vsel %vm1156, %v3843, %v3844
      %v3854 = vsel %vm1156, %v3842, %v3843
      %v3855 = vsel %vm1156, %v3841, %v3842
      %v3856 = vsel %vm1156, %v3840, %v3841
      %v3857 = vsel %vm1156, %v3839, %v3840
      %v3858 = vsel %vm1156, %v3838, %v3839
      %v3859 = vsel %vm1156, %v3837, %v3838
      %v3860 = vsel %vm1156, %v3836, %v3837
      %v3861 = vsel %vm1156, %v3835, %v3836
      %v3862 = vsel %vm1156, %v3834, %v3835
      %v3863 = vsel %vm1156, %v3833, %v3834
      %v3864 = vsel %vm1156, %v3848, %v3833
      %v3865 = vsel %vm1134, %v3864, 0.0
      %v3866 = vsel %vm1135, %v3863, 0.0
      %v3867 = vsel %vm1134, %v3862, 0.0
      %v3868 = vsel %vm1135, %v3861, 0.0
      %v3869 = vsel %vm1134, %v3860, 0.0
      %v3870 = vsel %vm1135, %v3859, 0.0
      %v3871 = vsel %vm1134, %v3858, 0.0
      %v3872 = vsel %vm1135, %v3857, 0.0
      %v3873 = vsel %vm1134, %v3856, 0.0
      %v3874 = vsel %vm1135, %v3855, 0.0
      %v3875 = vsel %vm1134, %v3854, 0.0
      %v3876 = vsel %vm1135, %v3853, 0.0
      %v3877 = vsel %vm1134, %v3852, 0.0
      %v3878 = vsel %vm1135, %v3851, 0.0
      %v3879 = vsel %vm1134, %v3850, 0.0
      %v3880 = vsel %vm1135, %v3849, 0.0
      %s3881 = scalar_lea.vmem %s5, 192
      %v3882 = vld [vmem:[%s3881] sm:$0xff]
      %v3883 = vld [vmem:[%s3881 + $0x8] sm:$0xff]
      %v3884 = vld [vmem:[%s3881 + $0x10] sm:$0xff]
      %v3885 = vld [vmem:[%s3881 + $0x18] sm:$0xff]
      %s3886 = scalar_lea.vmem %s5, 224
      %v3887 = vld [vmem:[%s3886] sm:$0xff]
      %v3888 = vld [vmem:[%s3886 + $0x8] sm:$0xff]
      %v3889 = vld [vmem:[%s3886 + $0x10] sm:$0xff]
      %v3890 = vld [vmem:[%s3886 + $0x18] sm:$0xff]
      %v3892 = vsel %vm1198, %v3757, 0
      %v3895 = vsel %vm1198, %v3758, 0
      %v3898 = vsel %vm1198, %v3759, 0
      %v3901 = vsel %vm1198, %v3760, 0
      %v3904 = vsel %vm1198, %v3761, 0
      %v3907 = vsel %vm1198, %v3762, 0
      %v3910 = vsel %vm1198, %v3763, 0
      %v3913 = vsel %vm1198, %v3764, 0
      %v3916 = vsel %vm1198, %v3765, 0
      %v3919 = vsel %vm1198, %v3766, 0
      %v3922 = vsel %vm1198, %v3767, 0
      %v3925 = vsel %vm1198, %v3768, 0
      %v3928 = vsel %vm1198, %v3769, 0
      %v3931 = vsel %vm1198, %v3770, 0
      %v3934 = vsel %vm1198, %v3771, 0
      %v3937 = vsel %vm1198, %v3772, 0
      %3939 = vmatpush.msra.mxu0 0.0
      %3940 = vmatpush.msra.mxu0 0.0
      %3941 = vmatpush.msra.mxu0 0.0
      %3942 = vmatpush.msra.mxu0 0.0
      %3943 = vmatpush.msra.mxu0 0.0
      %3944 = vmatpush.msra.mxu0 0.0
      %3945 = vmatpush.msra.mxu0 0.0
      %3946 = vmatpush.msra.mxu0 0.0
      %3947 = vmatpush.msra.mxu0 0.0
      %3948 = vmatpush.msra.mxu0 0.0
      %3949 = vmatpush.msra.mxu0 0.0
      %3950 = vmatpush.msra.mxu0 0.0
      %3951 = vmatpush.msra.mxu0 %v3890
      %3952 = vmatpush.msra.mxu0 %v3889
      %3953 = vmatpush.msra.mxu0 %v3888
      %3954 = vmatpush.msra.mxu0 %v3887
      %3955 = vmatmul.f32.gmra.mxu0 %v3892
      %v3956 = vpop.f32.mrf.mxu0
      %v3957 = vadd.f32 0.0, %v3956
      %3958 = vmatmul.f32.gmra.mxu0 %v3895
      %v3959 = vpop.f32.mrf.mxu0
      %v3960 = vadd.f32 0.0, %v3959
      %3961 = vmatmul.f32.gmra.mxu0 %v3898
      %v3962 = vpop.f32.mrf.mxu0
      %v3963 = vadd.f32 0.0, %v3962
      %3964 = vmatmul.f32.gmra.mxu0 %v3901
      %v3965 = vpop.f32.mrf.mxu0
      %v3966 = vadd.f32 0.0, %v3965
      %3967 = vmatmul.f32.gmra.mxu0 %v3904
      %v3968 = vpop.f32.mrf.mxu0
      %v3969 = vadd.f32 0.0, %v3968
      %3970 = vmatmul.f32.gmra.mxu0 %v3907
      %v3971 = vpop.f32.mrf.mxu0
      %v3972 = vadd.f32 0.0, %v3971
      %3973 = vmatmul.f32.gmra.mxu0 %v3910
      %v3974 = vpop.f32.mrf.mxu0
      %v3975 = vadd.f32 0.0, %v3974
      %3976 = vmatmul.f32.gmra.mxu0 %v3913
      %v3977 = vpop.f32.mrf.mxu0
      %v3978 = vadd.f32 0.0, %v3977
      %3979 = vmatmul.f32.gmra.mxu0 %v3916
      %v3980 = vpop.f32.mrf.mxu0
      %v3981 = vadd.f32 0.0, %v3980
      %3982 = vmatmul.f32.gmra.mxu0 %v3919
      %v3983 = vpop.f32.mrf.mxu0
      %v3984 = vadd.f32 0.0, %v3983
      %3985 = vmatmul.f32.gmra.mxu0 %v3922
      %v3986 = vpop.f32.mrf.mxu0
      %v3987 = vadd.f32 0.0, %v3986
      %3988 = vmatmul.f32.gmra.mxu0 %v3925
      %v3989 = vpop.f32.mrf.mxu0
      %v3990 = vadd.f32 0.0, %v3989
      %3991 = vmatmul.f32.gmra.mxu0 %v3928
      %v3992 = vpop.f32.mrf.mxu0
      %v3993 = vadd.f32 0.0, %v3992
      %3994 = vmatmul.f32.gmra.mxu0 %v3931
      %v3995 = vpop.f32.mrf.mxu0
      %v3996 = vadd.f32 0.0, %v3995
      %3997 = vmatmul.f32.gmra.mxu0 %v3934
      %v3998 = vpop.f32.mrf.mxu0
      %v3999 = vadd.f32 0.0, %v3998
      %4000 = vmatmul.f32.gmra.mxu0 %v3937
      %v4001 = vpop.f32.mrf.mxu0
      %v4002 = vadd.f32 0.0, %v4001
      %4003 = vdwg.mxu0
      %v4005 = vsel %vm1198, %v3865, 0
      %v4008 = vsel %vm1198, %v3866, 0
      %v4011 = vsel %vm1198, %v3867, 0
      %v4014 = vsel %vm1198, %v3868, 0
      %v4017 = vsel %vm1198, %v3869, 0
      %v4020 = vsel %vm1198, %v3870, 0
      %v4023 = vsel %vm1198, %v3871, 0
      %v4026 = vsel %vm1198, %v3872, 0
      %v4029 = vsel %vm1198, %v3873, 0
      %v4032 = vsel %vm1198, %v3874, 0
      %v4035 = vsel %vm1198, %v3875, 0
      %v4038 = vsel %vm1198, %v3876, 0
      %v4041 = vsel %vm1198, %v3877, 0
      %v4044 = vsel %vm1198, %v3878, 0
      %v4047 = vsel %vm1198, %v3879, 0
      %v4050 = vsel %vm1198, %v3880, 0
      %4052 = vmatpush.msra.mxu0 0.0
      %4053 = vmatpush.msra.mxu0 0.0
      %4054 = vmatpush.msra.mxu0 0.0
      %4055 = vmatpush.msra.mxu0 0.0
      %4056 = vmatpush.msra.mxu0 0.0
      %4057 = vmatpush.msra.mxu0 0.0
      %4058 = vmatpush.msra.mxu0 0.0
      %4059 = vmatpush.msra.mxu0 0.0
      %4060 = vmatpush.msra.mxu0 0.0
      %4061 = vmatpush.msra.mxu0 0.0
      %4062 = vmatpush.msra.mxu0 0.0
      %4063 = vmatpush.msra.mxu0 0.0
      %4064 = vmatpush.msra.mxu0 %v3885
      %4065 = vmatpush.msra.mxu0 %v3884
      %4066 = vmatpush.msra.mxu0 %v3883
      %4067 = vmatpush.msra.mxu0 %v3882
      %4068 = vmatmul.f32.gmra.mxu0 %v4005
      %v4069 = vpop.f32.mrf.mxu0
      %v4070 = vadd.f32 %v3957, %v4069
      %4071 = vmatmul.f32.gmra.mxu0 %v4008
      %v4072 = vpop.f32.mrf.mxu0
      %v4073 = vadd.f32 %v3960, %v4072
      %4074 = vmatmul.f32.gmra.mxu0 %v4011
      %v4075 = vpop.f32.mrf.mxu0
      %v4076 = vadd.f32 %v3963, %v4075
      %4077 = vmatmul.f32.gmra.mxu0 %v4014
      %v4078 = vpop.f32.mrf.mxu0
      %v4079 = vadd.f32 %v3966, %v4078
      %4080 = vmatmul.f32.gmra.mxu0 %v4017
      %v4081 = vpop.f32.mrf.mxu0
      %v4082 = vadd.f32 %v3969, %v4081
      %4083 = vmatmul.f32.gmra.mxu0 %v4020
      %v4084 = vpop.f32.mrf.mxu0
      %v4085 = vadd.f32 %v3972, %v4084
      %4086 = vmatmul.f32.gmra.mxu0 %v4023
      %v4087 = vpop.f32.mrf.mxu0
      %v4088 = vadd.f32 %v3975, %v4087
      %4089 = vmatmul.f32.gmra.mxu0 %v4026
      %v4090 = vpop.f32.mrf.mxu0
      %v4091 = vadd.f32 %v3978, %v4090
      %4092 = vmatmul.f32.gmra.mxu0 %v4029
      %v4093 = vpop.f32.mrf.mxu0
      %v4094 = vadd.f32 %v3981, %v4093
      %4095 = vmatmul.f32.gmra.mxu0 %v4032
      %v4096 = vpop.f32.mrf.mxu0
      %v4097 = vadd.f32 %v3984, %v4096
      %4098 = vmatmul.f32.gmra.mxu0 %v4035
      %v4099 = vpop.f32.mrf.mxu0
      %v4100 = vadd.f32 %v3987, %v4099
      %4101 = vmatmul.f32.gmra.mxu0 %v4038
      %v4102 = vpop.f32.mrf.mxu0
      %v4103 = vadd.f32 %v3990, %v4102
      %4104 = vmatmul.f32.gmra.mxu0 %v4041
      %v4105 = vpop.f32.mrf.mxu0
      %v4106 = vadd.f32 %v3993, %v4105
      %4107 = vmatmul.f32.gmra.mxu0 %v4044
      %v4108 = vpop.f32.mrf.mxu0
      %v4109 = vadd.f32 %v3996, %v4108
      %4110 = vmatmul.f32.gmra.mxu0 %v4047
      %v4111 = vpop.f32.mrf.mxu0
      %v4112 = vadd.f32 %v3999, %v4111
      %4113 = vmatmul.f32.gmra.mxu0 %v4050
      %v4114 = vpop.f32.mrf.mxu0
      %v4115 = vadd.f32 %v4002, %v4114
      %4116 = vdwg.mxu0
      %v4117 = vld [vmem:[%s6 + $0x3] sm:$0x1]
      %v4118 = vperm.slane %v4117, 0
      %v4119 = vadd.f32 %v4070, %v4118
      %v4120 = vadd.f32 %v4073, %v4118
      %v4121 = vadd.f32 %v4076, %v4118
      %v4122 = vadd.f32 %v4079, %v4118
      %v4123 = vadd.f32 %v4082, %v4118
      %v4124 = vadd.f32 %v4085, %v4118
      %v4125 = vadd.f32 %v4088, %v4118
      %v4126 = vadd.f32 %v4091, %v4118
      %v4127 = vadd.f32 %v4094, %v4118
      %v4128 = vadd.f32 %v4097, %v4118
      %v4129 = vadd.f32 %v4100, %v4118
      %v4130 = vadd.f32 %v4103, %v4118
      %v4131 = vadd.f32 %v4106, %v4118
      %v4132 = vadd.f32 %v4109, %v4118
      %v4133 = vadd.f32 %v4112, %v4118
      %v4134 = vadd.f32 %v4115, %v4118
      %v4135 = vtanh.pop %v4119
      %v4136 = vtanh.pop %v4120
      %v4137 = vtanh.pop %v4121
      %v4138 = vtanh.pop %v4122
      %v4139 = vtanh.pop %v4123
      %v4140 = vtanh.pop %v4124
      %v4141 = vtanh.pop %v4125
      %v4142 = vtanh.pop %v4126
      %v4143 = vtanh.pop %v4127
      %v4144 = vtanh.pop %v4128
      %v4145 = vtanh.pop %v4129
      %v4146 = vtanh.pop %v4130
      %v4147 = vtanh.pop %v4131
      %v4148 = vtanh.pop %v4132
      %v4149 = vtanh.pop %v4133
      %v4150 = vtanh.pop %v4134
      %v4151 = vxor.u32 %v4119, 2147483648
      %v4152 = vxor.u32 %v4120, 2147483648
      %v4153 = vxor.u32 %v4121, 2147483648
      %v4154 = vxor.u32 %v4122, 2147483648
      %v4155 = vxor.u32 %v4123, 2147483648
      %v4156 = vxor.u32 %v4124, 2147483648
      %v4157 = vxor.u32 %v4125, 2147483648
      %v4158 = vxor.u32 %v4126, 2147483648
      %v4159 = vxor.u32 %v4127, 2147483648
      %v4160 = vxor.u32 %v4128, 2147483648
      %v4161 = vxor.u32 %v4129, 2147483648
      %v4162 = vxor.u32 %v4130, 2147483648
      %v4163 = vxor.u32 %v4131, 2147483648
      %v4164 = vxor.u32 %v4132, 2147483648
      %v4165 = vxor.u32 %v4133, 2147483648
      %v4166 = vxor.u32 %v4134, 2147483648
      %v4167 = vmul.f32 %v4151, 1.442695
      %v4168 = vpow.pop %v4167
      %v4169 = vmul.f32 %v4152, 1.442695
      %v4170 = vpow.pop %v4169
      %v4171 = vmul.f32 %v4153, 1.442695
      %v4172 = vpow.pop %v4171
      %v4173 = vmul.f32 %v4154, 1.442695
      %v4174 = vpow.pop %v4173
      %v4175 = vmul.f32 %v4155, 1.442695
      %v4176 = vpow.pop %v4175
      %v4177 = vmul.f32 %v4156, 1.442695
      %v4178 = vpow.pop %v4177
      %v4179 = vmul.f32 %v4157, 1.442695
      %v4180 = vpow.pop %v4179
      %v4181 = vmul.f32 %v4158, 1.442695
      %v4182 = vpow.pop %v4181
      %v4183 = vmul.f32 %v4159, 1.442695
      %v4184 = vpow.pop %v4183
      %v4185 = vmul.f32 %v4160, 1.442695
      %v4186 = vpow.pop %v4185
      %v4187 = vmul.f32 %v4161, 1.442695
      %v4188 = vpow.pop %v4187
      %v4189 = vmul.f32 %v4162, 1.442695
      %v4190 = vpow.pop %v4189
      %v4191 = vmul.f32 %v4163, 1.442695
      %v4192 = vpow.pop %v4191
      %v4193 = vmul.f32 %v4164, 1.442695
      %v4194 = vpow.pop %v4193
      %v4195 = vmul.f32 %v4165, 1.442695
      %v4196 = vpow.pop %v4195
      %v4197 = vmul.f32 %v4166, 1.442695
      %v4198 = vpow.pop %v4197
      %v4199 = vadd.f32 %v4168, 1.0
      %v4200 = vadd.f32 %v4170, 1.0
      %v4201 = vadd.f32 %v4172, 1.0
      %v4202 = vadd.f32 %v4174, 1.0
      %v4203 = vadd.f32 %v4176, 1.0
      %v4204 = vadd.f32 %v4178, 1.0
      %v4205 = vadd.f32 %v4180, 1.0
      %v4206 = vadd.f32 %v4182, 1.0
      %v4207 = vadd.f32 %v4184, 1.0
      %v4208 = vadd.f32 %v4186, 1.0
      %v4209 = vadd.f32 %v4188, 1.0
      %v4210 = vadd.f32 %v4190, 1.0
      %v4211 = vadd.f32 %v4192, 1.0
      %v4212 = vadd.f32 %v4194, 1.0
      %v4213 = vadd.f32 %v4196, 1.0
      %v4214 = vadd.f32 %v4198, 1.0
      %v4215 = vrcp.pop %v4199
      %v4216 = vmul.f32 %v4199, %v4215
      %v4217 = vsub.f32 1.0, %v4216
      %v4218 = vmul.f32 %v4215, %v4217
      %v4219 = vadd.f32 %v4215, %v4218
      %vm4220 = vweird.f32 %v4199
      %vm4221 = vweird.f32 %v4215
      %vm4222 = vmor %vm4220, %vm4221
      %v4223 = vsel %vm4222, %v4215, %v4219
      %v4224 = vand.u32 2147483647, %v4199
      %vm4225 = vcmp.eq.f32.partialorder %v4224, 8.507059e+37
      %v4226 = vand.u32 %v4199, 2147483648
      %v4227 = vor.u32 1.1754944e-38, %v4226
      %v4228 = vsel %vm4225, %v4227, %v4223
      %v4229 = vmul.f32 1.0, %v4228
      %v4230 = vrcp.pop %v4200
      %v4231 = vmul.f32 %v4200, %v4230
      %v4232 = vsub.f32 1.0, %v4231
      %v4233 = vmul.f32 %v4230, %v4232
      %v4234 = vadd.f32 %v4230, %v4233
      %vm4235 = vweird.f32 %v4200
      %vm4236 = vweird.f32 %v4230
      %vm4237 = vmor %vm4235, %vm4236
      %v4238 = vsel %vm4237, %v4230, %v4234
      %v4239 = vand.u32 2147483647, %v4200
      %vm4240 = vcmp.eq.f32.partialorder %v4239, 8.507059e+37
      %v4241 = vand.u32 %v4200, 2147483648
      %v4242 = vor.u32 1.1754944e-38, %v4241
      %v4243 = vsel %vm4240, %v4242, %v4238
      %v4244 = vmul.f32 1.0, %v4243
      %v4245 = vrcp.pop %v4201
      %v4246 = vmul.f32 %v4201, %v4245
      %v4247 = vsub.f32 1.0, %v4246
      %v4248 = vmul.f32 %v4245, %v4247
      %v4249 = vadd.f32 %v4245, %v4248
      %vm4250 = vweird.f32 %v4201
      %vm4251 = vweird.f32 %v4245
      %vm4252 = vmor %vm4250, %vm4251
      %v4253 = vsel %vm4252, %v4245, %v4249
      %v4254 = vand.u32 2147483647, %v4201
      %vm4255 = vcmp.eq.f32.partialorder %v4254, 8.507059e+37
      %v4256 = vand.u32 %v4201, 2147483648
      %v4257 = vor.u32 1.1754944e-38, %v4256
      %v4258 = vsel %vm4255, %v4257, %v4253
      %v4259 = vmul.f32 1.0, %v4258
      %v4260 = vrcp.pop %v4202
      %v4261 = vmul.f32 %v4202, %v4260
      %v4262 = vsub.f32 1.0, %v4261
      %v4263 = vmul.f32 %v4260, %v4262
      %v4264 = vadd.f32 %v4260, %v4263
      %vm4265 = vweird.f32 %v4202
      %vm4266 = vweird.f32 %v4260
      %vm4267 = vmor %vm4265, %vm4266
      %v4268 = vsel %vm4267, %v4260, %v4264
      %v4269 = vand.u32 2147483647, %v4202
      %vm4270 = vcmp.eq.f32.partialorder %v4269, 8.507059e+37
      %v4271 = vand.u32 %v4202, 2147483648
      %v4272 = vor.u32 1.1754944e-38, %v4271
      %v4273 = vsel %vm4270, %v4272, %v4268
      %v4274 = vmul.f32 1.0, %v4273
      %v4275 = vrcp.pop %v4203
      %v4276 = vmul.f32 %v4203, %v4275
      %v4277 = vsub.f32 1.0, %v4276
      %v4278 = vmul.f32 %v4275, %v4277
      %v4279 = vadd.f32 %v4275, %v4278
      %vm4280 = vweird.f32 %v4203
      %vm4281 = vweird.f32 %v4275
      %vm4282 = vmor %vm4280, %vm4281
      %v4283 = vsel %vm4282, %v4275, %v4279
      %v4284 = vand.u32 2147483647, %v4203
      %vm4285 = vcmp.eq.f32.partialorder %v4284, 8.507059e+37
      %v4286 = vand.u32 %v4203, 2147483648
      %v4287 = vor.u32 1.1754944e-38, %v4286
      %v4288 = vsel %vm4285, %v4287, %v4283
      %v4289 = vmul.f32 1.0, %v4288
      %v4290 = vrcp.pop %v4204
      %v4291 = vmul.f32 %v4204, %v4290
      %v4292 = vsub.f32 1.0, %v4291
      %v4293 = vmul.f32 %v4290, %v4292
      %v4294 = vadd.f32 %v4290, %v4293
      %vm4295 = vweird.f32 %v4204
      %vm4296 = vweird.f32 %v4290
      %vm4297 = vmor %vm4295, %vm4296
      %v4298 = vsel %vm4297, %v4290, %v4294
      %v4299 = vand.u32 2147483647, %v4204
      %vm4300 = vcmp.eq.f32.partialorder %v4299, 8.507059e+37
      %v4301 = vand.u32 %v4204, 2147483648
      %v4302 = vor.u32 1.1754944e-38, %v4301
      %v4303 = vsel %vm4300, %v4302, %v4298
      %v4304 = vmul.f32 1.0, %v4303
      %v4305 = vrcp.pop %v4205
      %v4306 = vmul.f32 %v4205, %v4305
      %v4307 = vsub.f32 1.0, %v4306
      %v4308 = vmul.f32 %v4305, %v4307
      %v4309 = vadd.f32 %v4305, %v4308
      %vm4310 = vweird.f32 %v4205
      %vm4311 = vweird.f32 %v4305
      %vm4312 = vmor %vm4310, %vm4311
      %v4313 = vsel %vm4312, %v4305, %v4309
      %v4314 = vand.u32 2147483647, %v4205
      %vm4315 = vcmp.eq.f32.partialorder %v4314, 8.507059e+37
      %v4316 = vand.u32 %v4205, 2147483648
      %v4317 = vor.u32 1.1754944e-38, %v4316
      %v4318 = vsel %vm4315, %v4317, %v4313
      %v4319 = vmul.f32 1.0, %v4318
      %v4320 = vrcp.pop %v4206
      %v4321 = vmul.f32 %v4206, %v4320
      %v4322 = vsub.f32 1.0, %v4321
      %v4323 = vmul.f32 %v4320, %v4322
      %v4324 = vadd.f32 %v4320, %v4323
      %vm4325 = vweird.f32 %v4206
      %vm4326 = vweird.f32 %v4320
      %vm4327 = vmor %vm4325, %vm4326
      %v4328 = vsel %vm4327, %v4320, %v4324
      %v4329 = vand.u32 2147483647, %v4206
      %vm4330 = vcmp.eq.f32.partialorder %v4329, 8.507059e+37
      %v4331 = vand.u32 %v4206, 2147483648
      %v4332 = vor.u32 1.1754944e-38, %v4331
      %v4333 = vsel %vm4330, %v4332, %v4328
      %v4334 = vmul.f32 1.0, %v4333
      %v4335 = vrcp.pop %v4207
      %v4336 = vmul.f32 %v4207, %v4335
      %v4337 = vsub.f32 1.0, %v4336
      %v4338 = vmul.f32 %v4335, %v4337
      %v4339 = vadd.f32 %v4335, %v4338
      %vm4340 = vweird.f32 %v4207
      %vm4341 = vweird.f32 %v4335
      %vm4342 = vmor %vm4340, %vm4341
      %v4343 = vsel %vm4342, %v4335, %v4339
      %v4344 = vand.u32 2147483647, %v4207
      %vm4345 = vcmp.eq.f32.partialorder %v4344, 8.507059e+37
      %v4346 = vand.u32 %v4207, 2147483648
      %v4347 = vor.u32 1.1754944e-38, %v4346
      %v4348 = vsel %vm4345, %v4347, %v4343
      %v4349 = vmul.f32 1.0, %v4348
      %v4350 = vrcp.pop %v4208
      %v4351 = vmul.f32 %v4208, %v4350
      %v4352 = vsub.f32 1.0, %v4351
      %v4353 = vmul.f32 %v4350, %v4352
      %v4354 = vadd.f32 %v4350, %v4353
      %vm4355 = vweird.f32 %v4208
      %vm4356 = vweird.f32 %v4350
      %vm4357 = vmor %vm4355, %vm4356
      %v4358 = vsel %vm4357, %v4350, %v4354
      %v4359 = vand.u32 2147483647, %v4208
      %vm4360 = vcmp.eq.f32.partialorder %v4359, 8.507059e+37
      %v4361 = vand.u32 %v4208, 2147483648
      %v4362 = vor.u32 1.1754944e-38, %v4361
      %v4363 = vsel %vm4360, %v4362, %v4358
      %v4364 = vmul.f32 1.0, %v4363
      %v4365 = vrcp.pop %v4209
      %v4366 = vmul.f32 %v4209, %v4365
      %v4367 = vsub.f32 1.0, %v4366
      %v4368 = vmul.f32 %v4365, %v4367
      %v4369 = vadd.f32 %v4365, %v4368
      %vm4370 = vweird.f32 %v4209
      %vm4371 = vweird.f32 %v4365
      %vm4372 = vmor %vm4370, %vm4371
      %v4373 = vsel %vm4372, %v4365, %v4369
      %v4374 = vand.u32 2147483647, %v4209
      %vm4375 = vcmp.eq.f32.partialorder %v4374, 8.507059e+37
      %v4376 = vand.u32 %v4209, 2147483648
      %v4377 = vor.u32 1.1754944e-38, %v4376
      %v4378 = vsel %vm4375, %v4377, %v4373
      %v4379 = vmul.f32 1.0, %v4378
      %v4380 = vrcp.pop %v4210
      %v4381 = vmul.f32 %v4210, %v4380
      %v4382 = vsub.f32 1.0, %v4381
      %v4383 = vmul.f32 %v4380, %v4382
      %v4384 = vadd.f32 %v4380, %v4383
      %vm4385 = vweird.f32 %v4210
      %vm4386 = vweird.f32 %v4380
      %vm4387 = vmor %vm4385, %vm4386
      %v4388 = vsel %vm4387, %v4380, %v4384
      %v4389 = vand.u32 2147483647, %v4210
      %vm4390 = vcmp.eq.f32.partialorder %v4389, 8.507059e+37
      %v4391 = vand.u32 %v4210, 2147483648
      %v4392 = vor.u32 1.1754944e-38, %v4391
      %v4393 = vsel %vm4390, %v4392, %v4388
      %v4394 = vmul.f32 1.0, %v4393
      %v4395 = vrcp.pop %v4211
      %v4396 = vmul.f32 %v4211, %v4395
      %v4397 = vsub.f32 1.0, %v4396
      %v4398 = vmul.f32 %v4395, %v4397
      %v4399 = vadd.f32 %v4395, %v4398
      %vm4400 = vweird.f32 %v4211
      %vm4401 = vweird.f32 %v4395
      %vm4402 = vmor %vm4400, %vm4401
      %v4403 = vsel %vm4402, %v4395, %v4399
      %v4404 = vand.u32 2147483647, %v4211
      %vm4405 = vcmp.eq.f32.partialorder %v4404, 8.507059e+37
      %v4406 = vand.u32 %v4211, 2147483648
      %v4407 = vor.u32 1.1754944e-38, %v4406
      %v4408 = vsel %vm4405, %v4407, %v4403
      %v4409 = vmul.f32 1.0, %v4408
      %v4410 = vrcp.pop %v4212
      %v4411 = vmul.f32 %v4212, %v4410
      %v4412 = vsub.f32 1.0, %v4411
      %v4413 = vmul.f32 %v4410, %v4412
      %v4414 = vadd.f32 %v4410, %v4413
      %vm4415 = vweird.f32 %v4212
      %vm4416 = vweird.f32 %v4410
      %vm4417 = vmor %vm4415, %vm4416
      %v4418 = vsel %vm4417, %v4410, %v4414
      %v4419 = vand.u32 2147483647, %v4212
      %vm4420 = vcmp.eq.f32.partialorder %v4419, 8.507059e+37
      %v4421 = vand.u32 %v4212, 2147483648
      %v4422 = vor.u32 1.1754944e-38, %v4421
      %v4423 = vsel %vm4420, %v4422, %v4418
      %v4424 = vmul.f32 1.0, %v4423
      %v4425 = vrcp.pop %v4213
      %v4426 = vmul.f32 %v4213, %v4425
      %v4427 = vsub.f32 1.0, %v4426
      %v4428 = vmul.f32 %v4425, %v4427
      %v4429 = vadd.f32 %v4425, %v4428
      %vm4430 = vweird.f32 %v4213
      %vm4431 = vweird.f32 %v4425
      %vm4432 = vmor %vm4430, %vm4431
      %v4433 = vsel %vm4432, %v4425, %v4429
      %v4434 = vand.u32 2147483647, %v4213
      %vm4435 = vcmp.eq.f32.partialorder %v4434, 8.507059e+37
      %v4436 = vand.u32 %v4213, 2147483648
      %v4437 = vor.u32 1.1754944e-38, %v4436
      %v4438 = vsel %vm4435, %v4437, %v4433
      %v4439 = vmul.f32 1.0, %v4438
      %v4440 = vrcp.pop %v4214
      %v4441 = vmul.f32 %v4214, %v4440
      %v4442 = vsub.f32 1.0, %v4441
      %v4443 = vmul.f32 %v4440, %v4442
      %v4444 = vadd.f32 %v4440, %v4443
      %vm4445 = vweird.f32 %v4214
      %vm4446 = vweird.f32 %v4440
      %vm4447 = vmor %vm4445, %vm4446
      %v4448 = vsel %vm4447, %v4440, %v4444
      %v4449 = vand.u32 2147483647, %v4214
      %vm4450 = vcmp.eq.f32.partialorder %v4449, 8.507059e+37
      %v4451 = vand.u32 %v4214, 2147483648
      %v4452 = vor.u32 1.1754944e-38, %v4451
      %v4453 = vsel %vm4450, %v4452, %v4448
      %v4454 = vmul.f32 1.0, %v4453
      %4471 = vrot.lane.b32.xlu0 %v4229, 96
      %v4472 = vpop.permute.xlu0 %4471
      %4473 = vrot.lane.b32.xlu0 %v4244, 96
      %v4474 = vpop.permute.xlu0 %4473
      %4475 = vrot.lane.b32.xlu0 %v4259, 96
      %v4476 = vpop.permute.xlu0 %4475
      %4477 = vrot.lane.b32.xlu0 %v4274, 96
      %v4478 = vpop.permute.xlu0 %4477
      %4479 = vrot.lane.b32.xlu0 %v4289, 96
      %v4480 = vpop.permute.xlu0 %4479
      %4481 = vrot.lane.b32.xlu0 %v4304, 96
      %v4482 = vpop.permute.xlu0 %4481
      %4483 = vrot.lane.b32.xlu0 %v4319, 96
      %v4484 = vpop.permute.xlu0 %4483
      %4485 = vrot.lane.b32.xlu0 %v4334, 96
      %v4486 = vpop.permute.xlu0 %4485
      %4487 = vrot.lane.b32.xlu0 %v4349, 96
      %v4488 = vpop.permute.xlu0 %4487
      %4489 = vrot.lane.b32.xlu0 %v4364, 96
      %v4490 = vpop.permute.xlu0 %4489
      %4491 = vrot.lane.b32.xlu0 %v4379, 96
      %v4492 = vpop.permute.xlu0 %4491
      %4493 = vrot.lane.b32.xlu0 %v4394, 96
      %v4494 = vpop.permute.xlu0 %4493
      %4495 = vrot.lane.b32.xlu0 %v4409, 96
      %v4496 = vpop.permute.xlu0 %4495
      %4497 = vrot.lane.b32.xlu0 %v4424, 96
      %v4498 = vpop.permute.xlu0 %4497
      %4499 = vrot.lane.b32.xlu0 %v4439, 96
      %v4500 = vpop.permute.xlu0 %4499
      %4501 = vrot.lane.b32.xlu0 %v4454, 96
      %v4502 = vpop.permute.xlu0 %4501
      %v4519 = vmul.f32 %v4135, %v4472
      %v4520 = vmul.f32 %v4136, %v4474
      %v4521 = vmul.f32 %v4137, %v4476
      %v4522 = vmul.f32 %v4138, %v4478
      %v4523 = vmul.f32 %v4139, %v4480
      %v4524 = vmul.f32 %v4140, %v4482
      %v4525 = vmul.f32 %v4141, %v4484
      %v4526 = vmul.f32 %v4142, %v4486
      %v4527 = vmul.f32 %v4143, %v4488
      %v4528 = vmul.f32 %v4144, %v4490
      %v4529 = vmul.f32 %v4145, %v4492
      %v4530 = vmul.f32 %v4146, %v4494
      %v4531 = vmul.f32 %v4147, %v4496
      %v4532 = vmul.f32 %v4148, %v4498
      %v4533 = vmul.f32 %v4149, %v4500
      %v4534 = vmul.f32 %v4150, %v4502
      %s4535 = scalar_lea.vmem %s7, 96
      %v4536 = vld [vmem:[%s4535] sm:$0xff]
      %v4537 = vld [vmem:[%s4535 + $0x8] sm:$0xff]
      %v4538 = vld [vmem:[%s4535 + $0x10] sm:$0xff]
      %v4539 = vld [vmem:[%s4535 + $0x18] sm:$0xff]
      %v4540 = vld [vmem:[%s8 + $0x3] sm:$0x1]
      %v4541 = vperm.slane %v4540, 0
      %v4543 = vsel %vm1198, %v4519, 0
      %v4546 = vsel %vm1198, %v4520, 0
      %v4549 = vsel %vm1198, %v4521, 0
      %v4552 = vsel %vm1198, %v4522, 0
      %v4555 = vsel %vm1198, %v4523, 0
      %v4558 = vsel %vm1198, %v4524, 0
      %v4561 = vsel %vm1198, %v4525, 0
      %v4564 = vsel %vm1198, %v4526, 0
      %v4567 = vsel %vm1198, %v4527, 0
      %v4570 = vsel %vm1198, %v4528, 0
      %v4573 = vsel %vm1198, %v4529, 0
      %v4576 = vsel %vm1198, %v4530, 0
      %v4579 = vsel %vm1198, %v4531, 0
      %v4582 = vsel %vm1198, %v4532, 0
      %v4585 = vsel %vm1198, %v4533, 0
      %v4588 = vsel %vm1198, %v4534, 0
      %4590 = vmatpush.msra.mxu0 0.0
      %4591 = vmatpush.msra.mxu0 0.0
      %4592 = vmatpush.msra.mxu0 0.0
      %4593 = vmatpush.msra.mxu0 0.0
      %4594 = vmatpush.msra.mxu0 0.0
      %4595 = vmatpush.msra.mxu0 0.0
      %4596 = vmatpush.msra.mxu0 0.0
      %4597 = vmatpush.msra.mxu0 0.0
      %4598 = vmatpush.msra.mxu0 0.0
      %4599 = vmatpush.msra.mxu0 0.0
      %4600 = vmatpush.msra.mxu0 0.0
      %4601 = vmatpush.msra.mxu0 0.0
      %4602 = vmatpush.msra.mxu0 %v4539
      %4603 = vmatpush.msra.mxu0 %v4538
      %4604 = vmatpush.msra.mxu0 %v4537
      %4605 = vmatpush.msra.mxu0 %v4536
      %4606 = vmatmul.f32.gmra.mxu0 %v4543
      %v4607 = vpop.f32.mrf.mxu0
      %v4608 = vadd.f32 %v4541, %v4607
      %4609 = vmatmul.f32.gmra.mxu0 %v4546
      %v4610 = vpop.f32.mrf.mxu0
      %v4611 = vadd.f32 %v4541, %v4610
      %4612 = vmatmul.f32.gmra.mxu0 %v4549
      %v4613 = vpop.f32.mrf.mxu0
      %v4614 = vadd.f32 %v4541, %v4613
      %4615 = vmatmul.f32.gmra.mxu0 %v4552
      %v4616 = vpop.f32.mrf.mxu0
      %v4617 = vadd.f32 %v4541, %v4616
      %4618 = vmatmul.f32.gmra.mxu0 %v4555
      %v4619 = vpop.f32.mrf.mxu0
      %v4620 = vadd.f32 %v4541, %v4619
      %4621 = vmatmul.f32.gmra.mxu0 %v4558
      %v4622 = vpop.f32.mrf.mxu0
      %v4623 = vadd.f32 %v4541, %v4622
      %4624 = vmatmul.f32.gmra.mxu0 %v4561
      %v4625 = vpop.f32.mrf.mxu0
      %v4626 = vadd.f32 %v4541, %v4625
      %4627 = vmatmul.f32.gmra.mxu0 %v4564
      %v4628 = vpop.f32.mrf.mxu0
      %v4629 = vadd.f32 %v4541, %v4628
      %4630 = vmatmul.f32.gmra.mxu0 %v4567
      %v4631 = vpop.f32.mrf.mxu0
      %v4632 = vadd.f32 %v4541, %v4631
      %4633 = vmatmul.f32.gmra.mxu0 %v4570
      %v4634 = vpop.f32.mrf.mxu0
      %v4635 = vadd.f32 %v4541, %v4634
      %4636 = vmatmul.f32.gmra.mxu0 %v4573
      %v4637 = vpop.f32.mrf.mxu0
      %v4638 = vadd.f32 %v4541, %v4637
      %4639 = vmatmul.f32.gmra.mxu0 %v4576
      %v4640 = vpop.f32.mrf.mxu0
      %v4641 = vadd.f32 %v4541, %v4640
      %4642 = vmatmul.f32.gmra.mxu0 %v4579
      %v4643 = vpop.f32.mrf.mxu0
      %v4644 = vadd.f32 %v4541, %v4643
      %4645 = vmatmul.f32.gmra.mxu0 %v4582
      %v4646 = vpop.f32.mrf.mxu0
      %v4647 = vadd.f32 %v4541, %v4646
      %4648 = vmatmul.f32.gmra.mxu0 %v4585
      %v4649 = vpop.f32.mrf.mxu0
      %v4650 = vadd.f32 %v4541, %v4649
      %4651 = vmatmul.f32.gmra.mxu0 %v4588
      %v4652 = vpop.f32.mrf.mxu0
      %v4653 = vadd.f32 %v4541, %v4652
      %4654 = vdwg.mxu0
      %v4655 = vadd.f32 %v4608, %v3757
      %v4656 = vadd.f32 %v4611, %v3758
      %v4657 = vadd.f32 %v4614, %v3759
      %v4658 = vadd.f32 %v4617, %v3760
      %v4659 = vadd.f32 %v4620, %v3761
      %v4660 = vadd.f32 %v4623, %v3762
      %v4661 = vadd.f32 %v4626, %v3763
      %v4662 = vadd.f32 %v4629, %v3764
      %v4663 = vadd.f32 %v4632, %v3765
      %v4664 = vadd.f32 %v4635, %v3766
      %v4665 = vadd.f32 %v4638, %v3767
      %v4666 = vadd.f32 %v4641, %v3768
      %v4667 = vadd.f32 %v4644, %v3769
      %v4668 = vadd.f32 %v4647, %v3770
      %v4669 = vadd.f32 %v4650, %v3771
      %v4670 = vadd.f32 %v4653, %v3772
      %v4671 = vmax.f32 %v4611, 0.0
      %v4672 = vmax.f32 %v4617, 0.0
      %v4673 = vmax.f32 %v4623, 0.0
      %v4674 = vmax.f32 %v4629, 0.0
      %v4675 = vmax.f32 %v4635, 0.0
      %v4676 = vmax.f32 %v4641, 0.0
      %v4677 = vmax.f32 %v4647, 0.0
      %v4678 = vmax.f32 %v4653, 0.0
      %s4679 = scalar_lea.vmem %s9, 96
      %v4680 = vld [vmem:[%s4679] sm:$0xff]
      %v4681 = vld [vmem:[%s4679 + $0x8] sm:$0xff]
      %v4682 = vld [vmem:[%s4679 + $0x10] sm:$0xff]
      %v4683 = vld [vmem:[%s4679 + $0x18] sm:$0xff]
      %v4692 = vrot.slane %v4671, 7
      %v4693 = vrot.slane %v4672, 6
      %v4694 = vsel %vm904, %v4693, %v4692
      %v4695 = vrot.slane %v4673, 5
      %v4696 = vsel %vm906, %v4695, %v4694
      %v4697 = vrot.slane %v4674, 4
      %v4698 = vsel %vm908, %v4697, %v4696
      %v4699 = vrot.slane %v4675, 3
      %v4700 = vsel %vm910, %v4699, %v4698
      %v4701 = vrot.slane %v4676, 2
      %v4702 = vsel %vm912, %v4701, %v4700
      %v4703 = vrot.slane %v4677, 1
      %v4704 = vsel %vm914, %v4703, %v4702
      %v4705 = vsel %vm916, %v4678, %v4704
      %4706 = vrot.lane.b32.xlu0 %v4705, 96
      %v4707 = vpop.permute.xlu0 %4706
      %v4708 = vsel %vm1198, %v4707, 0
      %4710 = vmatpush.msra.mxu0 0.0
      %4711 = vmatpush.msra.mxu0 0.0
      %4712 = vmatpush.msra.mxu0 0.0
      %4713 = vmatpush.msra.mxu0 0.0
      %4714 = vmatpush.msra.mxu0 0.0
      %4715 = vmatpush.msra.mxu0 0.0
      %4716 = vmatpush.msra.mxu0 0.0
      %4717 = vmatpush.msra.mxu0 0.0
      %4718 = vmatpush.msra.mxu0 0.0
      %4719 = vmatpush.msra.mxu0 0.0
      %4720 = vmatpush.msra.mxu0 0.0
      %4721 = vmatpush.msra.mxu0 0.0
      %4722 = vmatpush.msra.mxu0 %v4683
      %4723 = vmatpush.msra.mxu0 %v4682
      %4724 = vmatpush.msra.mxu0 %v4681
      %4725 = vmatpush.msra.mxu0 %v4680
      %4726 = vmatmul.f32.gmra.mxu0 %v4708
      %v4727 = vpop.f32.mrf.mxu0
      %v4728 = vadd.f32 0.0, %v4727
      %4729 = vdwg.mxu0
      %v4730 = vadd.f32 %v3832, %v4728
      %v4731 = vrot.slane %v4655, 6
      %v4732 = vrot.slane %v4656, 6
      %v4733 = vrot.slane %v4657, 6
      %v4734 = vrot.slane %v4658, 6
      %v4735 = vrot.slane %v4659, 6
      %v4736 = vrot.slane %v4660, 6
      %v4737 = vrot.slane %v4661, 6
      %v4738 = vrot.slane %v4662, 6
      %v4739 = vrot.slane %v4663, 6
      %v4740 = vrot.slane %v4664, 6
      %v4741 = vrot.slane %v4665, 6
      %v4742 = vrot.slane %v4666, 6
      %v4743 = vrot.slane %v4667, 6
      %v4744 = vrot.slane %v4668, 6
      %v4745 = vrot.slane %v4669, 6
      %v4746 = vrot.slane %v4670, 6
      %v4747 = vsel %vm2006, %v4745, %v4746
      %v4748 = vsel %vm2006, %v4744, %v4745
      %v4749 = vsel %vm2006, %v4743, %v4744
      %v4750 = vsel %vm2006, %v4742, %v4743
      %v4751 = vsel %vm2006, %v4741, %v4742
      %v4752 = vsel %vm2006, %v4740, %v4741
      %v4753 = vsel %vm2006, %v4739, %v4740
      %v4754 = vsel %vm2006, %v4738, %v4739
      %v4755 = vsel %vm2006, %v4737, %v4738
      %v4756 = vsel %vm2006, %v4736, %v4737
      %v4757 = vsel %vm2006, %v4735, %v4736
      %v4758 = vsel %vm2006, %v4734, %v4735
      %v4759 = vsel %vm2006, %v4733, %v4734
      %v4760 = vsel %vm2006, %v4732, %v4733
      %v4761 = vsel %vm2006, %v4731, %v4732
      %v4762 = vsel %vm2006, %v4746, %v4731
      %v4763 = vsel %vm1136, %v4762, 0.0
      %v4764 = vsel %vm1137, %v4761, 0.0
      %v4765 = vsel %vm1136, %v4760, 0.0
      %v4766 = vsel %vm1137, %v4759, 0.0
      %v4767 = vsel %vm1136, %v4758, 0.0
      %v4768 = vsel %vm1137, %v4757, 0.0
      %v4769 = vsel %vm1136, %v4756, 0.0
      %v4770 = vsel %vm1137, %v4755, 0.0
      %v4771 = vsel %vm1136, %v4754, 0.0
      %v4772 = vsel %vm1137, %v4753, 0.0
      %v4773 = vsel %vm1136, %v4752, 0.0
      %v4774 = vsel %vm1137, %v4751, 0.0
      %v4775 = vsel %vm1136, %v4750, 0.0
      %v4776 = vsel %vm1137, %v4749, 0.0
      %v4777 = vsel %vm1136, %v4748, 0.0
      %v4778 = vsel %vm1137, %v4747, 0.0
      %s4779 = scalar_lea.vmem %s5, 256
      %v4780 = vld [vmem:[%s4779] sm:$0xff]
      %v4781 = vld [vmem:[%s4779 + $0x8] sm:$0xff]
      %v4782 = vld [vmem:[%s4779 + $0x10] sm:$0xff]
      %v4783 = vld [vmem:[%s4779 + $0x18] sm:$0xff]
      %s4784 = scalar_lea.vmem %s5, 288
      %v4785 = vld [vmem:[%s4784] sm:$0xff]
      %v4786 = vld [vmem:[%s4784 + $0x8] sm:$0xff]
      %v4787 = vld [vmem:[%s4784 + $0x10] sm:$0xff]
      %v4788 = vld [vmem:[%s4784 + $0x18] sm:$0xff]
      %v4790 = vsel %vm1198, %v4655, 0
      %v4793 = vsel %vm1198, %v4656, 0
      %v4796 = vsel %vm1198, %v4657, 0
      %v4799 = vsel %vm1198, %v4658, 0
      %v4802 = vsel %vm1198, %v4659, 0
      %v4805 = vsel %vm1198, %v4660, 0
      %v4808 = vsel %vm1198, %v4661, 0
      %v4811 = vsel %vm1198, %v4662, 0
      %v4814 = vsel %vm1198, %v4663, 0
      %v4817 = vsel %vm1198, %v4664, 0
      %v4820 = vsel %vm1198, %v4665, 0
      %v4823 = vsel %vm1198, %v4666, 0
      %v4826 = vsel %vm1198, %v4667, 0
      %v4829 = vsel %vm1198, %v4668, 0
      %v4832 = vsel %vm1198, %v4669, 0
      %v4835 = vsel %vm1198, %v4670, 0
      %4837 = vmatpush.msra.mxu0 0.0
      %4838 = vmatpush.msra.mxu0 0.0
      %4839 = vmatpush.msra.mxu0 0.0
      %4840 = vmatpush.msra.mxu0 0.0
      %4841 = vmatpush.msra.mxu0 0.0
      %4842 = vmatpush.msra.mxu0 0.0
      %4843 = vmatpush.msra.mxu0 0.0
      %4844 = vmatpush.msra.mxu0 0.0
      %4845 = vmatpush.msra.mxu0 0.0
      %4846 = vmatpush.msra.mxu0 0.0
      %4847 = vmatpush.msra.mxu0 0.0
      %4848 = vmatpush.msra.mxu0 0.0
      %4849 = vmatpush.msra.mxu0 %v4788
      %4850 = vmatpush.msra.mxu0 %v4787
      %4851 = vmatpush.msra.mxu0 %v4786
      %4852 = vmatpush.msra.mxu0 %v4785
      %4853 = vmatmul.f32.gmra.mxu0 %v4790
      %v4854 = vpop.f32.mrf.mxu0
      %v4855 = vadd.f32 0.0, %v4854
      %4856 = vmatmul.f32.gmra.mxu0 %v4793
      %v4857 = vpop.f32.mrf.mxu0
      %v4858 = vadd.f32 0.0, %v4857
      %4859 = vmatmul.f32.gmra.mxu0 %v4796
      %v4860 = vpop.f32.mrf.mxu0
      %v4861 = vadd.f32 0.0, %v4860
      %4862 = vmatmul.f32.gmra.mxu0 %v4799
      %v4863 = vpop.f32.mrf.mxu0
      %v4864 = vadd.f32 0.0, %v4863
      %4865 = vmatmul.f32.gmra.mxu0 %v4802
      %v4866 = vpop.f32.mrf.mxu0
      %v4867 = vadd.f32 0.0, %v4866
      %4868 = vmatmul.f32.gmra.mxu0 %v4805
      %v4869 = vpop.f32.mrf.mxu0
      %v4870 = vadd.f32 0.0, %v4869
      %4871 = vmatmul.f32.gmra.mxu0 %v4808
      %v4872 = vpop.f32.mrf.mxu0
      %v4873 = vadd.f32 0.0, %v4872
      %4874 = vmatmul.f32.gmra.mxu0 %v4811
      %v4875 = vpop.f32.mrf.mxu0
      %v4876 = vadd.f32 0.0, %v4875
      %4877 = vmatmul.f32.gmra.mxu0 %v4814
      %v4878 = vpop.f32.mrf.mxu0
      %v4879 = vadd.f32 0.0, %v4878
      %4880 = vmatmul.f32.gmra.mxu0 %v4817
      %v4881 = vpop.f32.mrf.mxu0
      %v4882 = vadd.f32 0.0, %v4881
      %4883 = vmatmul.f32.gmra.mxu0 %v4820
      %v4884 = vpop.f32.mrf.mxu0
      %v4885 = vadd.f32 0.0, %v4884
      %4886 = vmatmul.f32.gmra.mxu0 %v4823
      %v4887 = vpop.f32.mrf.mxu0
      %v4888 = vadd.f32 0.0, %v4887
      %4889 = vmatmul.f32.gmra.mxu0 %v4826
      %v4890 = vpop.f32.mrf.mxu0
      %v4891 = vadd.f32 0.0, %v4890
      %4892 = vmatmul.f32.gmra.mxu0 %v4829
      %v4893 = vpop.f32.mrf.mxu0
      %v4894 = vadd.f32 0.0, %v4893
      %4895 = vmatmul.f32.gmra.mxu0 %v4832
      %v4896 = vpop.f32.mrf.mxu0
      %v4897 = vadd.f32 0.0, %v4896
      %4898 = vmatmul.f32.gmra.mxu0 %v4835
      %v4899 = vpop.f32.mrf.mxu0
      %v4900 = vadd.f32 0.0, %v4899
      %4901 = vdwg.mxu0
      %v4903 = vsel %vm1198, %v4763, 0
      %v4906 = vsel %vm1198, %v4764, 0
      %v4909 = vsel %vm1198, %v4765, 0
      %v4912 = vsel %vm1198, %v4766, 0
      %v4915 = vsel %vm1198, %v4767, 0
      %v4918 = vsel %vm1198, %v4768, 0
      %v4921 = vsel %vm1198, %v4769, 0
      %v4924 = vsel %vm1198, %v4770, 0
      %v4927 = vsel %vm1198, %v4771, 0
      %v4930 = vsel %vm1198, %v4772, 0
      %v4933 = vsel %vm1198, %v4773, 0
      %v4936 = vsel %vm1198, %v4774, 0
      %v4939 = vsel %vm1198, %v4775, 0
      %v4942 = vsel %vm1198, %v4776, 0
      %v4945 = vsel %vm1198, %v4777, 0
      %v4948 = vsel %vm1198, %v4778, 0
      %4950 = vmatpush.msra.mxu0 0.0
      %4951 = vmatpush.msra.mxu0 0.0
      %4952 = vmatpush.msra.mxu0 0.0
      %4953 = vmatpush.msra.mxu0 0.0
      %4954 = vmatpush.msra.mxu0 0.0
      %4955 = vmatpush.msra.mxu0 0.0
      %4956 = vmatpush.msra.mxu0 0.0
      %4957 = vmatpush.msra.mxu0 0.0
      %4958 = vmatpush.msra.mxu0 0.0
      %4959 = vmatpush.msra.mxu0 0.0
      %4960 = vmatpush.msra.mxu0 0.0
      %4961 = vmatpush.msra.mxu0 0.0
      %4962 = vmatpush.msra.mxu0 %v4783
      %4963 = vmatpush.msra.mxu0 %v4782
      %4964 = vmatpush.msra.mxu0 %v4781
      %4965 = vmatpush.msra.mxu0 %v4780
      %4966 = vmatmul.f32.gmra.mxu0 %v4903
      %v4967 = vpop.f32.mrf.mxu0
      %v4968 = vadd.f32 %v4855, %v4967
      %4969 = vmatmul.f32.gmra.mxu0 %v4906
      %v4970 = vpop.f32.mrf.mxu0
      %v4971 = vadd.f32 %v4858, %v4970
      %4972 = vmatmul.f32.gmra.mxu0 %v4909
      %v4973 = vpop.f32.mrf.mxu0
      %v4974 = vadd.f32 %v4861, %v4973
      %4975 = vmatmul.f32.gmra.mxu0 %v4912
      %v4976 = vpop.f32.mrf.mxu0
      %v4977 = vadd.f32 %v4864, %v4976
      %4978 = vmatmul.f32.gmra.mxu0 %v4915
      %v4979 = vpop.f32.mrf.mxu0
      %v4980 = vadd.f32 %v4867, %v4979
      %4981 = vmatmul.f32.gmra.mxu0 %v4918
      %v4982 = vpop.f32.mrf.mxu0
      %v4983 = vadd.f32 %v4870, %v4982
      %4984 = vmatmul.f32.gmra.mxu0 %v4921
      %v4985 = vpop.f32.mrf.mxu0
      %v4986 = vadd.f32 %v4873, %v4985
      %4987 = vmatmul.f32.gmra.mxu0 %v4924
      %v4988 = vpop.f32.mrf.mxu0
      %v4989 = vadd.f32 %v4876, %v4988
      %4990 = vmatmul.f32.gmra.mxu0 %v4927
      %v4991 = vpop.f32.mrf.mxu0
      %v4992 = vadd.f32 %v4879, %v4991
      %4993 = vmatmul.f32.gmra.mxu0 %v4930
      %v4994 = vpop.f32.mrf.mxu0
      %v4995 = vadd.f32 %v4882, %v4994
      %4996 = vmatmul.f32.gmra.mxu0 %v4933
      %v4997 = vpop.f32.mrf.mxu0
      %v4998 = vadd.f32 %v4885, %v4997
      %4999 = vmatmul.f32.gmra.mxu0 %v4936
      %v5000 = vpop.f32.mrf.mxu0
      %v5001 = vadd.f32 %v4888, %v5000
      %5002 = vmatmul.f32.gmra.mxu0 %v4939
      %v5003 = vpop.f32.mrf.mxu0
      %v5004 = vadd.f32 %v4891, %v5003
      %5005 = vmatmul.f32.gmra.mxu0 %v4942
      %v5006 = vpop.f32.mrf.mxu0
      %v5007 = vadd.f32 %v4894, %v5006
      %5008 = vmatmul.f32.gmra.mxu0 %v4945
      %v5009 = vpop.f32.mrf.mxu0
      %v5010 = vadd.f32 %v4897, %v5009
      %5011 = vmatmul.f32.gmra.mxu0 %v4948
      %v5012 = vpop.f32.mrf.mxu0
      %v5013 = vadd.f32 %v4900, %v5012
      %5014 = vdwg.mxu0
      %v5015 = vld [vmem:[%s6 + $0x4] sm:$0x1]
      %v5016 = vperm.slane %v5015, 0
      %v5017 = vadd.f32 %v4968, %v5016
      %v5018 = vadd.f32 %v4971, %v5016
      %v5019 = vadd.f32 %v4974, %v5016
      %v5020 = vadd.f32 %v4977, %v5016
      %v5021 = vadd.f32 %v4980, %v5016
      %v5022 = vadd.f32 %v4983, %v5016
      %v5023 = vadd.f32 %v4986, %v5016
      %v5024 = vadd.f32 %v4989, %v5016
      %v5025 = vadd.f32 %v4992, %v5016
      %v5026 = vadd.f32 %v4995, %v5016
      %v5027 = vadd.f32 %v4998, %v5016
      %v5028 = vadd.f32 %v5001, %v5016
      %v5029 = vadd.f32 %v5004, %v5016
      %v5030 = vadd.f32 %v5007, %v5016
      %v5031 = vadd.f32 %v5010, %v5016
      %v5032 = vadd.f32 %v5013, %v5016
      %v5033 = vtanh.pop %v5017
      %v5034 = vtanh.pop %v5018
      %v5035 = vtanh.pop %v5019
      %v5036 = vtanh.pop %v5020
      %v5037 = vtanh.pop %v5021
      %v5038 = vtanh.pop %v5022
      %v5039 = vtanh.pop %v5023
      %v5040 = vtanh.pop %v5024
      %v5041 = vtanh.pop %v5025
      %v5042 = vtanh.pop %v5026
      %v5043 = vtanh.pop %v5027
      %v5044 = vtanh.pop %v5028
      %v5045 = vtanh.pop %v5029
      %v5046 = vtanh.pop %v5030
      %v5047 = vtanh.pop %v5031
      %v5048 = vtanh.pop %v5032
      %v5049 = vxor.u32 %v5017, 2147483648
      %v5050 = vxor.u32 %v5018, 2147483648
      %v5051 = vxor.u32 %v5019, 2147483648
      %v5052 = vxor.u32 %v5020, 2147483648
      %v5053 = vxor.u32 %v5021, 2147483648
      %v5054 = vxor.u32 %v5022, 2147483648
      %v5055 = vxor.u32 %v5023, 2147483648
      %v5056 = vxor.u32 %v5024, 2147483648
      %v5057 = vxor.u32 %v5025, 2147483648
      %v5058 = vxor.u32 %v5026, 2147483648
      %v5059 = vxor.u32 %v5027, 2147483648
      %v5060 = vxor.u32 %v5028, 2147483648
      %v5061 = vxor.u32 %v5029, 2147483648
      %v5062 = vxor.u32 %v5030, 2147483648
      %v5063 = vxor.u32 %v5031, 2147483648
      %v5064 = vxor.u32 %v5032, 2147483648
      %v5065 = vmul.f32 %v5049, 1.442695
      %v5066 = vpow.pop %v5065
      %v5067 = vmul.f32 %v5050, 1.442695
      %v5068 = vpow.pop %v5067
      %v5069 = vmul.f32 %v5051, 1.442695
      %v5070 = vpow.pop %v5069
      %v5071 = vmul.f32 %v5052, 1.442695
      %v5072 = vpow.pop %v5071
      %v5073 = vmul.f32 %v5053, 1.442695
      %v5074 = vpow.pop %v5073
      %v5075 = vmul.f32 %v5054, 1.442695
      %v5076 = vpow.pop %v5075
      %v5077 = vmul.f32 %v5055, 1.442695
      %v5078 = vpow.pop %v5077
      %v5079 = vmul.f32 %v5056, 1.442695
      %v5080 = vpow.pop %v5079
      %v5081 = vmul.f32 %v5057, 1.442695
      %v5082 = vpow.pop %v5081
      %v5083 = vmul.f32 %v5058, 1.442695
      %v5084 = vpow.pop %v5083
      %v5085 = vmul.f32 %v5059, 1.442695
      %v5086 = vpow.pop %v5085
      %v5087 = vmul.f32 %v5060, 1.442695
      %v5088 = vpow.pop %v5087
      %v5089 = vmul.f32 %v5061, 1.442695
      %v5090 = vpow.pop %v5089
      %v5091 = vmul.f32 %v5062, 1.442695
      %v5092 = vpow.pop %v5091
      %v5093 = vmul.f32 %v5063, 1.442695
      %v5094 = vpow.pop %v5093
      %v5095 = vmul.f32 %v5064, 1.442695
      %v5096 = vpow.pop %v5095
      %v5097 = vadd.f32 %v5066, 1.0
      %v5098 = vadd.f32 %v5068, 1.0
      %v5099 = vadd.f32 %v5070, 1.0
      %v5100 = vadd.f32 %v5072, 1.0
      %v5101 = vadd.f32 %v5074, 1.0
      %v5102 = vadd.f32 %v5076, 1.0
      %v5103 = vadd.f32 %v5078, 1.0
      %v5104 = vadd.f32 %v5080, 1.0
      %v5105 = vadd.f32 %v5082, 1.0
      %v5106 = vadd.f32 %v5084, 1.0
      %v5107 = vadd.f32 %v5086, 1.0
      %v5108 = vadd.f32 %v5088, 1.0
      %v5109 = vadd.f32 %v5090, 1.0
      %v5110 = vadd.f32 %v5092, 1.0
      %v5111 = vadd.f32 %v5094, 1.0
      %v5112 = vadd.f32 %v5096, 1.0
      %v5113 = vrcp.pop %v5097
      %v5114 = vmul.f32 %v5097, %v5113
      %v5115 = vsub.f32 1.0, %v5114
      %v5116 = vmul.f32 %v5113, %v5115
      %v5117 = vadd.f32 %v5113, %v5116
      %vm5118 = vweird.f32 %v5097
      %vm5119 = vweird.f32 %v5113
      %vm5120 = vmor %vm5118, %vm5119
      %v5121 = vsel %vm5120, %v5113, %v5117
      %v5122 = vand.u32 2147483647, %v5097
      %vm5123 = vcmp.eq.f32.partialorder %v5122, 8.507059e+37
      %v5124 = vand.u32 %v5097, 2147483648
      %v5125 = vor.u32 1.1754944e-38, %v5124
      %v5126 = vsel %vm5123, %v5125, %v5121
      %v5127 = vmul.f32 1.0, %v5126
      %v5128 = vrcp.pop %v5098
      %v5129 = vmul.f32 %v5098, %v5128
      %v5130 = vsub.f32 1.0, %v5129
      %v5131 = vmul.f32 %v5128, %v5130
      %v5132 = vadd.f32 %v5128, %v5131
      %vm5133 = vweird.f32 %v5098
      %vm5134 = vweird.f32 %v5128
      %vm5135 = vmor %vm5133, %vm5134
      %v5136 = vsel %vm5135, %v5128, %v5132
      %v5137 = vand.u32 2147483647, %v5098
      %vm5138 = vcmp.eq.f32.partialorder %v5137, 8.507059e+37
      %v5139 = vand.u32 %v5098, 2147483648
      %v5140 = vor.u32 1.1754944e-38, %v5139
      %v5141 = vsel %vm5138, %v5140, %v5136
      %v5142 = vmul.f32 1.0, %v5141
      %v5143 = vrcp.pop %v5099
      %v5144 = vmul.f32 %v5099, %v5143
      %v5145 = vsub.f32 1.0, %v5144
      %v5146 = vmul.f32 %v5143, %v5145
      %v5147 = vadd.f32 %v5143, %v5146
      %vm5148 = vweird.f32 %v5099
      %vm5149 = vweird.f32 %v5143
      %vm5150 = vmor %vm5148, %vm5149
      %v5151 = vsel %vm5150, %v5143, %v5147
      %v5152 = vand.u32 2147483647, %v5099
      %vm5153 = vcmp.eq.f32.partialorder %v5152, 8.507059e+37
      %v5154 = vand.u32 %v5099, 2147483648
      %v5155 = vor.u32 1.1754944e-38, %v5154
      %v5156 = vsel %vm5153, %v5155, %v5151
      %v5157 = vmul.f32 1.0, %v5156
      %v5158 = vrcp.pop %v5100
      %v5159 = vmul.f32 %v5100, %v5158
      %v5160 = vsub.f32 1.0, %v5159
      %v5161 = vmul.f32 %v5158, %v5160
      %v5162 = vadd.f32 %v5158, %v5161
      %vm5163 = vweird.f32 %v5100
      %vm5164 = vweird.f32 %v5158
      %vm5165 = vmor %vm5163, %vm5164
      %v5166 = vsel %vm5165, %v5158, %v5162
      %v5167 = vand.u32 2147483647, %v5100
      %vm5168 = vcmp.eq.f32.partialorder %v5167, 8.507059e+37
      %v5169 = vand.u32 %v5100, 2147483648
      %v5170 = vor.u32 1.1754944e-38, %v5169
      %v5171 = vsel %vm5168, %v5170, %v5166
      %v5172 = vmul.f32 1.0, %v5171
      %v5173 = vrcp.pop %v5101
      %v5174 = vmul.f32 %v5101, %v5173
      %v5175 = vsub.f32 1.0, %v5174
      %v5176 = vmul.f32 %v5173, %v5175
      %v5177 = vadd.f32 %v5173, %v5176
      %vm5178 = vweird.f32 %v5101
      %vm5179 = vweird.f32 %v5173
      %vm5180 = vmor %vm5178, %vm5179
      %v5181 = vsel %vm5180, %v5173, %v5177
      %v5182 = vand.u32 2147483647, %v5101
      %vm5183 = vcmp.eq.f32.partialorder %v5182, 8.507059e+37
      %v5184 = vand.u32 %v5101, 2147483648
      %v5185 = vor.u32 1.1754944e-38, %v5184
      %v5186 = vsel %vm5183, %v5185, %v5181
      %v5187 = vmul.f32 1.0, %v5186
      %v5188 = vrcp.pop %v5102
      %v5189 = vmul.f32 %v5102, %v5188
      %v5190 = vsub.f32 1.0, %v5189
      %v5191 = vmul.f32 %v5188, %v5190
      %v5192 = vadd.f32 %v5188, %v5191
      %vm5193 = vweird.f32 %v5102
      %vm5194 = vweird.f32 %v5188
      %vm5195 = vmor %vm5193, %vm5194
      %v5196 = vsel %vm5195, %v5188, %v5192
      %v5197 = vand.u32 2147483647, %v5102
      %vm5198 = vcmp.eq.f32.partialorder %v5197, 8.507059e+37
      %v5199 = vand.u32 %v5102, 2147483648
      %v5200 = vor.u32 1.1754944e-38, %v5199
      %v5201 = vsel %vm5198, %v5200, %v5196
      %v5202 = vmul.f32 1.0, %v5201
      %v5203 = vrcp.pop %v5103
      %v5204 = vmul.f32 %v5103, %v5203
      %v5205 = vsub.f32 1.0, %v5204
      %v5206 = vmul.f32 %v5203, %v5205
      %v5207 = vadd.f32 %v5203, %v5206
      %vm5208 = vweird.f32 %v5103
      %vm5209 = vweird.f32 %v5203
      %vm5210 = vmor %vm5208, %vm5209
      %v5211 = vsel %vm5210, %v5203, %v5207
      %v5212 = vand.u32 2147483647, %v5103
      %vm5213 = vcmp.eq.f32.partialorder %v5212, 8.507059e+37
      %v5214 = vand.u32 %v5103, 2147483648
      %v5215 = vor.u32 1.1754944e-38, %v5214
      %v5216 = vsel %vm5213, %v5215, %v5211
      %v5217 = vmul.f32 1.0, %v5216
      %v5218 = vrcp.pop %v5104
      %v5219 = vmul.f32 %v5104, %v5218
      %v5220 = vsub.f32 1.0, %v5219
      %v5221 = vmul.f32 %v5218, %v5220
      %v5222 = vadd.f32 %v5218, %v5221
      %vm5223 = vweird.f32 %v5104
      %vm5224 = vweird.f32 %v5218
      %vm5225 = vmor %vm5223, %vm5224
      %v5226 = vsel %vm5225, %v5218, %v5222
      %v5227 = vand.u32 2147483647, %v5104
      %vm5228 = vcmp.eq.f32.partialorder %v5227, 8.507059e+37
      %v5229 = vand.u32 %v5104, 2147483648
      %v5230 = vor.u32 1.1754944e-38, %v5229
      %v5231 = vsel %vm5228, %v5230, %v5226
      %v5232 = vmul.f32 1.0, %v5231
      %v5233 = vrcp.pop %v5105
      %v5234 = vmul.f32 %v5105, %v5233
      %v5235 = vsub.f32 1.0, %v5234
      %v5236 = vmul.f32 %v5233, %v5235
      %v5237 = vadd.f32 %v5233, %v5236
      %vm5238 = vweird.f32 %v5105
      %vm5239 = vweird.f32 %v5233
      %vm5240 = vmor %vm5238, %vm5239
      %v5241 = vsel %vm5240, %v5233, %v5237
      %v5242 = vand.u32 2147483647, %v5105
      %vm5243 = vcmp.eq.f32.partialorder %v5242, 8.507059e+37
      %v5244 = vand.u32 %v5105, 2147483648
      %v5245 = vor.u32 1.1754944e-38, %v5244
      %v5246 = vsel %vm5243, %v5245, %v5241
      %v5247 = vmul.f32 1.0, %v5246
      %v5248 = vrcp.pop %v5106
      %v5249 = vmul.f32 %v5106, %v5248
      %v5250 = vsub.f32 1.0, %v5249
      %v5251 = vmul.f32 %v5248, %v5250
      %v5252 = vadd.f32 %v5248, %v5251
      %vm5253 = vweird.f32 %v5106
      %vm5254 = vweird.f32 %v5248
      %vm5255 = vmor %vm5253, %vm5254
      %v5256 = vsel %vm5255, %v5248, %v5252
      %v5257 = vand.u32 2147483647, %v5106
      %vm5258 = vcmp.eq.f32.partialorder %v5257, 8.507059e+37
      %v5259 = vand.u32 %v5106, 2147483648
      %v5260 = vor.u32 1.1754944e-38, %v5259
      %v5261 = vsel %vm5258, %v5260, %v5256
      %v5262 = vmul.f32 1.0, %v5261
      %v5263 = vrcp.pop %v5107
      %v5264 = vmul.f32 %v5107, %v5263
      %v5265 = vsub.f32 1.0, %v5264
      %v5266 = vmul.f32 %v5263, %v5265
      %v5267 = vadd.f32 %v5263, %v5266
      %vm5268 = vweird.f32 %v5107
      %vm5269 = vweird.f32 %v5263
      %vm5270 = vmor %vm5268, %vm5269
      %v5271 = vsel %vm5270, %v5263, %v5267
      %v5272 = vand.u32 2147483647, %v5107
      %vm5273 = vcmp.eq.f32.partialorder %v5272, 8.507059e+37
      %v5274 = vand.u32 %v5107, 2147483648
      %v5275 = vor.u32 1.1754944e-38, %v5274
      %v5276 = vsel %vm5273, %v5275, %v5271
      %v5277 = vmul.f32 1.0, %v5276
      %v5278 = vrcp.pop %v5108
      %v5279 = vmul.f32 %v5108, %v5278
      %v5280 = vsub.f32 1.0, %v5279
      %v5281 = vmul.f32 %v5278, %v5280
      %v5282 = vadd.f32 %v5278, %v5281
      %vm5283 = vweird.f32 %v5108
      %vm5284 = vweird.f32 %v5278
      %vm5285 = vmor %vm5283, %vm5284
      %v5286 = vsel %vm5285, %v5278, %v5282
      %v5287 = vand.u32 2147483647, %v5108
      %vm5288 = vcmp.eq.f32.partialorder %v5287, 8.507059e+37
      %v5289 = vand.u32 %v5108, 2147483648
      %v5290 = vor.u32 1.1754944e-38, %v5289
      %v5291 = vsel %vm5288, %v5290, %v5286
      %v5292 = vmul.f32 1.0, %v5291
      %v5293 = vrcp.pop %v5109
      %v5294 = vmul.f32 %v5109, %v5293
      %v5295 = vsub.f32 1.0, %v5294
      %v5296 = vmul.f32 %v5293, %v5295
      %v5297 = vadd.f32 %v5293, %v5296
      %vm5298 = vweird.f32 %v5109
      %vm5299 = vweird.f32 %v5293
      %vm5300 = vmor %vm5298, %vm5299
      %v5301 = vsel %vm5300, %v5293, %v5297
      %v5302 = vand.u32 2147483647, %v5109
      %vm5303 = vcmp.eq.f32.partialorder %v5302, 8.507059e+37
      %v5304 = vand.u32 %v5109, 2147483648
      %v5305 = vor.u32 1.1754944e-38, %v5304
      %v5306 = vsel %vm5303, %v5305, %v5301
      %v5307 = vmul.f32 1.0, %v5306
      %v5308 = vrcp.pop %v5110
      %v5309 = vmul.f32 %v5110, %v5308
      %v5310 = vsub.f32 1.0, %v5309
      %v5311 = vmul.f32 %v5308, %v5310
      %v5312 = vadd.f32 %v5308, %v5311
      %vm5313 = vweird.f32 %v5110
      %vm5314 = vweird.f32 %v5308
      %vm5315 = vmor %vm5313, %vm5314
      %v5316 = vsel %vm5315, %v5308, %v5312
      %v5317 = vand.u32 2147483647, %v5110
      %vm5318 = vcmp.eq.f32.partialorder %v5317, 8.507059e+37
      %v5319 = vand.u32 %v5110, 2147483648
      %v5320 = vor.u32 1.1754944e-38, %v5319
      %v5321 = vsel %vm5318, %v5320, %v5316
      %v5322 = vmul.f32 1.0, %v5321
      %v5323 = vrcp.pop %v5111
      %v5324 = vmul.f32 %v5111, %v5323
      %v5325 = vsub.f32 1.0, %v5324
      %v5326 = vmul.f32 %v5323, %v5325
      %v5327 = vadd.f32 %v5323, %v5326
      %vm5328 = vweird.f32 %v5111
      %vm5329 = vweird.f32 %v5323
      %vm5330 = vmor %vm5328, %vm5329
      %v5331 = vsel %vm5330, %v5323, %v5327
      %v5332 = vand.u32 2147483647, %v5111
      %vm5333 = vcmp.eq.f32.partialorder %v5332, 8.507059e+37
      %v5334 = vand.u32 %v5111, 2147483648
      %v5335 = vor.u32 1.1754944e-38, %v5334
      %v5336 = vsel %vm5333, %v5335, %v5331
      %v5337 = vmul.f32 1.0, %v5336
      %v5338 = vrcp.pop %v5112
      %v5339 = vmul.f32 %v5112, %v5338
      %v5340 = vsub.f32 1.0, %v5339
      %v5341 = vmul.f32 %v5338, %v5340
      %v5342 = vadd.f32 %v5338, %v5341
      %vm5343 = vweird.f32 %v5112
      %vm5344 = vweird.f32 %v5338
      %vm5345 = vmor %vm5343, %vm5344
      %v5346 = vsel %vm5345, %v5338, %v5342
      %v5347 = vand.u32 2147483647, %v5112
      %vm5348 = vcmp.eq.f32.partialorder %v5347, 8.507059e+37
      %v5349 = vand.u32 %v5112, 2147483648
      %v5350 = vor.u32 1.1754944e-38, %v5349
      %v5351 = vsel %vm5348, %v5350, %v5346
      %v5352 = vmul.f32 1.0, %v5351
      %5369 = vrot.lane.b32.xlu0 %v5127, 96
      %v5370 = vpop.permute.xlu0 %5369
      %5371 = vrot.lane.b32.xlu0 %v5142, 96
      %v5372 = vpop.permute.xlu0 %5371
      %5373 = vrot.lane.b32.xlu0 %v5157, 96
      %v5374 = vpop.permute.xlu0 %5373
      %5375 = vrot.lane.b32.xlu0 %v5172, 96
      %v5376 = vpop.permute.xlu0 %5375
      %5377 = vrot.lane.b32.xlu0 %v5187, 96
      %v5378 = vpop.permute.xlu0 %5377
      %5379 = vrot.lane.b32.xlu0 %v5202, 96
      %v5380 = vpop.permute.xlu0 %5379
      %5381 = vrot.lane.b32.xlu0 %v5217, 96
      %v5382 = vpop.permute.xlu0 %5381
      %5383 = vrot.lane.b32.xlu0 %v5232, 96
      %v5384 = vpop.permute.xlu0 %5383
      %5385 = vrot.lane.b32.xlu0 %v5247, 96
      %v5386 = vpop.permute.xlu0 %5385
      %5387 = vrot.lane.b32.xlu0 %v5262, 96
      %v5388 = vpop.permute.xlu0 %5387
      %5389 = vrot.lane.b32.xlu0 %v5277, 96
      %v5390 = vpop.permute.xlu0 %5389
      %5391 = vrot.lane.b32.xlu0 %v5292, 96
      %v5392 = vpop.permute.xlu0 %5391
      %5393 = vrot.lane.b32.xlu0 %v5307, 96
      %v5394 = vpop.permute.xlu0 %5393
      %5395 = vrot.lane.b32.xlu0 %v5322, 96
      %v5396 = vpop.permute.xlu0 %5395
      %5397 = vrot.lane.b32.xlu0 %v5337, 96
      %v5398 = vpop.permute.xlu0 %5397
      %5399 = vrot.lane.b32.xlu0 %v5352, 96
      %v5400 = vpop.permute.xlu0 %5399
      %v5417 = vmul.f32 %v5033, %v5370
      %v5418 = vmul.f32 %v5034, %v5372
      %v5419 = vmul.f32 %v5035, %v5374
      %v5420 = vmul.f32 %v5036, %v5376
      %v5421 = vmul.f32 %v5037, %v5378
      %v5422 = vmul.f32 %v5038, %v5380
      %v5423 = vmul.f32 %v5039, %v5382
      %v5424 = vmul.f32 %v5040, %v5384
      %v5425 = vmul.f32 %v5041, %v5386
      %v5426 = vmul.f32 %v5042, %v5388
      %v5427 = vmul.f32 %v5043, %v5390
      %v5428 = vmul.f32 %v5044, %v5392
      %v5429 = vmul.f32 %v5045, %v5394
      %v5430 = vmul.f32 %v5046, %v5396
      %v5431 = vmul.f32 %v5047, %v5398
      %v5432 = vmul.f32 %v5048, %v5400
      %s5433 = scalar_lea.vmem %s7, 128
      %v5434 = vld [vmem:[%s5433] sm:$0xff]
      %v5435 = vld [vmem:[%s5433 + $0x8] sm:$0xff]
      %v5436 = vld [vmem:[%s5433 + $0x10] sm:$0xff]
      %v5437 = vld [vmem:[%s5433 + $0x18] sm:$0xff]
      %v5438 = vld [vmem:[%s8 + $0x4] sm:$0x1]
      %v5439 = vperm.slane %v5438, 0
      %v5441 = vsel %vm1198, %v5417, 0
      %v5444 = vsel %vm1198, %v5418, 0
      %v5447 = vsel %vm1198, %v5419, 0
      %v5450 = vsel %vm1198, %v5420, 0
      %v5453 = vsel %vm1198, %v5421, 0
      %v5456 = vsel %vm1198, %v5422, 0
      %v5459 = vsel %vm1198, %v5423, 0
      %v5462 = vsel %vm1198, %v5424, 0
      %v5465 = vsel %vm1198, %v5425, 0
      %v5468 = vsel %vm1198, %v5426, 0
      %v5471 = vsel %vm1198, %v5427, 0
      %v5474 = vsel %vm1198, %v5428, 0
      %v5477 = vsel %vm1198, %v5429, 0
      %v5480 = vsel %vm1198, %v5430, 0
      %v5483 = vsel %vm1198, %v5431, 0
      %v5486 = vsel %vm1198, %v5432, 0
      %5488 = vmatpush.msra.mxu0 0.0
      %5489 = vmatpush.msra.mxu0 0.0
      %5490 = vmatpush.msra.mxu0 0.0
      %5491 = vmatpush.msra.mxu0 0.0
      %5492 = vmatpush.msra.mxu0 0.0
      %5493 = vmatpush.msra.mxu0 0.0
      %5494 = vmatpush.msra.mxu0 0.0
      %5495 = vmatpush.msra.mxu0 0.0
      %5496 = vmatpush.msra.mxu0 0.0
      %5497 = vmatpush.msra.mxu0 0.0
      %5498 = vmatpush.msra.mxu0 0.0
      %5499 = vmatpush.msra.mxu0 0.0
      %5500 = vmatpush.msra.mxu0 %v5437
      %5501 = vmatpush.msra.mxu0 %v5436
      %5502 = vmatpush.msra.mxu0 %v5435
      %5503 = vmatpush.msra.mxu0 %v5434
      %5504 = vmatmul.f32.gmra.mxu0 %v5441
      %v5505 = vpop.f32.mrf.mxu0
      %v5506 = vadd.f32 %v5439, %v5505
      %5507 = vmatmul.f32.gmra.mxu0 %v5444
      %v5508 = vpop.f32.mrf.mxu0
      %v5509 = vadd.f32 %v5439, %v5508
      %5510 = vmatmul.f32.gmra.mxu0 %v5447
      %v5511 = vpop.f32.mrf.mxu0
      %v5512 = vadd.f32 %v5439, %v5511
      %5513 = vmatmul.f32.gmra.mxu0 %v5450
      %v5514 = vpop.f32.mrf.mxu0
      %v5515 = vadd.f32 %v5439, %v5514
      %5516 = vmatmul.f32.gmra.mxu0 %v5453
      %v5517 = vpop.f32.mrf.mxu0
      %v5518 = vadd.f32 %v5439, %v5517
      %5519 = vmatmul.f32.gmra.mxu0 %v5456
      %v5520 = vpop.f32.mrf.mxu0
      %v5521 = vadd.f32 %v5439, %v5520
      %5522 = vmatmul.f32.gmra.mxu0 %v5459
      %v5523 = vpop.f32.mrf.mxu0
      %v5524 = vadd.f32 %v5439, %v5523
      %5525 = vmatmul.f32.gmra.mxu0 %v5462
      %v5526 = vpop.f32.mrf.mxu0
      %v5527 = vadd.f32 %v5439, %v5526
      %5528 = vmatmul.f32.gmra.mxu0 %v5465
      %v5529 = vpop.f32.mrf.mxu0
      %v5530 = vadd.f32 %v5439, %v5529
      %5531 = vmatmul.f32.gmra.mxu0 %v5468
      %v5532 = vpop.f32.mrf.mxu0
      %v5533 = vadd.f32 %v5439, %v5532
      %5534 = vmatmul.f32.gmra.mxu0 %v5471
      %v5535 = vpop.f32.mrf.mxu0
      %v5536 = vadd.f32 %v5439, %v5535
      %5537 = vmatmul.f32.gmra.mxu0 %v5474
      %v5538 = vpop.f32.mrf.mxu0
      %v5539 = vadd.f32 %v5439, %v5538
      %5540 = vmatmul.f32.gmra.mxu0 %v5477
      %v5541 = vpop.f32.mrf.mxu0
      %v5542 = vadd.f32 %v5439, %v5541
      %5543 = vmatmul.f32.gmra.mxu0 %v5480
      %v5544 = vpop.f32.mrf.mxu0
      %v5545 = vadd.f32 %v5439, %v5544
      %5546 = vmatmul.f32.gmra.mxu0 %v5483
      %v5547 = vpop.f32.mrf.mxu0
      %v5548 = vadd.f32 %v5439, %v5547
      %5549 = vmatmul.f32.gmra.mxu0 %v5486
      %v5550 = vpop.f32.mrf.mxu0
      %v5551 = vadd.f32 %v5439, %v5550
      %5552 = vdwg.mxu0
      %v5553 = vadd.f32 %v5506, %v4655
      %v5554 = vadd.f32 %v5509, %v4656
      %v5555 = vadd.f32 %v5512, %v4657
      %v5556 = vadd.f32 %v5515, %v4658
      %v5557 = vadd.f32 %v5518, %v4659
      %v5558 = vadd.f32 %v5521, %v4660
      %v5559 = vadd.f32 %v5524, %v4661
      %v5560 = vadd.f32 %v5527, %v4662
      %v5561 = vadd.f32 %v5530, %v4663
      %v5562 = vadd.f32 %v5533, %v4664
      %v5563 = vadd.f32 %v5536, %v4665
      %v5564 = vadd.f32 %v5539, %v4666
      %v5565 = vadd.f32 %v5542, %v4667
      %v5566 = vadd.f32 %v5545, %v4668
      %v5567 = vadd.f32 %v5548, %v4669
      %v5568 = vadd.f32 %v5551, %v4670
      %v5569 = vmax.f32 %v5509, 0.0
      %v5570 = vmax.f32 %v5515, 0.0
      %v5571 = vmax.f32 %v5521, 0.0
      %v5572 = vmax.f32 %v5527, 0.0
      %v5573 = vmax.f32 %v5533, 0.0
      %v5574 = vmax.f32 %v5539, 0.0
      %v5575 = vmax.f32 %v5545, 0.0
      %v5576 = vmax.f32 %v5551, 0.0
      %s5577 = scalar_lea.vmem %s9, 128
      %v5578 = vld [vmem:[%s5577] sm:$0xff]
      %v5579 = vld [vmem:[%s5577 + $0x8] sm:$0xff]
      %v5580 = vld [vmem:[%s5577 + $0x10] sm:$0xff]
      %v5581 = vld [vmem:[%s5577 + $0x18] sm:$0xff]
      %v5590 = vrot.slane %v5569, 7
      %v5591 = vrot.slane %v5570, 6
      %v5592 = vsel %vm904, %v5591, %v5590
      %v5593 = vrot.slane %v5571, 5
      %v5594 = vsel %vm906, %v5593, %v5592
      %v5595 = vrot.slane %v5572, 4
      %v5596 = vsel %vm908, %v5595, %v5594
      %v5597 = vrot.slane %v5573, 3
      %v5598 = vsel %vm910, %v5597, %v5596
      %v5599 = vrot.slane %v5574, 2
      %v5600 = vsel %vm912, %v5599, %v5598
      %v5601 = vrot.slane %v5575, 1
      %v5602 = vsel %vm914, %v5601, %v5600
      %v5603 = vsel %vm916, %v5576, %v5602
      %5604 = vrot.lane.b32.xlu0 %v5603, 96
      %v5605 = vpop.permute.xlu0 %5604
      %v5606 = vsel %vm1198, %v5605, 0
      %5608 = vmatpush.msra.mxu0 0.0
      %5609 = vmatpush.msra.mxu0 0.0
      %5610 = vmatpush.msra.mxu0 0.0
      %5611 = vmatpush.msra.mxu0 0.0
      %5612 = vmatpush.msra.mxu0 0.0
      %5613 = vmatpush.msra.mxu0 0.0
      %5614 = vmatpush.msra.mxu0 0.0
      %5615 = vmatpush.msra.mxu0 0.0
      %5616 = vmatpush.msra.mxu0 0.0
      %5617 = vmatpush.msra.mxu0 0.0
      %5618 = vmatpush.msra.mxu0 0.0
      %5619 = vmatpush.msra.mxu0 0.0
      %5620 = vmatpush.msra.mxu0 %v5581
      %5621 = vmatpush.msra.mxu0 %v5580
      %5622 = vmatpush.msra.mxu0 %v5579
      %5623 = vmatpush.msra.mxu0 %v5578
      %5624 = vmatmul.f32.gmra.mxu0 %v5606
      %v5625 = vpop.f32.mrf.mxu0
      %v5626 = vadd.f32 0.0, %v5625
      %5627 = vdwg.mxu0
      %v5628 = vadd.f32 %v4730, %v5626
      %v5629 = vrot.slane %v5553, 4
      %v5630 = vrot.slane %v5554, 4
      %v5631 = vrot.slane %v5555, 4
      %v5632 = vrot.slane %v5556, 4
      %v5633 = vrot.slane %v5557, 4
      %v5634 = vrot.slane %v5558, 4
      %v5635 = vrot.slane %v5559, 4
      %v5636 = vrot.slane %v5560, 4
      %v5637 = vrot.slane %v5561, 4
      %v5638 = vrot.slane %v5562, 4
      %v5639 = vrot.slane %v5563, 4
      %v5640 = vrot.slane %v5564, 4
      %v5641 = vrot.slane %v5565, 4
      %v5642 = vrot.slane %v5566, 4
      %v5643 = vrot.slane %v5567, 4
      %v5644 = vrot.slane %v5568, 4
      %v5645 = vsel %vm2950, %v5643, %v5644
      %v5646 = vsel %vm2950, %v5642, %v5643
      %v5647 = vsel %vm2950, %v5641, %v5642
      %v5648 = vsel %vm2950, %v5640, %v5641
      %v5649 = vsel %vm2950, %v5639, %v5640
      %v5650 = vsel %vm2950, %v5638, %v5639
      %v5651 = vsel %vm2950, %v5637, %v5638
      %v5652 = vsel %vm2950, %v5636, %v5637
      %v5653 = vsel %vm2950, %v5635, %v5636
      %v5654 = vsel %vm2950, %v5634, %v5635
      %v5655 = vsel %vm2950, %v5633, %v5634
      %v5656 = vsel %vm2950, %v5632, %v5633
      %v5657 = vsel %vm2950, %v5631, %v5632
      %v5658 = vsel %vm2950, %v5630, %v5631
      %v5659 = vsel %vm2950, %v5629, %v5630
      %v5660 = vsel %vm2950, %v5644, %v5629
      %v5661 = vsel %vm1138, %v5660, 0.0
      %v5662 = vsel %vm1139, %v5659, 0.0
      %v5663 = vsel %vm1138, %v5658, 0.0
      %v5664 = vsel %vm1139, %v5657, 0.0
      %v5665 = vsel %vm1138, %v5656, 0.0
      %v5666 = vsel %vm1139, %v5655, 0.0
      %v5667 = vsel %vm1138, %v5654, 0.0
      %v5668 = vsel %vm1139, %v5653, 0.0
      %v5669 = vsel %vm1138, %v5652, 0.0
      %v5670 = vsel %vm1139, %v5651, 0.0
      %v5671 = vsel %vm1138, %v5650, 0.0
      %v5672 = vsel %vm1139, %v5649, 0.0
      %v5673 = vsel %vm1138, %v5648, 0.0
      %v5674 = vsel %vm1139, %v5647, 0.0
      %v5675 = vsel %vm1138, %v5646, 0.0
      %v5676 = vsel %vm1139, %v5645, 0.0
      %s5677 = scalar_lea.vmem %s5, 320
      %v5678 = vld [vmem:[%s5677] sm:$0xff]
      %v5679 = vld [vmem:[%s5677 + $0x8] sm:$0xff]
      %v5680 = vld [vmem:[%s5677 + $0x10] sm:$0xff]
      %v5681 = vld [vmem:[%s5677 + $0x18] sm:$0xff]
      %s5682 = scalar_lea.vmem %s5, 352
      %v5683 = vld [vmem:[%s5682] sm:$0xff]
      %v5684 = vld [vmem:[%s5682 + $0x8] sm:$0xff]
      %v5685 = vld [vmem:[%s5682 + $0x10] sm:$0xff]
      %v5686 = vld [vmem:[%s5682 + $0x18] sm:$0xff]
      %v5688 = vsel %vm1198, %v5553, 0
      %v5691 = vsel %vm1198, %v5554, 0
      %v5694 = vsel %vm1198, %v5555, 0
      %v5697 = vsel %vm1198, %v5556, 0
      %v5700 = vsel %vm1198, %v5557, 0
      %v5703 = vsel %vm1198, %v5558, 0
      %v5706 = vsel %vm1198, %v5559, 0
      %v5709 = vsel %vm1198, %v5560, 0
      %v5712 = vsel %vm1198, %v5561, 0
      %v5715 = vsel %vm1198, %v5562, 0
      %v5718 = vsel %vm1198, %v5563, 0
      %v5721 = vsel %vm1198, %v5564, 0
      %v5724 = vsel %vm1198, %v5565, 0
      %v5727 = vsel %vm1198, %v5566, 0
      %v5730 = vsel %vm1198, %v5567, 0
      %v5733 = vsel %vm1198, %v5568, 0
      %5735 = vmatpush.msra.mxu0 0.0
      %5736 = vmatpush.msra.mxu0 0.0
      %5737 = vmatpush.msra.mxu0 0.0
      %5738 = vmatpush.msra.mxu0 0.0
      %5739 = vmatpush.msra.mxu0 0.0
      %5740 = vmatpush.msra.mxu0 0.0
      %5741 = vmatpush.msra.mxu0 0.0
      %5742 = vmatpush.msra.mxu0 0.0
      %5743 = vmatpush.msra.mxu0 0.0
      %5744 = vmatpush.msra.mxu0 0.0
      %5745 = vmatpush.msra.mxu0 0.0
      %5746 = vmatpush.msra.mxu0 0.0
      %5747 = vmatpush.msra.mxu0 %v5686
      %5748 = vmatpush.msra.mxu0 %v5685
      %5749 = vmatpush.msra.mxu0 %v5684
      %5750 = vmatpush.msra.mxu0 %v5683
      %5751 = vmatmul.f32.gmra.mxu0 %v5688
      %v5752 = vpop.f32.mrf.mxu0
      %v5753 = vadd.f32 0.0, %v5752
      %5754 = vmatmul.f32.gmra.mxu0 %v5691
      %v5755 = vpop.f32.mrf.mxu0
      %v5756 = vadd.f32 0.0, %v5755
      %5757 = vmatmul.f32.gmra.mxu0 %v5694
      %v5758 = vpop.f32.mrf.mxu0
      %v5759 = vadd.f32 0.0, %v5758
      %5760 = vmatmul.f32.gmra.mxu0 %v5697
      %v5761 = vpop.f32.mrf.mxu0
      %v5762 = vadd.f32 0.0, %v5761
      %5763 = vmatmul.f32.gmra.mxu0 %v5700
      %v5764 = vpop.f32.mrf.mxu0
      %v5765 = vadd.f32 0.0, %v5764
      %5766 = vmatmul.f32.gmra.mxu0 %v5703
      %v5767 = vpop.f32.mrf.mxu0
      %v5768 = vadd.f32 0.0, %v5767
      %5769 = vmatmul.f32.gmra.mxu0 %v5706
      %v5770 = vpop.f32.mrf.mxu0
      %v5771 = vadd.f32 0.0, %v5770
      %5772 = vmatmul.f32.gmra.mxu0 %v5709
      %v5773 = vpop.f32.mrf.mxu0
      %v5774 = vadd.f32 0.0, %v5773
      %5775 = vmatmul.f32.gmra.mxu0 %v5712
      %v5776 = vpop.f32.mrf.mxu0
      %v5777 = vadd.f32 0.0, %v5776
      %5778 = vmatmul.f32.gmra.mxu0 %v5715
      %v5779 = vpop.f32.mrf.mxu0
      %v5780 = vadd.f32 0.0, %v5779
      %5781 = vmatmul.f32.gmra.mxu0 %v5718
      %v5782 = vpop.f32.mrf.mxu0
      %v5783 = vadd.f32 0.0, %v5782
      %5784 = vmatmul.f32.gmra.mxu0 %v5721
      %v5785 = vpop.f32.mrf.mxu0
      %v5786 = vadd.f32 0.0, %v5785
      %5787 = vmatmul.f32.gmra.mxu0 %v5724
      %v5788 = vpop.f32.mrf.mxu0
      %v5789 = vadd.f32 0.0, %v5788
      %5790 = vmatmul.f32.gmra.mxu0 %v5727
      %v5791 = vpop.f32.mrf.mxu0
      %v5792 = vadd.f32 0.0, %v5791
      %5793 = vmatmul.f32.gmra.mxu0 %v5730
      %v5794 = vpop.f32.mrf.mxu0
      %v5795 = vadd.f32 0.0, %v5794
      %5796 = vmatmul.f32.gmra.mxu0 %v5733
      %v5797 = vpop.f32.mrf.mxu0
      %v5798 = vadd.f32 0.0, %v5797
      %5799 = vdwg.mxu0
      %v5801 = vsel %vm1198, %v5661, 0
      %v5804 = vsel %vm1198, %v5662, 0
      %v5807 = vsel %vm1198, %v5663, 0
      %v5810 = vsel %vm1198, %v5664, 0
      %v5813 = vsel %vm1198, %v5665, 0
      %v5816 = vsel %vm1198, %v5666, 0
      %v5819 = vsel %vm1198, %v5667, 0
      %v5822 = vsel %vm1198, %v5668, 0
      %v5825 = vsel %vm1198, %v5669, 0
      %v5828 = vsel %vm1198, %v5670, 0
      %v5831 = vsel %vm1198, %v5671, 0
      %v5834 = vsel %vm1198, %v5672, 0
      %v5837 = vsel %vm1198, %v5673, 0
      %v5840 = vsel %vm1198, %v5674, 0
      %v5843 = vsel %vm1198, %v5675, 0
      %v5846 = vsel %vm1198, %v5676, 0
      %5848 = vmatpush.msra.mxu0 0.0
      %5849 = vmatpush.msra.mxu0 0.0
      %5850 = vmatpush.msra.mxu0 0.0
      %5851 = vmatpush.msra.mxu0 0.0
      %5852 = vmatpush.msra.mxu0 0.0
      %5853 = vmatpush.msra.mxu0 0.0
      %5854 = vmatpush.msra.mxu0 0.0
      %5855 = vmatpush.msra.mxu0 0.0
      %5856 = vmatpush.msra.mxu0 0.0
      %5857 = vmatpush.msra.mxu0 0.0
      %5858 = vmatpush.msra.mxu0 0.0
      %5859 = vmatpush.msra.mxu0 0.0
      %5860 = vmatpush.msra.mxu0 %v5681
      %5861 = vmatpush.msra.mxu0 %v5680
      %5862 = vmatpush.msra.mxu0 %v5679
      %5863 = vmatpush.msra.mxu0 %v5678
      %5864 = vmatmul.f32.gmra.mxu0 %v5801
      %v5865 = vpop.f32.mrf.mxu0
      %v5866 = vadd.f32 %v5753, %v5865
      %5867 = vmatmul.f32.gmra.mxu0 %v5804
      %v5868 = vpop.f32.mrf.mxu0
      %v5869 = vadd.f32 %v5756, %v5868
      %5870 = vmatmul.f32.gmra.mxu0 %v5807
      %v5871 = vpop.f32.mrf.mxu0
      %v5872 = vadd.f32 %v5759, %v5871
      %5873 = vmatmul.f32.gmra.mxu0 %v5810
      %v5874 = vpop.f32.mrf.mxu0
      %v5875 = vadd.f32 %v5762, %v5874
      %5876 = vmatmul.f32.gmra.mxu0 %v5813
      %v5877 = vpop.f32.mrf.mxu0
      %v5878 = vadd.f32 %v5765, %v5877
      %5879 = vmatmul.f32.gmra.mxu0 %v5816
      %v5880 = vpop.f32.mrf.mxu0
      %v5881 = vadd.f32 %v5768, %v5880
      %5882 = vmatmul.f32.gmra.mxu0 %v5819
      %v5883 = vpop.f32.mrf.mxu0
      %v5884 = vadd.f32 %v5771, %v5883
      %5885 = vmatmul.f32.gmra.mxu0 %v5822
      %v5886 = vpop.f32.mrf.mxu0
      %v5887 = vadd.f32 %v5774, %v5886
      %5888 = vmatmul.f32.gmra.mxu0 %v5825
      %v5889 = vpop.f32.mrf.mxu0
      %v5890 = vadd.f32 %v5777, %v5889
      %5891 = vmatmul.f32.gmra.mxu0 %v5828
      %v5892 = vpop.f32.mrf.mxu0
      %v5893 = vadd.f32 %v5780, %v5892
      %5894 = vmatmul.f32.gmra.mxu0 %v5831
      %v5895 = vpop.f32.mrf.mxu0
      %v5896 = vadd.f32 %v5783, %v5895
      %5897 = vmatmul.f32.gmra.mxu0 %v5834
      %v5898 = vpop.f32.mrf.mxu0
      %v5899 = vadd.f32 %v5786, %v5898
      %5900 = vmatmul.f32.gmra.mxu0 %v5837
      %v5901 = vpop.f32.mrf.mxu0
      %v5902 = vadd.f32 %v5789, %v5901
      %5903 = vmatmul.f32.gmra.mxu0 %v5840
      %v5904 = vpop.f32.mrf.mxu0
      %v5905 = vadd.f32 %v5792, %v5904
      %5906 = vmatmul.f32.gmra.mxu0 %v5843
      %v5907 = vpop.f32.mrf.mxu0
      %v5908 = vadd.f32 %v5795, %v5907
      %5909 = vmatmul.f32.gmra.mxu0 %v5846
      %v5910 = vpop.f32.mrf.mxu0
      %v5911 = vadd.f32 %v5798, %v5910
      %5912 = vdwg.mxu0
      %v5913 = vld [vmem:[%s6 + $0x5] sm:$0x1]
      %v5914 = vperm.slane %v5913, 0
      %v5915 = vadd.f32 %v5866, %v5914
      %v5916 = vadd.f32 %v5869, %v5914
      %v5917 = vadd.f32 %v5872, %v5914
      %v5918 = vadd.f32 %v5875, %v5914
      %v5919 = vadd.f32 %v5878, %v5914
      %v5920 = vadd.f32 %v5881, %v5914
      %v5921 = vadd.f32 %v5884, %v5914
      %v5922 = vadd.f32 %v5887, %v5914
      %v5923 = vadd.f32 %v5890, %v5914
      %v5924 = vadd.f32 %v5893, %v5914
      %v5925 = vadd.f32 %v5896, %v5914
      %v5926 = vadd.f32 %v5899, %v5914
      %v5927 = vadd.f32 %v5902, %v5914
      %v5928 = vadd.f32 %v5905, %v5914
      %v5929 = vadd.f32 %v5908, %v5914
      %v5930 = vadd.f32 %v5911, %v5914
      %v5931 = vtanh.pop %v5915
      %v5932 = vtanh.pop %v5916
      %v5933 = vtanh.pop %v5917
      %v5934 = vtanh.pop %v5918
      %v5935 = vtanh.pop %v5919
      %v5936 = vtanh.pop %v5920
      %v5937 = vtanh.pop %v5921
      %v5938 = vtanh.pop %v5922
      %v5939 = vtanh.pop %v5923
      %v5940 = vtanh.pop %v5924
      %v5941 = vtanh.pop %v5925
      %v5942 = vtanh.pop %v5926
      %v5943 = vtanh.pop %v5927
      %v5944 = vtanh.pop %v5928
      %v5945 = vtanh.pop %v5929
      %v5946 = vtanh.pop %v5930
      %v5947 = vxor.u32 %v5915, 2147483648
      %v5948 = vxor.u32 %v5916, 2147483648
      %v5949 = vxor.u32 %v5917, 2147483648
      %v5950 = vxor.u32 %v5918, 2147483648
      %v5951 = vxor.u32 %v5919, 2147483648
      %v5952 = vxor.u32 %v5920, 2147483648
      %v5953 = vxor.u32 %v5921, 2147483648
      %v5954 = vxor.u32 %v5922, 2147483648
      %v5955 = vxor.u32 %v5923, 2147483648
      %v5956 = vxor.u32 %v5924, 2147483648
      %v5957 = vxor.u32 %v5925, 2147483648
      %v5958 = vxor.u32 %v5926, 2147483648
      %v5959 = vxor.u32 %v5927, 2147483648
      %v5960 = vxor.u32 %v5928, 2147483648
      %v5961 = vxor.u32 %v5929, 2147483648
      %v5962 = vxor.u32 %v5930, 2147483648
      %v5963 = vmul.f32 %v5947, 1.442695
      %v5964 = vpow.pop %v5963
      %v5965 = vmul.f32 %v5948, 1.442695
      %v5966 = vpow.pop %v5965
      %v5967 = vmul.f32 %v5949, 1.442695
      %v5968 = vpow.pop %v5967
      %v5969 = vmul.f32 %v5950, 1.442695
      %v5970 = vpow.pop %v5969
      %v5971 = vmul.f32 %v5951, 1.442695
      %v5972 = vpow.pop %v5971
      %v5973 = vmul.f32 %v5952, 1.442695
      %v5974 = vpow.pop %v5973
      %v5975 = vmul.f32 %v5953, 1.442695
      %v5976 = vpow.pop %v5975
      %v5977 = vmul.f32 %v5954, 1.442695
      %v5978 = vpow.pop %v5977
      %v5979 = vmul.f32 %v5955, 1.442695
      %v5980 = vpow.pop %v5979
      %v5981 = vmul.f32 %v5956, 1.442695
      %v5982 = vpow.pop %v5981
      %v5983 = vmul.f32 %v5957, 1.442695
      %v5984 = vpow.pop %v5983
      %v5985 = vmul.f32 %v5958, 1.442695
      %v5986 = vpow.pop %v5985
      %v5987 = vmul.f32 %v5959, 1.442695
      %v5988 = vpow.pop %v5987
      %v5989 = vmul.f32 %v5960, 1.442695
      %v5990 = vpow.pop %v5989
      %v5991 = vmul.f32 %v5961, 1.442695
      %v5992 = vpow.pop %v5991
      %v5993 = vmul.f32 %v5962, 1.442695
      %v5994 = vpow.pop %v5993
      %v5995 = vadd.f32 %v5964, 1.0
      %v5996 = vadd.f32 %v5966, 1.0
      %v5997 = vadd.f32 %v5968, 1.0
      %v5998 = vadd.f32 %v5970, 1.0
      %v5999 = vadd.f32 %v5972, 1.0
      %v6000 = vadd.f32 %v5974, 1.0
      %v6001 = vadd.f32 %v5976, 1.0
      %v6002 = vadd.f32 %v5978, 1.0
      %v6003 = vadd.f32 %v5980, 1.0
      %v6004 = vadd.f32 %v5982, 1.0
      %v6005 = vadd.f32 %v5984, 1.0
      %v6006 = vadd.f32 %v5986, 1.0
      %v6007 = vadd.f32 %v5988, 1.0
      %v6008 = vadd.f32 %v5990, 1.0
      %v6009 = vadd.f32 %v5992, 1.0
      %v6010 = vadd.f32 %v5994, 1.0
      %v6011 = vrcp.pop %v5995
      %v6012 = vmul.f32 %v5995, %v6011
      %v6013 = vsub.f32 1.0, %v6012
      %v6014 = vmul.f32 %v6011, %v6013
      %v6015 = vadd.f32 %v6011, %v6014
      %vm6016 = vweird.f32 %v5995
      %vm6017 = vweird.f32 %v6011
      %vm6018 = vmor %vm6016, %vm6017
      %v6019 = vsel %vm6018, %v6011, %v6015
      %v6020 = vand.u32 2147483647, %v5995
      %vm6021 = vcmp.eq.f32.partialorder %v6020, 8.507059e+37
      %v6022 = vand.u32 %v5995, 2147483648
      %v6023 = vor.u32 1.1754944e-38, %v6022
      %v6024 = vsel %vm6021, %v6023, %v6019
      %v6025 = vmul.f32 1.0, %v6024
      %v6026 = vrcp.pop %v5996
      %v6027 = vmul.f32 %v5996, %v6026
      %v6028 = vsub.f32 1.0, %v6027
      %v6029 = vmul.f32 %v6026, %v6028
      %v6030 = vadd.f32 %v6026, %v6029
      %vm6031 = vweird.f32 %v5996
      %vm6032 = vweird.f32 %v6026
      %vm6033 = vmor %vm6031, %vm6032
      %v6034 = vsel %vm6033, %v6026, %v6030
      %v6035 = vand.u32 2147483647, %v5996
      %vm6036 = vcmp.eq.f32.partialorder %v6035, 8.507059e+37
      %v6037 = vand.u32 %v5996, 2147483648
      %v6038 = vor.u32 1.1754944e-38, %v6037
      %v6039 = vsel %vm6036, %v6038, %v6034
      %v6040 = vmul.f32 1.0, %v6039
      %v6041 = vrcp.pop %v5997
      %v6042 = vmul.f32 %v5997, %v6041
      %v6043 = vsub.f32 1.0, %v6042
      %v6044 = vmul.f32 %v6041, %v6043
      %v6045 = vadd.f32 %v6041, %v6044
      %vm6046 = vweird.f32 %v5997
      %vm6047 = vweird.f32 %v6041
      %vm6048 = vmor %vm6046, %vm6047
      %v6049 = vsel %vm6048, %v6041, %v6045
      %v6050 = vand.u32 2147483647, %v5997
      %vm6051 = vcmp.eq.f32.partialorder %v6050, 8.507059e+37
      %v6052 = vand.u32 %v5997, 2147483648
      %v6053 = vor.u32 1.1754944e-38, %v6052
      %v6054 = vsel %vm6051, %v6053, %v6049
      %v6055 = vmul.f32 1.0, %v6054
      %v6056 = vrcp.pop %v5998
      %v6057 = vmul.f32 %v5998, %v6056
      %v6058 = vsub.f32 1.0, %v6057
      %v6059 = vmul.f32 %v6056, %v6058
      %v6060 = vadd.f32 %v6056, %v6059
      %vm6061 = vweird.f32 %v5998
      %vm6062 = vweird.f32 %v6056
      %vm6063 = vmor %vm6061, %vm6062
      %v6064 = vsel %vm6063, %v6056, %v6060
      %v6065 = vand.u32 2147483647, %v5998
      %vm6066 = vcmp.eq.f32.partialorder %v6065, 8.507059e+37
      %v6067 = vand.u32 %v5998, 2147483648
      %v6068 = vor.u32 1.1754944e-38, %v6067
      %v6069 = vsel %vm6066, %v6068, %v6064
      %v6070 = vmul.f32 1.0, %v6069
      %v6071 = vrcp.pop %v5999
      %v6072 = vmul.f32 %v5999, %v6071
      %v6073 = vsub.f32 1.0, %v6072
      %v6074 = vmul.f32 %v6071, %v6073
      %v6075 = vadd.f32 %v6071, %v6074
      %vm6076 = vweird.f32 %v5999
      %vm6077 = vweird.f32 %v6071
      %vm6078 = vmor %vm6076, %vm6077
      %v6079 = vsel %vm6078, %v6071, %v6075
      %v6080 = vand.u32 2147483647, %v5999
      %vm6081 = vcmp.eq.f32.partialorder %v6080, 8.507059e+37
      %v6082 = vand.u32 %v5999, 2147483648
      %v6083 = vor.u32 1.1754944e-38, %v6082
      %v6084 = vsel %vm6081, %v6083, %v6079
      %v6085 = vmul.f32 1.0, %v6084
      %v6086 = vrcp.pop %v6000
      %v6087 = vmul.f32 %v6000, %v6086
      %v6088 = vsub.f32 1.0, %v6087
      %v6089 = vmul.f32 %v6086, %v6088
      %v6090 = vadd.f32 %v6086, %v6089
      %vm6091 = vweird.f32 %v6000
      %vm6092 = vweird.f32 %v6086
      %vm6093 = vmor %vm6091, %vm6092
      %v6094 = vsel %vm6093, %v6086, %v6090
      %v6095 = vand.u32 2147483647, %v6000
      %vm6096 = vcmp.eq.f32.partialorder %v6095, 8.507059e+37
      %v6097 = vand.u32 %v6000, 2147483648
      %v6098 = vor.u32 1.1754944e-38, %v6097
      %v6099 = vsel %vm6096, %v6098, %v6094
      %v6100 = vmul.f32 1.0, %v6099
      %v6101 = vrcp.pop %v6001
      %v6102 = vmul.f32 %v6001, %v6101
      %v6103 = vsub.f32 1.0, %v6102
      %v6104 = vmul.f32 %v6101, %v6103
      %v6105 = vadd.f32 %v6101, %v6104
      %vm6106 = vweird.f32 %v6001
      %vm6107 = vweird.f32 %v6101
      %vm6108 = vmor %vm6106, %vm6107
      %v6109 = vsel %vm6108, %v6101, %v6105
      %v6110 = vand.u32 2147483647, %v6001
      %vm6111 = vcmp.eq.f32.partialorder %v6110, 8.507059e+37
      %v6112 = vand.u32 %v6001, 2147483648
      %v6113 = vor.u32 1.1754944e-38, %v6112
      %v6114 = vsel %vm6111, %v6113, %v6109
      %v6115 = vmul.f32 1.0, %v6114
      %v6116 = vrcp.pop %v6002
      %v6117 = vmul.f32 %v6002, %v6116
      %v6118 = vsub.f32 1.0, %v6117
      %v6119 = vmul.f32 %v6116, %v6118
      %v6120 = vadd.f32 %v6116, %v6119
      %vm6121 = vweird.f32 %v6002
      %vm6122 = vweird.f32 %v6116
      %vm6123 = vmor %vm6121, %vm6122
      %v6124 = vsel %vm6123, %v6116, %v6120
      %v6125 = vand.u32 2147483647, %v6002
      %vm6126 = vcmp.eq.f32.partialorder %v6125, 8.507059e+37
      %v6127 = vand.u32 %v6002, 2147483648
      %v6128 = vor.u32 1.1754944e-38, %v6127
      %v6129 = vsel %vm6126, %v6128, %v6124
      %v6130 = vmul.f32 1.0, %v6129
      %v6131 = vrcp.pop %v6003
      %v6132 = vmul.f32 %v6003, %v6131
      %v6133 = vsub.f32 1.0, %v6132
      %v6134 = vmul.f32 %v6131, %v6133
      %v6135 = vadd.f32 %v6131, %v6134
      %vm6136 = vweird.f32 %v6003
      %vm6137 = vweird.f32 %v6131
      %vm6138 = vmor %vm6136, %vm6137
      %v6139 = vsel %vm6138, %v6131, %v6135
      %v6140 = vand.u32 2147483647, %v6003
      %vm6141 = vcmp.eq.f32.partialorder %v6140, 8.507059e+37
      %v6142 = vand.u32 %v6003, 2147483648
      %v6143 = vor.u32 1.1754944e-38, %v6142
      %v6144 = vsel %vm6141, %v6143, %v6139
      %v6145 = vmul.f32 1.0, %v6144
      %v6146 = vrcp.pop %v6004
      %v6147 = vmul.f32 %v6004, %v6146
      %v6148 = vsub.f32 1.0, %v6147
      %v6149 = vmul.f32 %v6146, %v6148
      %v6150 = vadd.f32 %v6146, %v6149
      %vm6151 = vweird.f32 %v6004
      %vm6152 = vweird.f32 %v6146
      %vm6153 = vmor %vm6151, %vm6152
      %v6154 = vsel %vm6153, %v6146, %v6150
      %v6155 = vand.u32 2147483647, %v6004
      %vm6156 = vcmp.eq.f32.partialorder %v6155, 8.507059e+37
      %v6157 = vand.u32 %v6004, 2147483648
      %v6158 = vor.u32 1.1754944e-38, %v6157
      %v6159 = vsel %vm6156, %v6158, %v6154
      %v6160 = vmul.f32 1.0, %v6159
      %v6161 = vrcp.pop %v6005
      %v6162 = vmul.f32 %v6005, %v6161
      %v6163 = vsub.f32 1.0, %v6162
      %v6164 = vmul.f32 %v6161, %v6163
      %v6165 = vadd.f32 %v6161, %v6164
      %vm6166 = vweird.f32 %v6005
      %vm6167 = vweird.f32 %v6161
      %vm6168 = vmor %vm6166, %vm6167
      %v6169 = vsel %vm6168, %v6161, %v6165
      %v6170 = vand.u32 2147483647, %v6005
      %vm6171 = vcmp.eq.f32.partialorder %v6170, 8.507059e+37
      %v6172 = vand.u32 %v6005, 2147483648
      %v6173 = vor.u32 1.1754944e-38, %v6172
      %v6174 = vsel %vm6171, %v6173, %v6169
      %v6175 = vmul.f32 1.0, %v6174
      %v6176 = vrcp.pop %v6006
      %v6177 = vmul.f32 %v6006, %v6176
      %v6178 = vsub.f32 1.0, %v6177
      %v6179 = vmul.f32 %v6176, %v6178
      %v6180 = vadd.f32 %v6176, %v6179
      %vm6181 = vweird.f32 %v6006
      %vm6182 = vweird.f32 %v6176
      %vm6183 = vmor %vm6181, %vm6182
      %v6184 = vsel %vm6183, %v6176, %v6180
      %v6185 = vand.u32 2147483647, %v6006
      %vm6186 = vcmp.eq.f32.partialorder %v6185, 8.507059e+37
      %v6187 = vand.u32 %v6006, 2147483648
      %v6188 = vor.u32 1.1754944e-38, %v6187
      %v6189 = vsel %vm6186, %v6188, %v6184
      %v6190 = vmul.f32 1.0, %v6189
      %v6191 = vrcp.pop %v6007
      %v6192 = vmul.f32 %v6007, %v6191
      %v6193 = vsub.f32 1.0, %v6192
      %v6194 = vmul.f32 %v6191, %v6193
      %v6195 = vadd.f32 %v6191, %v6194
      %vm6196 = vweird.f32 %v6007
      %vm6197 = vweird.f32 %v6191
      %vm6198 = vmor %vm6196, %vm6197
      %v6199 = vsel %vm6198, %v6191, %v6195
      %v6200 = vand.u32 2147483647, %v6007
      %vm6201 = vcmp.eq.f32.partialorder %v6200, 8.507059e+37
      %v6202 = vand.u32 %v6007, 2147483648
      %v6203 = vor.u32 1.1754944e-38, %v6202
      %v6204 = vsel %vm6201, %v6203, %v6199
      %v6205 = vmul.f32 1.0, %v6204
      %v6206 = vrcp.pop %v6008
      %v6207 = vmul.f32 %v6008, %v6206
      %v6208 = vsub.f32 1.0, %v6207
      %v6209 = vmul.f32 %v6206, %v6208
      %v6210 = vadd.f32 %v6206, %v6209
      %vm6211 = vweird.f32 %v6008
      %vm6212 = vweird.f32 %v6206
      %vm6213 = vmor %vm6211, %vm6212
      %v6214 = vsel %vm6213, %v6206, %v6210
      %v6215 = vand.u32 2147483647, %v6008
      %vm6216 = vcmp.eq.f32.partialorder %v6215, 8.507059e+37
      %v6217 = vand.u32 %v6008, 2147483648
      %v6218 = vor.u32 1.1754944e-38, %v6217
      %v6219 = vsel %vm6216, %v6218, %v6214
      %v6220 = vmul.f32 1.0, %v6219
      %v6221 = vrcp.pop %v6009
      %v6222 = vmul.f32 %v6009, %v6221
      %v6223 = vsub.f32 1.0, %v6222
      %v6224 = vmul.f32 %v6221, %v6223
      %v6225 = vadd.f32 %v6221, %v6224
      %vm6226 = vweird.f32 %v6009
      %vm6227 = vweird.f32 %v6221
      %vm6228 = vmor %vm6226, %vm6227
      %v6229 = vsel %vm6228, %v6221, %v6225
      %v6230 = vand.u32 2147483647, %v6009
      %vm6231 = vcmp.eq.f32.partialorder %v6230, 8.507059e+37
      %v6232 = vand.u32 %v6009, 2147483648
      %v6233 = vor.u32 1.1754944e-38, %v6232
      %v6234 = vsel %vm6231, %v6233, %v6229
      %v6235 = vmul.f32 1.0, %v6234
      %v6236 = vrcp.pop %v6010
      %v6237 = vmul.f32 %v6010, %v6236
      %v6238 = vsub.f32 1.0, %v6237
      %v6239 = vmul.f32 %v6236, %v6238
      %v6240 = vadd.f32 %v6236, %v6239
      %vm6241 = vweird.f32 %v6010
      %vm6242 = vweird.f32 %v6236
      %vm6243 = vmor %vm6241, %vm6242
      %v6244 = vsel %vm6243, %v6236, %v6240
      %v6245 = vand.u32 2147483647, %v6010
      %vm6246 = vcmp.eq.f32.partialorder %v6245, 8.507059e+37
      %v6247 = vand.u32 %v6010, 2147483648
      %v6248 = vor.u32 1.1754944e-38, %v6247
      %v6249 = vsel %vm6246, %v6248, %v6244
      %v6250 = vmul.f32 1.0, %v6249
      %6267 = vrot.lane.b32.xlu0 %v6025, 96
      %v6268 = vpop.permute.xlu0 %6267
      %6269 = vrot.lane.b32.xlu0 %v6040, 96
      %v6270 = vpop.permute.xlu0 %6269
      %6271 = vrot.lane.b32.xlu0 %v6055, 96
      %v6272 = vpop.permute.xlu0 %6271
      %6273 = vrot.lane.b32.xlu0 %v6070, 96
      %v6274 = vpop.permute.xlu0 %6273
      %6275 = vrot.lane.b32.xlu0 %v6085, 96
      %v6276 = vpop.permute.xlu0 %6275
      %6277 = vrot.lane.b32.xlu0 %v6100, 96
      %v6278 = vpop.permute.xlu0 %6277
      %6279 = vrot.lane.b32.xlu0 %v6115, 96
      %v6280 = vpop.permute.xlu0 %6279
      %6281 = vrot.lane.b32.xlu0 %v6130, 96
      %v6282 = vpop.permute.xlu0 %6281
      %6283 = vrot.lane.b32.xlu0 %v6145, 96
      %v6284 = vpop.permute.xlu0 %6283
      %6285 = vrot.lane.b32.xlu0 %v6160, 96
      %v6286 = vpop.permute.xlu0 %6285
      %6287 = vrot.lane.b32.xlu0 %v6175, 96
      %v6288 = vpop.permute.xlu0 %6287
      %6289 = vrot.lane.b32.xlu0 %v6190, 96
      %v6290 = vpop.permute.xlu0 %6289
      %6291 = vrot.lane.b32.xlu0 %v6205, 96
      %v6292 = vpop.permute.xlu0 %6291
      %6293 = vrot.lane.b32.xlu0 %v6220, 96
      %v6294 = vpop.permute.xlu0 %6293
      %6295 = vrot.lane.b32.xlu0 %v6235, 96
      %v6296 = vpop.permute.xlu0 %6295
      %6297 = vrot.lane.b32.xlu0 %v6250, 96
      %v6298 = vpop.permute.xlu0 %6297
      %v6315 = vmul.f32 %v5931, %v6268
      %v6316 = vmul.f32 %v5932, %v6270
      %v6317 = vmul.f32 %v5933, %v6272
      %v6318 = vmul.f32 %v5934, %v6274
      %v6319 = vmul.f32 %v5935, %v6276
      %v6320 = vmul.f32 %v5936, %v6278
      %v6321 = vmul.f32 %v5937, %v6280
      %v6322 = vmul.f32 %v5938, %v6282
      %v6323 = vmul.f32 %v5939, %v6284
      %v6324 = vmul.f32 %v5940, %v6286
      %v6325 = vmul.f32 %v5941, %v6288
      %v6326 = vmul.f32 %v5942, %v6290
      %v6327 = vmul.f32 %v5943, %v6292
      %v6328 = vmul.f32 %v5944, %v6294
      %v6329 = vmul.f32 %v5945, %v6296
      %v6330 = vmul.f32 %v5946, %v6298
      %s6331 = scalar_lea.vmem %s7, 160
      %v6332 = vld [vmem:[%s6331] sm:$0xff]
      %v6333 = vld [vmem:[%s6331 + $0x8] sm:$0xff]
      %v6334 = vld [vmem:[%s6331 + $0x10] sm:$0xff]
      %v6335 = vld [vmem:[%s6331 + $0x18] sm:$0xff]
      %v6336 = vld [vmem:[%s8 + $0x5] sm:$0x1]
      %v6337 = vperm.slane %v6336, 0
      %v6339 = vsel %vm1198, %v6315, 0
      %v6342 = vsel %vm1198, %v6316, 0
      %v6345 = vsel %vm1198, %v6317, 0
      %v6348 = vsel %vm1198, %v6318, 0
      %v6351 = vsel %vm1198, %v6319, 0
      %v6354 = vsel %vm1198, %v6320, 0
      %v6357 = vsel %vm1198, %v6321, 0
      %v6360 = vsel %vm1198, %v6322, 0
      %v6363 = vsel %vm1198, %v6323, 0
      %v6366 = vsel %vm1198, %v6324, 0
      %v6369 = vsel %vm1198, %v6325, 0
      %v6372 = vsel %vm1198, %v6326, 0
      %v6375 = vsel %vm1198, %v6327, 0
      %v6378 = vsel %vm1198, %v6328, 0
      %v6381 = vsel %vm1198, %v6329, 0
      %v6384 = vsel %vm1198, %v6330, 0
      %6386 = vmatpush.msra.mxu0 0.0
      %6387 = vmatpush.msra.mxu0 0.0
      %6388 = vmatpush.msra.mxu0 0.0
      %6389 = vmatpush.msra.mxu0 0.0
      %6390 = vmatpush.msra.mxu0 0.0
      %6391 = vmatpush.msra.mxu0 0.0
      %6392 = vmatpush.msra.mxu0 0.0
      %6393 = vmatpush.msra.mxu0 0.0
      %6394 = vmatpush.msra.mxu0 0.0
      %6395 = vmatpush.msra.mxu0 0.0
      %6396 = vmatpush.msra.mxu0 0.0
      %6397 = vmatpush.msra.mxu0 0.0
      %6398 = vmatpush.msra.mxu0 %v6335
      %6399 = vmatpush.msra.mxu0 %v6334
      %6400 = vmatpush.msra.mxu0 %v6333
      %6401 = vmatpush.msra.mxu0 %v6332
      %6402 = vmatmul.f32.gmra.mxu0 %v6339
      %v6403 = vpop.f32.mrf.mxu0
      %6404 = vmatmul.f32.gmra.mxu0 %v6342
      %v6405 = vpop.f32.mrf.mxu0
      %v6406 = vadd.f32 %v6337, %v6405
      %6407 = vmatmul.f32.gmra.mxu0 %v6345
      %v6408 = vpop.f32.mrf.mxu0
      %6409 = vmatmul.f32.gmra.mxu0 %v6348
      %v6410 = vpop.f32.mrf.mxu0
      %v6411 = vadd.f32 %v6337, %v6410
      %6412 = vmatmul.f32.gmra.mxu0 %v6351
      %v6413 = vpop.f32.mrf.mxu0
      %6414 = vmatmul.f32.gmra.mxu0 %v6354
      %v6415 = vpop.f32.mrf.mxu0
      %v6416 = vadd.f32 %v6337, %v6415
      %6417 = vmatmul.f32.gmra.mxu0 %v6357
      %v6418 = vpop.f32.mrf.mxu0
      %6419 = vmatmul.f32.gmra.mxu0 %v6360
      %v6420 = vpop.f32.mrf.mxu0
      %v6421 = vadd.f32 %v6337, %v6420
      %6422 = vmatmul.f32.gmra.mxu0 %v6363
      %v6423 = vpop.f32.mrf.mxu0
      %6424 = vmatmul.f32.gmra.mxu0 %v6366
      %v6425 = vpop.f32.mrf.mxu0
      %v6426 = vadd.f32 %v6337, %v6425
      %6427 = vmatmul.f32.gmra.mxu0 %v6369
      %v6428 = vpop.f32.mrf.mxu0
      %6429 = vmatmul.f32.gmra.mxu0 %v6372
      %v6430 = vpop.f32.mrf.mxu0
      %v6431 = vadd.f32 %v6337, %v6430
      %6432 = vmatmul.f32.gmra.mxu0 %v6375
      %v6433 = vpop.f32.mrf.mxu0
      %6434 = vmatmul.f32.gmra.mxu0 %v6378
      %v6435 = vpop.f32.mrf.mxu0
      %v6436 = vadd.f32 %v6337, %v6435
      %6437 = vmatmul.f32.gmra.mxu0 %v6381
      %v6438 = vpop.f32.mrf.mxu0
      %6439 = vmatmul.f32.gmra.mxu0 %v6384
      %v6440 = vpop.f32.mrf.mxu0
      %v6441 = vadd.f32 %v6337, %v6440
      %6442 = vdwg.mxu0
      %v6443 = vmax.f32 %v6406, 0.0
      %v6444 = vmax.f32 %v6411, 0.0
      %v6445 = vmax.f32 %v6416, 0.0
      %v6446 = vmax.f32 %v6421, 0.0
      %v6447 = vmax.f32 %v6426, 0.0
      %v6448 = vmax.f32 %v6431, 0.0
      %v6449 = vmax.f32 %v6436, 0.0
      %v6450 = vmax.f32 %v6441, 0.0
      %s6451 = scalar_lea.vmem %s9, 160
      %v6452 = vld [vmem:[%s6451] sm:$0xff]
      %v6453 = vld [vmem:[%s6451 + $0x8] sm:$0xff]
      %v6454 = vld [vmem:[%s6451 + $0x10] sm:$0xff]
      %v6455 = vld [vmem:[%s6451 + $0x18] sm:$0xff]
      %v6464 = vrot.slane %v6443, 7
      %v6465 = vrot.slane %v6444, 6
      %v6466 = vsel %vm904, %v6465, %v6464
      %v6467 = vrot.slane %v6445, 5
      %v6468 = vsel %vm906, %v6467, %v6466
      %v6469 = vrot.slane %v6446, 4
      %v6470 = vsel %vm908, %v6469, %v6468
      %v6471 = vrot.slane %v6447, 3
      %v6472 = vsel %vm910, %v6471, %v6470
      %v6473 = vrot.slane %v6448, 2
      %v6474 = vsel %vm912, %v6473, %v6472
      %v6475 = vrot.slane %v6449, 1
      %v6476 = vsel %vm914, %v6475, %v6474
      %v6477 = vsel %vm916, %v6450, %v6476
      %6478 = vrot.lane.b32.xlu0 %v6477, 96
      %v6479 = vpop.permute.xlu0 %6478
      %v6480 = vsel %vm1198, %v6479, 0
      %6482 = vmatpush.msra.mxu0 0.0
      %6483 = vmatpush.msra.mxu0 0.0
      %6484 = vmatpush.msra.mxu0 0.0
      %6485 = vmatpush.msra.mxu0 0.0
      %6486 = vmatpush.msra.mxu0 0.0
      %6487 = vmatpush.msra.mxu0 0.0
      %6488 = vmatpush.msra.mxu0 0.0
      %6489 = vmatpush.msra.mxu0 0.0
      %6490 = vmatpush.msra.mxu0 0.0
      %6491 = vmatpush.msra.mxu0 0.0
      %6492 = vmatpush.msra.mxu0 0.0
      %6493 = vmatpush.msra.mxu0 0.0
      %6494 = vmatpush.msra.mxu0 %v6455
      %6495 = vmatpush.msra.mxu0 %v6454
      %6496 = vmatpush.msra.mxu0 %v6453
      %6497 = vmatpush.msra.mxu0 %v6452
      %6498 = vmatmul.f32.gmra.mxu0 %v6480
      %v6499 = vpop.f32.mrf.mxu0
      %v6500 = vadd.f32 0.0, %v6499
      %6501 = vdwg.mxu0
      %v6502 = vadd.f32 %v5628, %v6500
      %v6503 = vld [vmem:[%s10] sm:$0x1]
      %v6505 = vperm.slane %v6503, 0
      %v6507 = vadd.f32 %v6502, %v6505
      %v6508 = vmax.f32 %v6507, 0.0
      %v6509 = vld [vmem:[%s11] sm:$0xff]
      %v6510 = vld [vmem:[%s11 + $0x8] sm:$0xff]
      %v6511 = vld [vmem:[%s11 + $0x10] sm:$0xff]
      %v6512 = vld [vmem:[%s11 + $0x18] sm:$0xff]
      %v6513 = vld [vmem:[%s11 + $0x20] sm:$0xff]
      %v6514 = vld [vmem:[%s11 + $0x28] sm:$0xff]
      %v6515 = vld [vmem:[%s11 + $0x30] sm:$0xff]
      %v6516 = vld [vmem:[%s11 + $0x38] sm:$0xff]
      %v6517 = vld [vmem:[%s11 + $0x40] sm:$0xff]
      %v6518 = vld [vmem:[%s11 + $0x48] sm:$0xff]
      %v6519 = vld [vmem:[%s11 + $0x50] sm:$0xff]
      %v6520 = vld [vmem:[%s11 + $0x58] sm:$0xff]
      %v6521 = vld [vmem:[%s11 + $0x60] sm:$0xf]
      %v6522 = vld [vmem:[%s12] sm:$0x1]
      %v6524 = vperm.slane %v6522, 0
      %vm6526 = vcmask 818176
      %v6528 = vsel %vm6526, %v6508, 0
      %vm6530 = vcmask 1043456
      %v6532 = vsel %vm6530, %v6521, 0
      %6534 = vmatpush.msra.mxu0 0.0
      %6535 = vmatpush.msra.mxu0 0.0
      %6536 = vmatpush.msra.mxu0 0.0
      %6537 = vmatpush.msra.mxu0 %v6532
      %6538 = vmatpush.msra.mxu0 %v6520
      %6539 = vmatpush.msra.mxu0 %v6519
      %6540 = vmatpush.msra.mxu0 %v6518
      %6541 = vmatpush.msra.mxu0 %v6517
      %6542 = vmatpush.msra.mxu0 %v6516
      %6543 = vmatpush.msra.mxu0 %v6515
      %6544 = vmatpush.msra.mxu0 %v6514
      %6545 = vmatpush.msra.mxu0 %v6513
      %6546 = vmatpush.msra.mxu0 %v6512
      %6547 = vmatpush.msra.mxu0 %v6511
      %6548 = vmatpush.msra.mxu0 %v6510
      %6549 = vmatpush.msra.mxu0 %v6509
      %6550 = vmatmul.f32.gmra.mxu0 %v6528
      %v6551 = vpop.f32.mrf.mxu0
      %v6552 = vadd.f32 %v6524, %v6551
      %6553 = vdwg.mxu0
      %6554 = vst [vmem:[%s443] sm:$0xff] %v6552
      %p6555 = scmp.lt.s32.totalorder %s24, 1
      %s6556 = scalar_select %p6555, %s24, 1
      %s6557 = smul.addr %s6556, 8
      %s6558 = scalar_lea.vmem %s13, %s6557
      // Predicated region
      $region73: #{wavenet_pallas.1} parent=71 // pred_check
        %p6559 = pneg %p320
      $region74: #{wavenet_pallas.1} parent=71 // pred_check_branch
        %6561 = sbr.rel (%p6559) target = $region76
      $region75: #{wavenet_pallas.1} parent=71 // pred_region
        _
      $region76: #{wavenet_pallas.1} parent=71 // pred_fallthru
        _
    $region72: #{wavenet_pallas.1} parent=5 // pred_fallthru
      _
    %p6562 = scmp.le.s32.totalorder 2, %s19
    // Predicated region
    $region77: #{wavenet_pallas.1} parent=5 // pred_check
      %p6563 = pneg %p6562
    $region78: #{wavenet_pallas.1} parent=5 // pred_check_branch
      %6565 = sbr.rel (%p6563) target = $region80
    $region79: #{wavenet_pallas.1} parent=5 // pred_region
      %s6566 = ssub.s32 %s19, 2
      // Predicated region
      $region81: #{wavenet_pallas.1} parent=79 // pred_check
        %p6567 = pneg %p326
      $region82: #{wavenet_pallas.1} parent=79 // pred_check_branch
        %6569 = sbr.rel (%p6567) target = $region84
      $region83: #{wavenet_pallas.1} parent=79 // pred_region
        %p6570 = scmp.lt.s32.totalorder %s25, 1
        %s6571 = scalar_select %p6570, %s25, 1
        %s6572 = smul.addr %s6571, 8
        %s6573 = scalar_lea.vmem %s13, %s6572
      $region84: #{wavenet_pallas.1} parent=79 // pred_fallthru
        _
    $region80: #{wavenet_pallas.1} parent=5 // pred_fallthru
      _
  $region6: #{wavenet_pallas.1} parent=0 // loop_footer
    %s23 = sadd.s32 1, %s19
  $region7: #{wavenet_pallas.1} parent=0 // loop_footer_branch
    %18 = sbr.rel target = $region3
  $region8: #{wavenet_pallas.1} parent=0 // loop_exit
    _

</llo_original>
